<compile_context>
chip_gen: v7x
topology: tpu7x:2x2x1
jax: 0.10.0
libtpu: 0.0.40
codegen_flags: <defaults>
</compile_context>

<pallas_src>
import jax
import jax.numpy as jnp
from jax import lax
from jax.experimental import pallas as pl
from jax.experimental.pallas import tpu as pltpu


def _double_conv_kernel(x_ref, w1_ref, w2_ref, s1_ref, b1_ref, s2_ref, b2_ref,
                        o_ref, xp1_ref, xp2_ref):
    """Fused [conv3x3 + BN + ReLU] x 2 for one batch element (NHWC tile).

    x_ref  : (1, H, W, Cin)     unpadded input tile (f32)
    w1_ref : (9*Cin,  Cout)     conv1 weights, 3x3 taps flattened into K (bf16)
    w2_ref : (9*Cout, Cout)     conv2 weights, 3x3 taps flattened into K (bf16)
    s*_ref : (1, Cout)          folded BN scale (f32)
    b*_ref : (1, Cout)          folded BN bias incl. conv bias (f32)
    o_ref  : (1, H, W, Cout)    output tile
    xp1_ref: (H+2, W+2, Cin)    VMEM scratch: zero-halo padded conv1 input (bf16)
    xp2_ref: (H+2, W+2, Cout)   VMEM scratch: zero-halo padded conv2 input (bf16)
    """
    H = o_ref.shape[1]
    W = o_ref.shape[2]
    Cin = x_ref.shape[3]
    Cout = o_ref.shape[3]

    # The halo border of both padded scratch buffers only ever holds zeros and
    # the interior is fully overwritten every grid step, so zero just once.
    @pl.when(pl.program_id(0) == 0)
    def _():
        xp1_ref[...] = jnp.zeros_like(xp1_ref)
        xp2_ref[...] = jnp.zeros_like(xp2_ref)

    def im2col(xp, c):
        # (H+2, W+2, c) padded value -> (H*W, 9*c): fuse the 9 taps into the
        # contraction dim so the MXU runs one K=9*c matmul instead of nine K=c.
        taps = []
        for dy in range(3):
            for dx in range(3):
                taps.append(xp[dy:dy + H, dx:dx + W, :].reshape(H * W, c))
        return jnp.concatenate(taps, axis=1)

    # ---- stage 1: conv(in_ch -> out_ch) + folded BN + ReLU ------------------
    xp1_ref[1:H + 1, 1:W + 1, :] = x_ref[0].astype(xp1_ref.dtype)
    acc1 = jnp.dot(im2col(xp1_ref[...], Cin), w1_ref[...],
                   preferred_element_type=jnp.float32)
    y1 = jnp.maximum(acc1 * s1_ref[0] + b1_ref[0], 0.0)          # f32 epilogue

    # ---- stage 2: conv(out_ch -> out_ch) + folded BN + ReLU -----------------
    # Intermediate stays in VMEM (bf16) -- no HBM round trip between stages.
    xp2_ref[1:H + 1, 1:W + 1, :] = y1.reshape(H, W, Cout).astype(xp2_ref.dtype)
    acc2 = jnp.dot(im2col(xp2_ref[...], Cout), w2_ref[...],
                   preferred_element_type=jnp.float32)
    y2 = jnp.maximum(acc2 * s2_ref[0] + b2_ref[0], 0.0)

    # TODO(synk): for large Cout (>=128 in real UNets) the store is lane-dense
    # automatically; for small Cout a lane-packing of W*Cout would be needed.
    o_ref[0] = y2.reshape(H, W, Cout).astype(o_ref.dtype)


def double_conv(x_nhwc, w1, w2, scale1, bias1, scale2, bias2):
    """Fused double conv. x_nhwc: (N,H,W,Cin) f32; w*: HWIO; scale/bias: (Cout,)."""
    N, H, W, Cin = x_nhwc.shape
    Cout = w1.shape[-1]

    # Flatten the 3x3 taps into the contraction dim (order (dy, dx, ci) matches
    # the in-kernel im2col) and cast weights to bf16 for the MXU.
    w1f = w1.reshape(9 * Cin, Cout).astype(jnp.bfloat16)
    w2f = w2.reshape(9 * Cout, Cout).astype(jnp.bfloat16)
    s1 = scale1.reshape(1, Cout).astype(jnp.float32)
    b1 = bias1.reshape(1, Cout).astype(jnp.float32)
    s2 = scale2.reshape(1, Cout).astype(jnp.float32)
    b2 = bias2.reshape(1, Cout).astype(jnp.float32)

    # TODO(synk): for large H*W add an H-tile grid axis with a 2-row halo so the
    # per-step VMEM footprint stays within budget (esp. v7x's 64 MiB VMEM).
    return pl.pallas_call(
        _double_conv_kernel,
        out_shape=jax.ShapeDtypeStruct((N, H, W, Cout), x_nhwc.dtype),
        grid_spec=pltpu.PrefetchScalarGridSpec(
            num_scalar_prefetch=0,
            grid=(N,),
            in_specs=[
                pl.BlockSpec((1, H, W, Cin), lambda n: (n, 0, 0, 0)),
                pl.BlockSpec((9 * Cin, Cout), lambda n: (0, 0)),
                pl.BlockSpec((9 * Cout, Cout), lambda n: (0, 0)),
                pl.BlockSpec((1, Cout), lambda n: (0, 0)),
                pl.BlockSpec((1, Cout), lambda n: (0, 0)),
                pl.BlockSpec((1, Cout), lambda n: (0, 0)),
                pl.BlockSpec((1, Cout), lambda n: (0, 0)),
            ],
            out_specs=pl.BlockSpec((1, H, W, Cout), lambda n: (n, 0, 0, 0)),
            scratch_shapes=[
                pltpu.VMEM((H + 2, W + 2, Cin), jnp.bfloat16),
                pltpu.VMEM((H + 2, W + 2, Cout), jnp.bfloat16),
            ]),
        compiler_params=pltpu.CompilerParams(
            dimension_semantics=("parallel",)),
    )(x_nhwc, w1f, w2f, s1, b1, s2, b2)


def _fold_bn(gamma, beta, running_mean, running_var, conv_bias, eps=1e-5):
    scale = gamma / jnp.sqrt(running_var + eps)
    bias = beta + scale * (conv_bias - running_mean)
    return scale, bias


def init_inconv_params(key, in_ch, out_ch):
    ks = jax.random.split(key, 8)
    p = {}
    # conv1: in_ch -> out_ch (weights stored HWIO)
    p["w1"] = 0.1 * jax.random.normal(ks[0], (3, 3, in_ch, out_ch), jnp.float32)
    p["b1"] = 0.1 * jax.random.normal(ks[1], (out_ch,), jnp.float32)
    p["gamma1"] = 1.0 + 0.1 * jax.random.normal(ks[2], (out_ch,), jnp.float32)
    p["beta1"] = 0.1 * jax.random.normal(ks[3], (out_ch,), jnp.float32)
    # conv2: out_ch -> out_ch
    p["w2"] = 0.1 * jax.random.normal(ks[4], (3, 3, out_ch, out_ch), jnp.float32)
    p["b2"] = 0.1 * jax.random.normal(ks[5], (out_ch,), jnp.float32)
    p["gamma2"] = 1.0 + 0.1 * jax.random.normal(ks[6], (out_ch,), jnp.float32)
    p["beta2"] = 0.1 * jax.random.normal(ks[7], (out_ch,), jnp.float32)
    # BN running stats (eval-mode semantics).
    # TODO(synk): training-mode BatchNorm (batch statistics) would need a
    # cross-batch reduction pass; eval-mode stats are used here.
    p["mean1"] = jnp.zeros((out_ch,), jnp.float32)
    p["var1"] = jnp.ones((out_ch,), jnp.float32)
    p["mean2"] = jnp.zeros((out_ch,), jnp.float32)
    p["var2"] = jnp.ones((out_ch,), jnp.float32)
    return p


def inconv_forward(x_nchw, params):
    """PyTorch-convention entry: x is NCHW, returns NCHW."""
    x = jnp.transpose(x_nchw, (0, 2, 3, 1))  # -> NHWC
    s1, bb1 = _fold_bn(params["gamma1"], params["beta1"],
                       params["mean1"], params["var1"], params["b1"])
    s2, bb2 = _fold_bn(params["gamma2"], params["beta2"],
                       params["mean2"], params["var2"], params["b2"])
    y = double_conv(x, params["w1"], params["w2"], s1, bb1, s2, bb2)
    return jnp.transpose(y, (0, 3, 1, 2))    # -> NCHW


def _reference_forward(x_nchw, params):
    """Pure-JAX reference (lax conv, bf16 operands / f32 accumulation)."""
    x = jnp.transpose(x_nchw, (0, 2, 3, 1))
    dn = ("NHWC", "HWIO", "NHWC")

    def block(h, w, b, gamma, beta, mean, var):
        h = lax.conv_general_dilated(
            h.astype(jnp.bfloat16), w.astype(jnp.bfloat16), (1, 1), "SAME",
            dimension_numbers=dn, preferred_element_type=jnp.float32) + b
        h = gamma * (h - mean) / jnp.sqrt(var + 1e-5) + beta
        return jnp.maximum(h, 0.0)

    y = block(x, params["w1"], params["b1"], params["gamma1"],
              params["beta1"], params["mean1"], params["var1"])
    y = block(y, params["w2"], params["b2"], params["gamma2"],
              params["beta2"], params["mean2"], params["var2"])
    return jnp.transpose(y, (0, 3, 1, 2))


if __name__ == "__main__":
    N, IN_CH, OUT_CH, H, W = 2, 4, 32, 16, 16

    key = jax.random.PRNGKey(0)
    kx, kp = jax.random.split(key)
    x = jax.random.normal(kx, (N, IN_CH, H, W), jnp.float32)
    params = init_inconv_params(kp, IN_CH, OUT_CH)

    out = inconv_forward(x, params)
    out = jax.block_until_ready(out)

    ref = jax.block_until_ready(_reference_forward(x, params))
    assert out.shape == (N, OUT_CH, H, W)
    assert jnp.allclose(out, ref, rtol=1e-2, atol=1e-2), (
        float(jnp.max(jnp.abs(out - ref))))

    print("KERNEL_OK")
</pallas_src>

<mosaic_0001>
module attributes {stable_mosaic.version = 11 : i64} {
  func.func @_double_conv_kernel(%arg0: i32, %arg1: memref<1x16x16x4xf32, #tpu.memory_space<vmem>>, %arg2: memref<36x32xbf16, #tpu.memory_space<vmem>>, %arg3: memref<288x32xbf16, #tpu.memory_space<vmem>>, %arg4: memref<1x32xf32, #tpu.memory_space<vmem>>, %arg5: memref<1x32xf32, #tpu.memory_space<vmem>>, %arg6: memref<1x32xf32, #tpu.memory_space<vmem>>, %arg7: memref<1x32xf32, #tpu.memory_space<vmem>>, %arg8: memref<1x16x16x32xf32, #tpu.memory_space<vmem>>, %arg9: memref<18x18x4xbf16, #tpu.memory_space<vmem>>, %arg10: memref<18x18x32xbf16, #tpu.memory_space<vmem>>) attributes {dimension_semantics = [#tpu.dimension_semantics<parallel>], iteration_bounds = array<i64: 2>, scalar_prefetch = 0 : i64, scratch_operands = 2 : i64, tpu.core_type = #tpu.core_type<tc>, window_params = [{transform_indices = @transform_0, window_bounds = array<i64: 1, 16, 16, 4>}, {pipeline_mode = #tpu.pipeline_mode<synchronous>, transform_indices = @transform_1, window_bounds = array<i64: 36, 32>}, {pipeline_mode = #tpu.pipeline_mode<synchronous>, transform_indices = @transform_2, window_bounds = array<i64: 288, 32>}, {pipeline_mode = #tpu.pipeline_mode<synchronous>, transform_indices = @transform_3, window_bounds = array<i64: 1, 32>}, {pipeline_mode = #tpu.pipeline_mode<synchronous>, transform_indices = @transform_4, window_bounds = array<i64: 1, 32>}, {pipeline_mode = #tpu.pipeline_mode<synchronous>, transform_indices = @transform_5, window_bounds = array<i64: 1, 32>}, {pipeline_mode = #tpu.pipeline_mode<synchronous>, transform_indices = @transform_6, window_bounds = array<i64: 1, 32>}, {transform_indices = @transform_7, window_bounds = array<i64: 1, 16, 16, 32>}]} {
    %c0_i32 = arith.constant 0 : i32
    %0 = arith.cmpi eq, %arg0, %c0_i32 : i32
    %1 = arith.extui %0 : i1 to i32
    %c0_i32_0 = arith.constant 0 : i32
    %2 = arith.cmpi ne, %1, %c0_i32_0 : i32
    scf.if %2 {
      %cst_34 = arith.constant 0.000000e+00 : bf16
      %82 = vector.broadcast %cst_34 : bf16 to vector<18x18x4xbf16>
      %c0_35 = arith.constant 0 : index
      %c0_36 = arith.constant 0 : index
      %c0_37 = arith.constant 0 : index
      %83 = vector.load %arg9[%c0_35, %c0_36, %c0_37] : memref<18x18x4xbf16, #tpu.memory_space<vmem>>, vector<18x18x4xbf16>
      tpu.vector_store %arg9[%c0_35, %c0_36, %c0_37], %82 {strides = array<i32>} : memref<18x18x4xbf16, #tpu.memory_space<vmem>>, vector<18x18x4xbf16>,
      %cst_38 = arith.constant 0.000000e+00 : bf16
      %84 = vector.broadcast %cst_38 : bf16 to vector<18x18x32xbf16>
      %c0_39 = arith.constant 0 : index
      %c0_40 = arith.constant 0 : index
      %c0_41 = arith.constant 0 : index
      %85 = vector.load %arg10[%c0_39, %c0_40, %c0_41] : memref<18x18x32xbf16, #tpu.memory_space<vmem>>, vector<18x18x32xbf16>
      tpu.vector_store %arg10[%c0_39, %c0_40, %c0_41], %84 {strides = array<i32>} : memref<18x18x32xbf16, #tpu.memory_space<vmem>>, vector<18x18x32xbf16>,
    } else {
    }
    %c0 = arith.constant 0 : index
    %c0_1 = arith.constant 0 : index
    %c0_2 = arith.constant 0 : index
    %c0_3 = arith.constant 0 : index
    %3 = vector.load %arg1[%c0, %c0_1, %c0_2, %c0_3] : memref<1x16x16x4xf32, #tpu.memory_space<vmem>>, vector<1x16x16x4xf32>
    %4 = vector.shape_cast %3 : vector<1x16x16x4xf32> to vector<16x16x4xf32>
    %5 = arith.truncf %4 : vector<16x16x4xf32> to vector<16x16x4xbf16>
    %c1 = arith.constant 1 : index
    %c1_4 = arith.constant 1 : index
    %c0_5 = arith.constant 0 : index
    %6 = vector.load %arg9[%c1, %c1_4, %c0_5] : memref<18x18x4xbf16, #tpu.memory_space<vmem>>, vector<16x16x4xbf16>
    tpu.vector_store %arg9[%c1, %c1_4, %c0_5], %5 {strides = array<i32>} : memref<18x18x4xbf16, #tpu.memory_space<vmem>>, vector<16x16x4xbf16>,
    %c0_6 = arith.constant 0 : index
    %c0_7 = arith.constant 0 : index
    %c0_8 = arith.constant 0 : index
    %7 = vector.load %arg9[%c0_6, %c0_7, %c0_8] : memref<18x18x4xbf16, #tpu.memory_space<vmem>>, vector<18x18x4xbf16>
    %8 = vector.extract_strided_slice %7 {offsets = [0, 0, 0], sizes = [16, 16, 4], strides = [1, 1, 1]} : vector<18x18x4xbf16> to vector<16x16x4xbf16>
    %9 = vector.shape_cast %8 : vector<16x16x4xbf16> to vector<256x4xbf16>
    %10 = vector.extract_strided_slice %7 {offsets = [0, 1, 0], sizes = [16, 16, 4], strides = [1, 1, 1]} : vector<18x18x4xbf16> to vector<16x16x4xbf16>
    %11 = vector.shape_cast %10 : vector<16x16x4xbf16> to vector<256x4xbf16>
    %12 = vector.extract_strided_slice %7 {offsets = [0, 2, 0], sizes = [16, 16, 4], strides = [1, 1, 1]} : vector<18x18x4xbf16> to vector<16x16x4xbf16>
    %13 = vector.shape_cast %12 : vector<16x16x4xbf16> to vector<256x4xbf16>
    %14 = vector.extract_strided_slice %7 {offsets = [1, 0, 0], sizes = [16, 16, 4], strides = [1, 1, 1]} : vector<18x18x4xbf16> to vector<16x16x4xbf16>
    %15 = vector.shape_cast %14 : vector<16x16x4xbf16> to vector<256x4xbf16>
    %16 = vector.extract_strided_slice %7 {offsets = [1, 1, 0], sizes = [16, 16, 4], strides = [1, 1, 1]} : vector<18x18x4xbf16> to vector<16x16x4xbf16>
    %17 = vector.shape_cast %16 : vector<16x16x4xbf16> to vector<256x4xbf16>
    %18 = vector.extract_strided_slice %7 {offsets = [1, 2, 0], sizes = [16, 16, 4], strides = [1, 1, 1]} : vector<18x18x4xbf16> to vector<16x16x4xbf16>
    %19 = vector.shape_cast %18 : vector<16x16x4xbf16> to vector<256x4xbf16>
    %20 = vector.extract_strided_slice %7 {offsets = [2, 0, 0], sizes = [16, 16, 4], strides = [1, 1, 1]} : vector<18x18x4xbf16> to vector<16x16x4xbf16>
    %21 = vector.shape_cast %20 : vector<16x16x4xbf16> to vector<256x4xbf16>
    %22 = vector.extract_strided_slice %7 {offsets = [2, 1, 0], sizes = [16, 16, 4], strides = [1, 1, 1]} : vector<18x18x4xbf16> to vector<16x16x4xbf16>
    %23 = vector.shape_cast %22 : vector<16x16x4xbf16> to vector<256x4xbf16>
    %24 = vector.extract_strided_slice %7 {offsets = [2, 2, 0], sizes = [16, 16, 4], strides = [1, 1, 1]} : vector<18x18x4xbf16> to vector<16x16x4xbf16>
    %25 = vector.shape_cast %24 : vector<16x16x4xbf16> to vector<256x4xbf16>
    %26 = tpu.concatenate %9, %11, %13, %15, %17, %19, %21, %23, %25 in 1 : vector<256x4xbf16>, vector<256x4xbf16>, vector<256x4xbf16>, vector<256x4xbf16>, vector<256x4xbf16>, vector<256x4xbf16>, vector<256x4xbf16>, vector<256x4xbf16>, vector<256x4xbf16> -> vector<256x36xbf16>
    %c0_9 = arith.constant 0 : index
    %c0_10 = arith.constant 0 : index
    %27 = vector.load %arg2[%c0_9, %c0_10] : memref<36x32xbf16, #tpu.memory_space<vmem>>, vector<36x32xbf16>
    %cst = arith.constant dense<0.000000e+00> : vector<256x32xf32>
    %28 = tpu.matmul %26, %27, %cst {dimension_numbers = #tpu.dot_dimension_numbers<[1], [0], [0], [1], [0, 0, 1, 1], [], []>} : vector<256x36xbf16>, vector<36x32xbf16>, vector<256x32xf32> -> vector<256x32xf32>
    %c0_11 = arith.constant 0 : index
    %c0_12 = arith.constant 0 : index
    %29 = vector.load %arg4[%c0_11, %c0_12] : memref<1x32xf32, #tpu.memory_space<vmem>>, vector<1x32xf32>
    %30 = vector.shape_cast %29 : vector<1x32xf32> to vector<32xf32>
    %31 = vector.shape_cast %30 : vector<32xf32> to vector<1x32xf32>
    %32 = vector.broadcast %31 : vector<1x32xf32> to vector<256x32xf32>
    %33 = arith.mulf %28, %32 : vector<256x32xf32>
    %c0_13 = arith.constant 0 : index
    %c0_14 = arith.constant 0 : index
    %34 = vector.load %arg5[%c0_13, %c0_14] : memref<1x32xf32, #tpu.memory_space<vmem>>, vector<1x32xf32>
    %35 = vector.shape_cast %34 : vector<1x32xf32> to vector<32xf32>
    %36 = vector.shape_cast %35 : vector<32xf32> to vector<1x32xf32>
    %37 = vector.broadcast %36 : vector<1x32xf32> to vector<256x32xf32>
    %38 = arith.addf %33, %37 : vector<256x32xf32>
    %cst_15 = arith.constant 0.000000e+00 : f32
    %39 = vector.broadcast %cst_15 : f32 to vector<256x32xf32>
    %40 = arith.maximumf %38, %39 : vector<256x32xf32>
    %41 = vector.shape_cast %40 : vector<256x32xf32> to vector<16x16x32xf32>
    %42 = arith.truncf %41 : vector<16x16x32xf32> to vector<16x16x32xbf16>
    %c1_16 = arith.constant 1 : index
    %c1_17 = arith.constant 1 : index
    %c0_18 = arith.constant 0 : index
    %43 = vector.load %arg10[%c1_16, %c1_17, %c0_18] : memref<18x18x32xbf16, #tpu.memory_space<vmem>>, vector<16x16x32xbf16>
    tpu.vector_store %arg10[%c1_16, %c1_17, %c0_18], %42 {strides = array<i32>} : memref<18x18x32xbf16, #tpu.memory_space<vmem>>, vector<16x16x32xbf16>,
    %c0_19 = arith.constant 0 : index
    %c0_20 = arith.constant 0 : index
    %c0_21 = arith.constant 0 : index
    %44 = vector.load %arg10[%c0_19, %c0_20, %c0_21] : memref<18x18x32xbf16, #tpu.memory_space<vmem>>, vector<18x18x32xbf16>
    %45 = vector.extract_strided_slice %44 {offsets = [0, 0, 0], sizes = [16, 16, 32], strides = [1, 1, 1]} : vector<18x18x32xbf16> to vector<16x16x32xbf16>
    %46 = vector.shape_cast %45 : vector<16x16x32xbf16> to vector<256x32xbf16>
    %47 = vector.extract_strided_slice %44 {offsets = [0, 1, 0], sizes = [16, 16, 32], strides = [1, 1, 1]} : vector<18x18x32xbf16> to vector<16x16x32xbf16>
    %48 = vector.shape_cast %47 : vector<16x16x32xbf16> to vector<256x32xbf16>
    %49 = vector.extract_strided_slice %44 {offsets = [0, 2, 0], sizes = [16, 16, 32], strides = [1, 1, 1]} : vector<18x18x32xbf16> to vector<16x16x32xbf16>
    %50 = vector.shape_cast %49 : vector<16x16x32xbf16> to vector<256x32xbf16>
    %51 = vector.extract_strided_slice %44 {offsets = [1, 0, 0], sizes = [16, 16, 32], strides = [1, 1, 1]} : vector<18x18x32xbf16> to vector<16x16x32xbf16>
    %52 = vector.shape_cast %51 : vector<16x16x32xbf16> to vector<256x32xbf16>
    %53 = vector.extract_strided_slice %44 {offsets = [1, 1, 0], sizes = [16, 16, 32], strides = [1, 1, 1]} : vector<18x18x32xbf16> to vector<16x16x32xbf16>
    %54 = vector.shape_cast %53 : vector<16x16x32xbf16> to vector<256x32xbf16>
    %55 = vector.extract_strided_slice %44 {offsets = [1, 2, 0], sizes = [16, 16, 32], strides = [1, 1, 1]} : vector<18x18x32xbf16> to vector<16x16x32xbf16>
    %56 = vector.shape_cast %55 : vector<16x16x32xbf16> to vector<256x32xbf16>
    %57 = vector.extract_strided_slice %44 {offsets = [2, 0, 0], sizes = [16, 16, 32], strides = [1, 1, 1]} : vector<18x18x32xbf16> to vector<16x16x32xbf16>
    %58 = vector.shape_cast %57 : vector<16x16x32xbf16> to vector<256x32xbf16>
    %59 = vector.extract_strided_slice %44 {offsets = [2, 1, 0], sizes = [16, 16, 32], strides = [1, 1, 1]} : vector<18x18x32xbf16> to vector<16x16x32xbf16>
    %60 = vector.shape_cast %59 : vector<16x16x32xbf16> to vector<256x32xbf16>
    %61 = vector.extract_strided_slice %44 {offsets = [2, 2, 0], sizes = [16, 16, 32], strides = [1, 1, 1]} : vector<18x18x32xbf16> to vector<16x16x32xbf16>
    %62 = vector.shape_cast %61 : vector<16x16x32xbf16> to vector<256x32xbf16>
    %63 = tpu.concatenate %46, %48, %50, %52, %54, %56, %58, %60, %62 in 1 : vector<256x32xbf16>, vector<256x32xbf16>, vector<256x32xbf16>, vector<256x32xbf16>, vector<256x32xbf16>, vector<256x32xbf16>, vector<256x32xbf16>, vector<256x32xbf16>, vector<256x32xbf16> -> vector<256x288xbf16>
    %c0_22 = arith.constant 0 : index
    %c0_23 = arith.constant 0 : index
    %64 = vector.load %arg3[%c0_22, %c0_23] : memref<288x32xbf16, #tpu.memory_space<vmem>>, vector<288x32xbf16>
    %cst_24 = arith.constant dense<0.000000e+00> : vector<256x32xf32>
    %65 = tpu.matmul %63, %64, %cst_24 {dimension_numbers = #tpu.dot_dimension_numbers<[1], [0], [0], [1], [0, 0, 1, 1], [], []>} : vector<256x288xbf16>, vector<288x32xbf16>, vector<256x32xf32> -> vector<256x32xf32>
    %c0_25 = arith.constant 0 : index
    %c0_26 = arith.constant 0 : index
    %66 = vector.load %arg6[%c0_25, %c0_26] : memref<1x32xf32, #tpu.memory_space<vmem>>, vector<1x32xf32>
    %67 = vector.shape_cast %66 : vector<1x32xf32> to vector<32xf32>
    %68 = vector.shape_cast %67 : vector<32xf32> to vector<1x32xf32>
    %69 = vector.broadcast %68 : vector<1x32xf32> to vector<256x32xf32>
    %70 = arith.mulf %65, %69 : vector<256x32xf32>
    %c0_27 = arith.constant 0 : index
    %c0_28 = arith.constant 0 : index
    %71 = vector.load %arg7[%c0_27, %c0_28] : memref<1x32xf32, #tpu.memory_space<vmem>>, vector<1x32xf32>
    %72 = vector.shape_cast %71 : vector<1x32xf32> to vector<32xf32>
    %73 = vector.shape_cast %72 : vector<32xf32> to vector<1x32xf32>
    %74 = vector.broadcast %73 : vector<1x32xf32> to vector<256x32xf32>
    %75 = arith.addf %70, %74 : vector<256x32xf32>
    %cst_29 = arith.constant 0.000000e+00 : f32
    %76 = vector.broadcast %cst_29 : f32 to vector<256x32xf32>
    %77 = arith.maximumf %75, %76 : vector<256x32xf32>
    %78 = vector.shape_cast %77 : vector<256x32xf32> to vector<16x16x32xf32>
    %c0_30 = arith.constant 0 : index
    %c0_31 = arith.constant 0 : index
    %c0_32 = arith.constant 0 : index
    %c0_33 = arith.constant 0 : index
    %79 = vector.load %arg8[%c0_30, %c0_31, %c0_32, %c0_33] : memref<1x16x16x32xf32, #tpu.memory_space<vmem>>, vector<1x16x16x32xf32>
    %80 = vector.shape_cast %79 : vector<1x16x16x32xf32> to vector<16x16x32xf32>
    %81 = vector.shape_cast %78 : vector<16x16x32xf32> to vector<1x16x16x32xf32>
    tpu.vector_store %arg8[%c0_30, %c0_31, %c0_32, %c0_33], %81 {strides = array<i32>} : memref<1x16x16x32xf32, #tpu.memory_space<vmem>>, vector<1x16x16x32xf32>,
    return
  }
  func.func @transform_0(%arg0: i32) -> (i32, i32, i32, i32) {
    %c0_i32 = arith.constant 0 : i32
    %c0_i32_0 = arith.constant 0 : i32
    %c0_i32_1 = arith.constant 0 : i32
    %c0_i32_2 = arith.constant 0 : i32
    return %arg0, %c0_i32, %c0_i32_0, %c0_i32_1 : i32, i32, i32, i32
  }
  func.func @transform_1(%arg0: i32) -> (i32, i32) {
    %c0_i32 = arith.constant 0 : i32
    %c0_i32_0 = arith.constant 0 : i32
    %c0_i32_1 = arith.constant 0 : i32
    return %c0_i32, %c0_i32_0 : i32, i32
  }
  func.func @transform_2(%arg0: i32) -> (i32, i32) {
    %c0_i32 = arith.constant 0 : i32
    %c0_i32_0 = arith.constant 0 : i32
    %c0_i32_1 = arith.constant 0 : i32
    return %c0_i32, %c0_i32_0 : i32, i32
  }
  func.func @transform_3(%arg0: i32) -> (i32, i32) {
    %c0_i32 = arith.constant 0 : i32
    %c0_i32_0 = arith.constant 0 : i32
    %c0_i32_1 = arith.constant 0 : i32
    return %c0_i32, %c0_i32_0 : i32, i32
  }
  func.func @transform_4(%arg0: i32) -> (i32, i32) {
    %c0_i32 = arith.constant 0 : i32
    %c0_i32_0 = arith.constant 0 : i32
    %c0_i32_1 = arith.constant 0 : i32
    return %c0_i32, %c0_i32_0 : i32, i32
  }
  func.func @transform_5(%arg0: i32) -> (i32, i32) {
    %c0_i32 = arith.constant 0 : i32
    %c0_i32_0 = arith.constant 0 : i32
    %c0_i32_1 = arith.constant 0 : i32
    return %c0_i32, %c0_i32_0 : i32, i32
  }
  func.func @transform_6(%arg0: i32) -> (i32, i32) {
    %c0_i32 = arith.constant 0 : i32
    %c0_i32_0 = arith.constant 0 : i32
    %c0_i32_1 = arith.constant 0 : i32
    return %c0_i32, %c0_i32_0 : i32, i32
  }
  func.func @transform_7(%arg0: i32) -> (i32, i32, i32, i32) {
    %c0_i32 = arith.constant 0 : i32
    %c0_i32_0 = arith.constant 0 : i32
    %c0_i32_1 = arith.constant 0 : i32
    %c0_i32_2 = arith.constant 0 : i32
    return %arg0, %c0_i32, %c0_i32_0, %c0_i32_1 : i32, i32, i32, i32
  }
}

</mosaic_0001>

<llo_original>
// kernel: tpu_custom_call.1
$region0: #{tpu_custom_call.1}
  #allocation0 [shape = 'u32[]', space=smem, size = 0x4, offset = 0x4, fixed_abs, tag = 'smem constant byte address 0x4 - core index']
  #allocation1 [shape = 'u32[144,128]{1,0:T(1,128)}', space=vmem, size = 0x12000, scoped, tag = 'internal scratch']
  #allocation2 [shape = 'bf16[18,18,4]{2,1,0:T(8,128)(2,1)}', space=vmem, size = 0x1b000, scoped, tag = 'scratch operand']
  #allocation3 [shape = 'bf16[18,18,32]{2,1,0:T(8,128)(2,1)}', space=vmem, size = 0x1b000, scoped, tag = 'scratch operand']
  %s0 = inlined_call_operand.vmem [shape: f32[2,16,16,4], index: 0, kind: input, shape index: {}]
  %s1 = inlined_call_operand.vmem [shape: bf16[36,32], index: 1, kind: input, shape index: {}]
  %s2 = inlined_call_operand.vmem [shape: bf16[288,32], index: 2, kind: input, shape index: {}]
  %s3 = inlined_call_operand.vmem [shape: f32[1,32], index: 3, kind: input, shape index: {}]
  %s4 = inlined_call_operand.vmem [shape: f32[1,32], index: 4, kind: input, shape index: {}]
  %s5 = inlined_call_operand.vmem [shape: f32[1,32], index: 5, kind: input, shape index: {}]
  %s6 = inlined_call_operand.vmem [shape: f32[1,32], index: 6, kind: input, shape index: {}]
  %s7 = inlined_call_operand.hbm [shape: f32[2,16,16,32], index: 7, kind: output, shape index: {}]
  %s8 = sld [smem:[#allocation0]]
  $region65: #{tpu_custom_call.1} parent=0
    _
  %s10 = ssub.s32 1, %s8
  %s11 = scalar_select 0, %s10, %s8
  $region1: #{tpu_custom_call.1} parent=0
    #allocation4 [shape = 'u8[262144]{0}', space=vmem, size = 0x40000, scoped, tag = 'output window, operand 0']
    #allocation5 [shape = 's32[2]{0}', space=sflag, size = 0x8, scoped, tag = 'scoped memory for tpu_custom_call.1']
    %12 = vsyncpa [#allocation5], 0
    %s13 = scalar_lea.sflag [#allocation5], 1
    %14 = vsyncpa %s13, 0
    loop: start=0, step=1, limit=4
    $region2: #{tpu_custom_call.1} parent=1 // loop_pre_header
      _
    $region3: #{tpu_custom_call.1} parent=1 // loop_header
      %s16 = sphi 0, %s20
      %p17 = scmp.ge.s32.totalorder %s16, 4
      %s26 = sphi 0, %s28
      %s29 = sphi 0, %s26
      %s30 = sphi 0, %s29
      %s46 = sphi 0, %s30
      %s50 = sphi 0, %s50
      %s52 = sphi 0, %s50
      %s53 = sphi 0, %s52
      %s67 = sphi 0, %s53
      %s71 = sphi 0, %s71
      %s73 = sphi 0, %s71
      %s74 = sphi 0, %s73
      %s88 = sphi 0, %s74
      %s92 = sphi 0, %s92
      %s94 = sphi 0, %s92
      %s95 = sphi 0, %s94
      %s109 = sphi 0, %s95
      %s113 = sphi 0, %s113
      %s115 = sphi 0, %s113
      %s116 = sphi 0, %s115
      %s130 = sphi 0, %s116
      %s134 = sphi 0, %s134
      %s136 = sphi 0, %s134
      %s137 = sphi 0, %s136
      %s151 = sphi 0, %s137
      %s155 = sphi 0, %s155
      %s157 = sphi 0, %s155
      %s158 = sphi 0, %s157
      %s172 = sphi 0, %s158
      %s178 = sphi 0, %s180
      %s181 = sphi 0, %s178
      %s182 = sphi 0, %s181
      %s198 = sphi 0, %s182
    $region4: #{tpu_custom_call.1} parent=1 // loop_header_branch
      %19 = sbr.rel (%p17) target = $region8
    $region5: #{tpu_custom_call.1} parent=1 // loop_body
      %s21 = ssub.s32 %s16, 1
      %s22 = ssub.s32 %s16, 2
      %s23 = sadd.s32 %s16, 1
      %s24 = ssub.s32 %s16, %s23
      %p25 = scmp.eq.s32.totalorder %s24, 0
      %s27 = sadd.s32 %s26, 1
      %s28 = scalar_select %p25, %s26, %s27
      %p31 = pneg %p25
      %p32 = scmp.eq.s32.totalorder %s16, 1
      %p33 = por %p31, %p32
      %p34 = scmp.ne.s32.totalorder %s26, %s29
      %p35 = scmp.eq.s32.totalorder %s16, 0
      %p36 = por %p34, %p35
      %p37 = scmp.ne.s32.totalorder %s26, %s29
      %p38 = scmp.eq.s32.totalorder %s21, 1
      %p39 = por %p37, %p38
      %p40 = scmp.ne.s32.totalorder %s29, %s30
      %p41 = scmp.eq.s32.totalorder %s21, 0
      %p42 = por %p40, %p41
      %p43 = scmp.ne.s32.totalorder %s29, %s30
      %p44 = scmp.eq.s32.totalorder %s22, 1
      %p45 = por %p43, %p44
      %p47 = scmp.ne.s32.totalorder %s30, %s46
      %p48 = scmp.eq.s32.totalorder %s22, 0
      %p49 = por %p47, %p48
      %s51 = sadd.s32 %s50, 1
      %p54 = scmp.eq.s32.totalorder %s16, 1
      %p55 = scmp.ne.s32.totalorder %s50, %s52
      %p56 = scmp.eq.s32.totalorder %s16, 0
      %p57 = por %p55, %p56
      %p58 = scmp.ne.s32.totalorder %s50, %s52
      %p59 = scmp.eq.s32.totalorder %s21, 1
      %p60 = por %p58, %p59
      %p61 = scmp.ne.s32.totalorder %s52, %s53
      %p62 = scmp.eq.s32.totalorder %s21, 0
      %p63 = por %p61, %p62
      %p64 = scmp.ne.s32.totalorder %s52, %s53
      %p65 = scmp.eq.s32.totalorder %s22, 1
      %p66 = por %p64, %p65
      %p68 = scmp.ne.s32.totalorder %s53, %s67
      %p69 = scmp.eq.s32.totalorder %s22, 0
      %p70 = por %p68, %p69
      %s72 = sadd.s32 %s71, 1
      %p75 = scmp.eq.s32.totalorder %s16, 1
      %p76 = scmp.ne.s32.totalorder %s71, %s73
      %p77 = scmp.eq.s32.totalorder %s16, 0
      %p78 = por %p76, %p77
      %p79 = scmp.ne.s32.totalorder %s71, %s73
      %p80 = scmp.eq.s32.totalorder %s21, 1
      %p81 = por %p79, %p80
      %p82 = scmp.ne.s32.totalorder %s73, %s74
      %p83 = scmp.eq.s32.totalorder %s21, 0
      %p84 = por %p82, %p83
      %p85 = scmp.ne.s32.totalorder %s73, %s74
      %p86 = scmp.eq.s32.totalorder %s22, 1
      %p87 = por %p85, %p86
      %p89 = scmp.ne.s32.totalorder %s74, %s88
      %p90 = scmp.eq.s32.totalorder %s22, 0
      %p91 = por %p89, %p90
      %s93 = sadd.s32 %s92, 1
      %p96 = scmp.eq.s32.totalorder %s16, 1
      %p97 = scmp.ne.s32.totalorder %s92, %s94
      %p98 = scmp.eq.s32.totalorder %s16, 0
      %p99 = por %p97, %p98
      %p100 = scmp.ne.s32.totalorder %s92, %s94
      %p101 = scmp.eq.s32.totalorder %s21, 1
      %p102 = por %p100, %p101
      %p103 = scmp.ne.s32.totalorder %s94, %s95
      %p104 = scmp.eq.s32.totalorder %s21, 0
      %p105 = por %p103, %p104
      %p106 = scmp.ne.s32.totalorder %s94, %s95
      %p107 = scmp.eq.s32.totalorder %s22, 1
      %p108 = por %p106, %p107
      %p110 = scmp.ne.s32.totalorder %s95, %s109
      %p111 = scmp.eq.s32.totalorder %s22, 0
      %p112 = por %p110, %p111
      %s114 = sadd.s32 %s113, 1
      %p117 = scmp.eq.s32.totalorder %s16, 1
      %p118 = scmp.ne.s32.totalorder %s113, %s115
      %p119 = scmp.eq.s32.totalorder %s16, 0
      %p120 = por %p118, %p119
      %p121 = scmp.ne.s32.totalorder %s113, %s115
      %p122 = scmp.eq.s32.totalorder %s21, 1
      %p123 = por %p121, %p122
      %p124 = scmp.ne.s32.totalorder %s115, %s116
      %p125 = scmp.eq.s32.totalorder %s21, 0
      %p126 = por %p124, %p125
      %p127 = scmp.ne.s32.totalorder %s115, %s116
      %p128 = scmp.eq.s32.totalorder %s22, 1
      %p129 = por %p127, %p128
      %p131 = scmp.ne.s32.totalorder %s116, %s130
      %p132 = scmp.eq.s32.totalorder %s22, 0
      %p133 = por %p131, %p132
      %s135 = sadd.s32 %s134, 1
      %p138 = scmp.eq.s32.totalorder %s16, 1
      %p139 = scmp.ne.s32.totalorder %s134, %s136
      %p140 = scmp.eq.s32.totalorder %s16, 0
      %p141 = por %p139, %p140
      %p142 = scmp.ne.s32.totalorder %s134, %s136
      %p143 = scmp.eq.s32.totalorder %s21, 1
      %p144 = por %p142, %p143
      %p145 = scmp.ne.s32.totalorder %s136, %s137
      %p146 = scmp.eq.s32.totalorder %s21, 0
      %p147 = por %p145, %p146
      %p148 = scmp.ne.s32.totalorder %s136, %s137
      %p149 = scmp.eq.s32.totalorder %s22, 1
      %p150 = por %p148, %p149
      %p152 = scmp.ne.s32.totalorder %s137, %s151
      %p153 = scmp.eq.s32.totalorder %s22, 0
      %p154 = por %p152, %p153
      %s156 = sadd.s32 %s155, 1
      %p159 = scmp.eq.s32.totalorder %s16, 1
      %p160 = scmp.ne.s32.totalorder %s155, %s157
      %p161 = scmp.eq.s32.totalorder %s16, 0
      %p162 = por %p160, %p161
      %p163 = scmp.ne.s32.totalorder %s155, %s157
      %p164 = scmp.eq.s32.totalorder %s21, 1
      %p165 = por %p163, %p164
      %p166 = scmp.ne.s32.totalorder %s157, %s158
      %p167 = scmp.eq.s32.totalorder %s21, 0
      %p168 = por %p166, %p167
      %p169 = scmp.ne.s32.totalorder %s157, %s158
      %p170 = scmp.eq.s32.totalorder %s22, 1
      %p171 = por %p169, %p170
      %p173 = scmp.ne.s32.totalorder %s158, %s172
      %p174 = scmp.eq.s32.totalorder %s22, 0
      %p175 = por %p173, %p174
      %s176 = ssub.s32 %s16, %s23
      %p177 = scmp.eq.s32.totalorder %s176, 0
      %s179 = sadd.s32 %s178, 1
      %s180 = scalar_select %p177, %s178, %s179
      %p183 = pneg %p177
      %p184 = scmp.eq.s32.totalorder %s16, 1
      %p185 = por %p183, %p184
      %p186 = scmp.ne.s32.totalorder %s178, %s181
      %p187 = scmp.eq.s32.totalorder %s16, 0
      %p188 = por %p186, %p187
      %p189 = scmp.ne.s32.totalorder %s178, %s181
      %p190 = scmp.eq.s32.totalorder %s21, 1
      %p191 = por %p189, %p190
      %p192 = scmp.ne.s32.totalorder %s181, %s182
      %p193 = scmp.eq.s32.totalorder %s21, 0
      %p194 = por %p192, %p193
      %p195 = scmp.ne.s32.totalorder %s181, %s182
      %p196 = scmp.eq.s32.totalorder %s22, 1
      %p197 = por %p195, %p196
      %p199 = scmp.ne.s32.totalorder %s182, %s198
      %p200 = scmp.eq.s32.totalorder %s22, 0
      %p201 = por %p199, %p200
      %p202 = scmp.le.s32.totalorder 1, %s16
      %p203 = scmp.lt.s32.totalorder %s16, 3
      %p204 = pnand %p202, %p203
      %p205 = pneg %p204
      // Predicated region
      $region9: #{tpu_custom_call.1} parent=5 // pred_check
        _
      $region10: #{tpu_custom_call.1} parent=5 // pred_check_branch
        %207 = sbr.rel (%p204) target = $region12
      $region11: #{tpu_custom_call.1} parent=5 // pred_region
        %s208 = ssub.s32 %s16, 1
        // Predicated region
        $region13: #{tpu_custom_call.1} parent=11 // pred_check
          %p209 = pneg %p63
        $region14: #{tpu_custom_call.1} parent=11 // pred_check_branch
          %211 = sbr.rel (%p209) target = $region16
        $region15: #{tpu_custom_call.1} parent=11 // pred_region
          _
        $region16: #{tpu_custom_call.1} parent=11 // pred_fallthru
          _
        // Predicated region
        $region17: #{tpu_custom_call.1} parent=11 // pred_check
          %p212 = pneg %p84
        $region18: #{tpu_custom_call.1} parent=11 // pred_check_branch
          %214 = sbr.rel (%p212) target = $region20
        $region19: #{tpu_custom_call.1} parent=11 // pred_region
          _
        $region20: #{tpu_custom_call.1} parent=11 // pred_fallthru
          _
        // Predicated region
        $region21: #{tpu_custom_call.1} parent=11 // pred_check
          %p215 = pneg %p105
        $region22: #{tpu_custom_call.1} parent=11 // pred_check_branch
          %217 = sbr.rel (%p215) target = $region24
        $region23: #{tpu_custom_call.1} parent=11 // pred_region
          _
        $region24: #{tpu_custom_call.1} parent=11 // pred_fallthru
          _
        // Predicated region
        $region25: #{tpu_custom_call.1} parent=11 // pred_check
          %p218 = pneg %p126
        $region26: #{tpu_custom_call.1} parent=11 // pred_check_branch
          %220 = sbr.rel (%p218) target = $region28
        $region27: #{tpu_custom_call.1} parent=11 // pred_region
          _
        $region28: #{tpu_custom_call.1} parent=11 // pred_fallthru
          _
        // Predicated region
        $region29: #{tpu_custom_call.1} parent=11 // pred_check
          %p221 = pneg %p147
        $region30: #{tpu_custom_call.1} parent=11 // pred_check_branch
          %223 = sbr.rel (%p221) target = $region32
        $region31: #{tpu_custom_call.1} parent=11 // pred_region
          _
        $region32: #{tpu_custom_call.1} parent=11 // pred_fallthru
          _
        // Predicated region
        $region33: #{tpu_custom_call.1} parent=11 // pred_check
          %p224 = pneg %p168
        $region34: #{tpu_custom_call.1} parent=11 // pred_check_branch
          %226 = sbr.rel (%p224) target = $region36
        $region35: #{tpu_custom_call.1} parent=11 // pred_region
          _
        $region36: #{tpu_custom_call.1} parent=11 // pred_fallthru
          _
      $region12: #{tpu_custom_call.1} parent=5 // pred_fallthru
        _
      %p227 = scmp.lt.s32.totalorder %s16, 2
      // Predicated region
      $region37: #{tpu_custom_call.1} parent=5 // pred_check
        %p228 = pneg %p227
      $region38: #{tpu_custom_call.1} parent=5 // pred_check_branch
        %230 = sbr.rel (%p228) target = $region40
      $region39: #{tpu_custom_call.1} parent=5 // pred_region
        // Predicated region
        $region41: #{tpu_custom_call.1} parent=39 // pred_check
          %p231 = pneg %p36
        $region42: #{tpu_custom_call.1} parent=39 // pred_check_branch
          %233 = sbr.rel (%p231) target = $region44
        $region43: #{tpu_custom_call.1} parent=39 // pred_region
          %p234 = scmp.lt.s32.totalorder %s16, 1
          %s235 = scalar_select %p234, %s16, 1
          %s236 = smul.addr %s235, 32
          %s237 = smul.addr %s236, 8
          %s238 = scalar_lea.vmem %s0, %s237
        $region44: #{tpu_custom_call.1} parent=39 // pred_fallthru
          _
      $region40: #{tpu_custom_call.1} parent=5 // pred_fallthru
        _
      %p239 = scmp.le.s32.totalorder 1, %s16
      %p240 = scmp.lt.s32.totalorder %s16, 3
      %p241 = pnand %p239, %p240
      %p242 = pneg %p241
      // Predicated region
      $region45: #{tpu_custom_call.1} parent=5 // pred_check
        _
      $region46: #{tpu_custom_call.1} parent=5 // pred_check_branch
        %244 = sbr.rel (%p241) target = $region48
      $region47: #{tpu_custom_call.1} parent=5 // pred_region
        %s245 = ssub.s32 %s16, 1
        %p246 = scmp.lt.s32.totalorder %s21, 1
        %s247 = scalar_select %p246, %s21, 1
        %s248 = smul.addr %s247, 32
        %s249 = smul.addr %s248, 8
        %s250 = scalar_lea.vmem %s0, %s249
        %p251 = pneg %p42
        %p252 = pneg %p39
        %p253 = pneg %p63
        %p254 = pneg %p60
        %p255 = pneg %p84
        %p256 = pneg %p81
        %p257 = pneg %p105
        %p258 = pneg %p102
        %p259 = pneg %p126
        %p260 = pneg %p123
        %p261 = pneg %p147
        %p262 = pneg %p144
        %p263 = pneg %p168
        %p264 = pneg %p165
        %p265 = pneg %p194
        %p266 = pneg %p191
        %s267 = sand.u32 %s181, 1
        %s268 = scalar_lea.sflag [#allocation5], %s267
        %s269 = sand.u32 %s181, 1
        %s270 = smul.addr %s269, 256
        %s271 = scalar_lea.vmem [#allocation4], %s270
        %p272 = scmp.lt.s32.totalorder %s21, 1
        %s273 = scalar_select %p272, %s21, 1
        %s274 = smul.addr %s273, 32
        %s275 = smul.addr %s274, 8
        %s276 = scalar_lea.vmem %s0, %s275
        %p278 = scmp.eq.s32.totalorder %s21, 0
        // Predicated region
        $region49: #{tpu_custom_call.1} parent=47 // pred_check
          %p279 = pneg %p278
        $region50: #{tpu_custom_call.1} parent=47 // pred_check_branch
          %281 = sbr.rel (%p279) target = $region52
        $region51: #{tpu_custom_call.1} parent=47 // pred_region
          %vm282 = vcmask 27648
          %283 = vst.msk [vmem:[#allocation2] sm:$0xf] %vm282, 0
          %284 = vst.msk [vmem:[#allocation2 + $0x4] sm:$0xf] %vm282, 0
          %vm285 = vcmask 24576
          %286 = vst.msk [vmem:[#allocation2 + $0x8] sm:$0x1] %vm285, 0
          %287 = vst.msk [vmem:[#allocation2 + $0xc] sm:$0xf] %vm282, 0
          %288 = vst.msk [vmem:[#allocation2 + $0x10] sm:$0xf] %vm282, 0
          %289 = vst.msk [vmem:[#allocation2 + $0x14] sm:$0x1] %vm285, 0
          %290 = vst.msk [vmem:[#allocation2 + $0x18] sm:$0xf] %vm282, 0
          %291 = vst.msk [vmem:[#allocation2 + $0x1c] sm:$0xf] %vm282, 0
          %292 = vst.msk [vmem:[#allocation2 + $0x20] sm:$0x1] %vm285, 0
          %293 = vst.msk [vmem:[#allocation2 + $0x24] sm:$0xf] %vm282, 0
          %294 = vst.msk [vmem:[#allocation2 + $0x28] sm:$0xf] %vm282, 0
          %295 = vst.msk [vmem:[#allocation2 + $0x2c] sm:$0x1] %vm285, 0
          %296 = vst.msk [vmem:[#allocation2 + $0x30] sm:$0xf] %vm282, 0
          %297 = vst.msk [vmem:[#allocation2 + $0x34] sm:$0xf] %vm282, 0
          %298 = vst.msk [vmem:[#allocation2 + $0x38] sm:$0x1] %vm285, 0
          %299 = vst.msk [vmem:[#allocation2 + $0x3c] sm:$0xf] %vm282, 0
          %300 = vst.msk [vmem:[#allocation2 + $0x40] sm:$0xf] %vm282, 0
          %301 = vst.msk [vmem:[#allocation2 + $0x44] sm:$0x1] %vm285, 0
          %302 = vst.msk [vmem:[#allocation2 + $0x48] sm:$0xf] %vm282, 0
          %303 = vst.msk [vmem:[#allocation2 + $0x4c] sm:$0xf] %vm282, 0
          %304 = vst.msk [vmem:[#allocation2 + $0x50] sm:$0x1] %vm285, 0
          %305 = vst.msk [vmem:[#allocation2 + $0x54] sm:$0xf] %vm282, 0
          %306 = vst.msk [vmem:[#allocation2 + $0x58] sm:$0xf] %vm282, 0
          %307 = vst.msk [vmem:[#allocation2 + $0x5c] sm:$0x1] %vm285, 0
          %308 = vst.msk [vmem:[#allocation2 + $0x60] sm:$0xf] %vm282, 0
          %309 = vst.msk [vmem:[#allocation2 + $0x64] sm:$0xf] %vm282, 0
          %310 = vst.msk [vmem:[#allocation2 + $0x68] sm:$0x1] %vm285, 0
          %311 = vst.msk [vmem:[#allocation2 + $0x6c] sm:$0xf] %vm282, 0
          %312 = vst.msk [vmem:[#allocation2 + $0x70] sm:$0xf] %vm282, 0
          %313 = vst.msk [vmem:[#allocation2 + $0x74] sm:$0x1] %vm285, 0
          %314 = vst.msk [vmem:[#allocation2 + $0x78] sm:$0xf] %vm282, 0
          %315 = vst.msk [vmem:[#allocation2 + $0x7c] sm:$0xf] %vm282, 0
          %316 = vst.msk [vmem:[#allocation2 + $0x80] sm:$0x1] %vm285, 0
          %317 = vst.msk [vmem:[#allocation2 + $0x84] sm:$0xf] %vm282, 0
          %318 = vst.msk [vmem:[#allocation2 + $0x88] sm:$0xf] %vm282, 0
          %319 = vst.msk [vmem:[#allocation2 + $0x8c] sm:$0x1] %vm285, 0
          %320 = vst.msk [vmem:[#allocation2 + $0x90] sm:$0xf] %vm282, 0
          %321 = vst.msk [vmem:[#allocation2 + $0x94] sm:$0xf] %vm282, 0
          %322 = vst.msk [vmem:[#allocation2 + $0x98] sm:$0x1] %vm285, 0
          %323 = vst.msk [vmem:[#allocation2 + $0x9c] sm:$0xf] %vm282, 0
          %324 = vst.msk [vmem:[#allocation2 + $0xa0] sm:$0xf] %vm282, 0
          %325 = vst.msk [vmem:[#allocation2 + $0xa4] sm:$0x1] %vm285, 0
          %326 = vst.msk [vmem:[#allocation2 + $0xa8] sm:$0xf] %vm282, 0
          %327 = vst.msk [vmem:[#allocation2 + $0xac] sm:$0xf] %vm282, 0
          %328 = vst.msk [vmem:[#allocation2 + $0xb0] sm:$0x1] %vm285, 0
          %329 = vst.msk [vmem:[#allocation2 + $0xb4] sm:$0xf] %vm282, 0
          %330 = vst.msk [vmem:[#allocation2 + $0xb8] sm:$0xf] %vm282, 0
          %331 = vst.msk [vmem:[#allocation2 + $0xbc] sm:$0x1] %vm285, 0
          %332 = vst.msk [vmem:[#allocation2 + $0xc0] sm:$0xf] %vm282, 0
          %333 = vst.msk [vmem:[#allocation2 + $0xc4] sm:$0xf] %vm282, 0
          %334 = vst.msk [vmem:[#allocation2 + $0xc8] sm:$0x1] %vm285, 0
          %335 = vst.msk [vmem:[#allocation2 + $0xcc] sm:$0xf] %vm282, 0
          %336 = vst.msk [vmem:[#allocation2 + $0xd0] sm:$0xf] %vm282, 0
          %337 = vst.msk [vmem:[#allocation2 + $0xd4] sm:$0x1] %vm285, 0
          %vm338 = vcmask 257024
          %339 = vst.msk [vmem:[#allocation3] sm:$0xf] %vm338, 0
          %340 = vst.msk [vmem:[#allocation3 + $0x4] sm:$0xf] %vm338, 0
          %vm341 = vcmask 253952
          %342 = vst.msk [vmem:[#allocation3 + $0x8] sm:$0x1] %vm341, 0
          %343 = vst.msk [vmem:[#allocation3 + $0xc] sm:$0xf] %vm338, 0
          %344 = vst.msk [vmem:[#allocation3 + $0x10] sm:$0xf] %vm338, 0
          %345 = vst.msk [vmem:[#allocation3 + $0x14] sm:$0x1] %vm341, 0
          %346 = vst.msk [vmem:[#allocation3 + $0x18] sm:$0xf] %vm338, 0
          %347 = vst.msk [vmem:[#allocation3 + $0x1c] sm:$0xf] %vm338, 0
          %348 = vst.msk [vmem:[#allocation3 + $0x20] sm:$0x1] %vm341, 0
          %349 = vst.msk [vmem:[#allocation3 + $0x24] sm:$0xf] %vm338, 0
          %350 = vst.msk [vmem:[#allocation3 + $0x28] sm:$0xf] %vm338, 0
          %351 = vst.msk [vmem:[#allocation3 + $0x2c] sm:$0x1] %vm341, 0
          %352 = vst.msk [vmem:[#allocation3 + $0x30] sm:$0xf] %vm338, 0
          %353 = vst.msk [vmem:[#allocation3 + $0x34] sm:$0xf] %vm338, 0
          %354 = vst.msk [vmem:[#allocation3 + $0x38] sm:$0x1] %vm341, 0
          %355 = vst.msk [vmem:[#allocation3 + $0x3c] sm:$0xf] %vm338, 0
          %356 = vst.msk [vmem:[#allocation3 + $0x40] sm:$0xf] %vm338, 0
          %357 = vst.msk [vmem:[#allocation3 + $0x44] sm:$0x1] %vm341, 0
          %358 = vst.msk [vmem:[#allocation3 + $0x48] sm:$0xf] %vm338, 0
          %359 = vst.msk [vmem:[#allocation3 + $0x4c] sm:$0xf] %vm338, 0
          %360 = vst.msk [vmem:[#allocation3 + $0x50] sm:$0x1] %vm341, 0
          %361 = vst.msk [vmem:[#allocation3 + $0x54] sm:$0xf] %vm338, 0
          %362 = vst.msk [vmem:[#allocation3 + $0x58] sm:$0xf] %vm338, 0
          %363 = vst.msk [vmem:[#allocation3 + $0x5c] sm:$0x1] %vm341, 0
          %364 = vst.msk [vmem:[#allocation3 + $0x60] sm:$0xf] %vm338, 0
          %365 = vst.msk [vmem:[#allocation3 + $0x64] sm:$0xf] %vm338, 0
          %366 = vst.msk [vmem:[#allocation3 + $0x68] sm:$0x1] %vm341, 0
          %367 = vst.msk [vmem:[#allocation3 + $0x6c] sm:$0xf] %vm338, 0
          %368 = vst.msk [vmem:[#allocation3 + $0x70] sm:$0xf] %vm338, 0
          %369 = vst.msk [vmem:[#allocation3 + $0x74] sm:$0x1] %vm341, 0
          %370 = vst.msk [vmem:[#allocation3 + $0x78] sm:$0xf] %vm338, 0
          %371 = vst.msk [vmem:[#allocation3 + $0x7c] sm:$0xf] %vm338, 0
          %372 = vst.msk [vmem:[#allocation3 + $0x80] sm:$0x1] %vm341, 0
          %373 = vst.msk [vmem:[#allocation3 + $0x84] sm:$0xf] %vm338, 0
          %374 = vst.msk [vmem:[#allocation3 + $0x88] sm:$0xf] %vm338, 0
          %375 = vst.msk [vmem:[#allocation3 + $0x8c] sm:$0x1] %vm341, 0
          %376 = vst.msk [vmem:[#allocation3 + $0x90] sm:$0xf] %vm338, 0
          %377 = vst.msk [vmem:[#allocation3 + $0x94] sm:$0xf] %vm338, 0
          %378 = vst.msk [vmem:[#allocation3 + $0x98] sm:$0x1] %vm341, 0
          %379 = vst.msk [vmem:[#allocation3 + $0x9c] sm:$0xf] %vm338, 0
          %380 = vst.msk [vmem:[#allocation3 + $0xa0] sm:$0xf] %vm338, 0
          %381 = vst.msk [vmem:[#allocation3 + $0xa4] sm:$0x1] %vm341, 0
          %382 = vst.msk [vmem:[#allocation3 + $0xa8] sm:$0xf] %vm338, 0
          %383 = vst.msk [vmem:[#allocation3 + $0xac] sm:$0xf] %vm338, 0
          %384 = vst.msk [vmem:[#allocation3 + $0xb0] sm:$0x1] %vm341, 0
          %385 = vst.msk [vmem:[#allocation3 + $0xb4] sm:$0xf] %vm338, 0
          %386 = vst.msk [vmem:[#allocation3 + $0xb8] sm:$0xf] %vm338, 0
          %387 = vst.msk [vmem:[#allocation3 + $0xbc] sm:$0x1] %vm341, 0
          %388 = vst.msk [vmem:[#allocation3 + $0xc0] sm:$0xf] %vm338, 0
          %389 = vst.msk [vmem:[#allocation3 + $0xc4] sm:$0xf] %vm338, 0
          %390 = vst.msk [vmem:[#allocation3 + $0xc8] sm:$0x1] %vm341, 0
          %391 = vst.msk [vmem:[#allocation3 + $0xcc] sm:$0xf] %vm338, 0
          %392 = vst.msk [vmem:[#allocation3 + $0xd0] sm:$0xf] %vm338, 0
          %393 = vst.msk [vmem:[#allocation3 + $0xd4] sm:$0x1] %vm341, 0
        $region52: #{tpu_custom_call.1} parent=47 // pred_fallthru
          _
        %v394 = vld [vmem:[%s276] sm:$0xff]
        %v395 = vld [vmem:[%s276 + $0x8] sm:$0xff]
        %v396 = vld [vmem:[%s276 + $0x10] sm:$0xff]
        %v397 = vld [vmem:[%s276 + $0x18] sm:$0xff]
        %v398 = vld [vmem:[%s276 + $0x20] sm:$0xff]
        %v399 = vld [vmem:[%s276 + $0x28] sm:$0xff]
        %v400 = vld [vmem:[%s276 + $0x30] sm:$0xff]
        %v401 = vld [vmem:[%s276 + $0x38] sm:$0xff]
        %v402 = vld [vmem:[%s276 + $0x40] sm:$0xff]
        %v403 = vld [vmem:[%s276 + $0x48] sm:$0xff]
        %v404 = vld [vmem:[%s276 + $0x50] sm:$0xff]
        %v405 = vld [vmem:[%s276 + $0x58] sm:$0xff]
        %v406 = vld [vmem:[%s276 + $0x60] sm:$0xff]
        %v407 = vld [vmem:[%s276 + $0x68] sm:$0xff]
        %v408 = vld [vmem:[%s276 + $0x70] sm:$0xff]
        %v409 = vld [vmem:[%s276 + $0x78] sm:$0xff]
        %v410 = vld [vmem:[%s276 + $0x80] sm:$0xff]
        %v411 = vld [vmem:[%s276 + $0x88] sm:$0xff]
        %v412 = vld [vmem:[%s276 + $0x90] sm:$0xff]
        %v413 = vld [vmem:[%s276 + $0x98] sm:$0xff]
        %v414 = vld [vmem:[%s276 + $0xa0] sm:$0xff]
        %v415 = vld [vmem:[%s276 + $0xa8] sm:$0xff]
        %v416 = vld [vmem:[%s276 + $0xb0] sm:$0xff]
        %v417 = vld [vmem:[%s276 + $0xb8] sm:$0xff]
        %v418 = vld [vmem:[%s276 + $0xc0] sm:$0xff]
        %v419 = vld [vmem:[%s276 + $0xc8] sm:$0xff]
        %v420 = vld [vmem:[%s276 + $0xd0] sm:$0xff]
        %v421 = vld [vmem:[%s276 + $0xd8] sm:$0xff]
        %v422 = vld [vmem:[%s276 + $0xe0] sm:$0xff]
        %v423 = vld [vmem:[%s276 + $0xe8] sm:$0xff]
        %v424 = vld [vmem:[%s276 + $0xf0] sm:$0xff]
        %v425 = vld [vmem:[%s276 + $0xf8] sm:$0xff]
        %v426 = vpack.c.bf16 %v395, %v394
        %v427 = vpack.c.bf16 %v397, %v396
        %v428 = vpack.c.bf16 %v399, %v398
        %v429 = vpack.c.bf16 %v401, %v400
        %v430 = vpack.c.bf16 %v403, %v402
        %v431 = vpack.c.bf16 %v405, %v404
        %v432 = vpack.c.bf16 %v407, %v406
        %v433 = vpack.c.bf16 %v409, %v408
        %v434 = vpack.c.bf16 %v411, %v410
        %v435 = vpack.c.bf16 %v413, %v412
        %v436 = vpack.c.bf16 %v415, %v414
        %v437 = vpack.c.bf16 %v417, %v416
        %v438 = vpack.c.bf16 %v419, %v418
        %v439 = vpack.c.bf16 %v421, %v420
        %v440 = vpack.c.bf16 %v423, %v422
        %v441 = vpack.c.bf16 %v425, %v424
        %v458 = vunpack.c.l.b16 %v426
        %v459 = vunpack.c.h.b16 %v426
        %v460 = vunpack.c.l.b16 %v427
        %v461 = vunpack.c.h.b16 %v427
        %v462 = vunpack.c.l.b16 %v428
        %v463 = vunpack.c.h.b16 %v428
        %v464 = vunpack.c.l.b16 %v429
        %v465 = vunpack.c.h.b16 %v429
        %v466 = vunpack.c.l.b16 %v430
        %v467 = vunpack.c.h.b16 %v430
        %v468 = vunpack.c.l.b16 %v431
        %v469 = vunpack.c.h.b16 %v431
        %v470 = vunpack.c.l.b16 %v432
        %v471 = vunpack.c.h.b16 %v432
        %v472 = vunpack.c.l.b16 %v433
        %v473 = vunpack.c.h.b16 %v433
        %v474 = vunpack.c.l.b16 %v434
        %v475 = vunpack.c.h.b16 %v434
        %v476 = vunpack.c.l.b16 %v435
        %v477 = vunpack.c.h.b16 %v435
        %v478 = vunpack.c.l.b16 %v436
        %v479 = vunpack.c.h.b16 %v436
        %v480 = vunpack.c.l.b16 %v437
        %v481 = vunpack.c.h.b16 %v437
        %v482 = vunpack.c.l.b16 %v438
        %v483 = vunpack.c.h.b16 %v438
        %v484 = vunpack.c.l.b16 %v439
        %v485 = vunpack.c.h.b16 %v439
        %v486 = vunpack.c.l.b16 %v440
        %v487 = vunpack.c.h.b16 %v440
        %v488 = vunpack.c.l.b16 %v441
        %v489 = vunpack.c.h.b16 %v441
        %v490 = vpack.c.b16 %v458, %v458
        %v491 = vpack.c.b16 %v459, %v459
        %v492 = vpack.c.b16 %v460, %v460
        %v493 = vpack.c.b16 %v461, %v461
        %v494 = vpack.c.b16 %v462, %v462
        %v495 = vpack.c.b16 %v463, %v463
        %v496 = vpack.c.b16 %v464, %v464
        %v497 = vpack.c.b16 %v465, %v465
        %v498 = vpack.c.b16 %v466, %v466
        %v499 = vpack.c.b16 %v467, %v467
        %v500 = vpack.c.b16 %v468, %v468
        %v501 = vpack.c.b16 %v469, %v469
        %v502 = vpack.c.b16 %v470, %v470
        %v503 = vpack.c.b16 %v471, %v471
        %v504 = vpack.c.b16 %v472, %v472
        %v505 = vpack.c.b16 %v473, %v473
        %v506 = vpack.c.b16 %v474, %v474
        %v507 = vpack.c.b16 %v475, %v475
        %v508 = vpack.c.b16 %v476, %v476
        %v509 = vpack.c.b16 %v477, %v477
        %v510 = vpack.c.b16 %v478, %v478
        %v511 = vpack.c.b16 %v479, %v479
        %v512 = vpack.c.b16 %v480, %v480
        %v513 = vpack.c.b16 %v481, %v481
        %v514 = vpack.c.b16 %v482, %v482
        %v515 = vpack.c.b16 %v483, %v483
        %v516 = vpack.c.b16 %v484, %v484
        %v517 = vpack.c.b16 %v485, %v485
        %v518 = vpack.c.b16 %v486, %v486
        %v519 = vpack.c.b16 %v487, %v487
        %v520 = vpack.c.b16 %v488, %v488
        %v521 = vpack.c.b16 %v489, %v489
        %vm522 = vsmask.f32 256
        %vm523 = vsmask.f32 4368
        %vm524 = vmor %vm522, %vm523
        %v526 = vshrl.u32 %v490, 16
        %v528 = vrot.slane %v526, 7
        %v529 = vshll.u32 %v490, 16
        %v531 = vor.u32 %v528, %v529
        %v532 = vrot.slane %v528, 4
        %v534 = vshrl.u32 %v491, 16
        %v536 = vrot.slane %v534, 7
        %v537 = vshll.u32 %v491, 16
        %v539 = vor.u32 %v536, %v537
        %v540 = vsel %vm524, %v532, %v539
        %v541 = vrot.slane %v536, 4
        %v543 = vshrl.u32 %v492, 16
        %v545 = vrot.slane %v543, 7
        %v546 = vshll.u32 %v492, 16
        %v548 = vor.u32 %v545, %v546
        %v549 = vrot.slane %v545, 4
        %v551 = vshrl.u32 %v493, 16
        %v553 = vrot.slane %v551, 7
        %v554 = vshll.u32 %v493, 16
        %v556 = vor.u32 %v553, %v554
        %v557 = vsel %vm524, %v549, %v556
        %v558 = vrot.slane %v553, 4
        %v560 = vshrl.u32 %v494, 16
        %v562 = vrot.slane %v560, 7
        %v563 = vshll.u32 %v494, 16
        %v565 = vor.u32 %v562, %v563
        %v566 = vrot.slane %v562, 4
        %v568 = vshrl.u32 %v495, 16
        %v570 = vrot.slane %v568, 7
        %v571 = vshll.u32 %v495, 16
        %v573 = vor.u32 %v570, %v571
        %v574 = vsel %vm524, %v566, %v573
        %v575 = vrot.slane %v570, 4
        %v577 = vshrl.u32 %v496, 16
        %v579 = vrot.slane %v577, 7
        %v580 = vshll.u32 %v496, 16
        %v582 = vor.u32 %v579, %v580
        %v583 = vrot.slane %v579, 4
        %v585 = vshrl.u32 %v497, 16
        %v587 = vrot.slane %v585, 7
        %v588 = vshll.u32 %v497, 16
        %v590 = vor.u32 %v587, %v588
        %v591 = vsel %vm524, %v583, %v590
        %v592 = vrot.slane %v587, 4
        %v594 = vshrl.u32 %v498, 16
        %v596 = vrot.slane %v594, 7
        %v597 = vshll.u32 %v498, 16
        %v599 = vor.u32 %v596, %v597
        %v600 = vrot.slane %v596, 4
        %v602 = vshrl.u32 %v499, 16
        %v604 = vrot.slane %v602, 7
        %v605 = vshll.u32 %v499, 16
        %v607 = vor.u32 %v604, %v605
        %v608 = vsel %vm524, %v600, %v607
        %v609 = vrot.slane %v604, 4
        %v611 = vshrl.u32 %v500, 16
        %v613 = vrot.slane %v611, 7
        %v614 = vshll.u32 %v500, 16
        %v616 = vor.u32 %v613, %v614
        %v617 = vrot.slane %v613, 4
        %v619 = vshrl.u32 %v501, 16
        %v621 = vrot.slane %v619, 7
        %v622 = vshll.u32 %v501, 16
        %v624 = vor.u32 %v621, %v622
        %v625 = vsel %vm524, %v617, %v624
        %v626 = vrot.slane %v621, 4
        %v628 = vshrl.u32 %v502, 16
        %v630 = vrot.slane %v628, 7
        %v631 = vshll.u32 %v502, 16
        %v633 = vor.u32 %v630, %v631
        %v634 = vrot.slane %v630, 4
        %v636 = vshrl.u32 %v503, 16
        %v638 = vrot.slane %v636, 7
        %v639 = vshll.u32 %v503, 16
        %v641 = vor.u32 %v638, %v639
        %v642 = vsel %vm524, %v634, %v641
        %v643 = vrot.slane %v638, 4
        %v645 = vshrl.u32 %v504, 16
        %v647 = vrot.slane %v645, 7
        %v648 = vshll.u32 %v504, 16
        %v650 = vor.u32 %v647, %v648
        %v651 = vrot.slane %v647, 4
        %v653 = vshrl.u32 %v505, 16
        %v655 = vrot.slane %v653, 7
        %v656 = vshll.u32 %v505, 16
        %v658 = vor.u32 %v655, %v656
        %v659 = vsel %vm524, %v651, %v658
        %v660 = vrot.slane %v655, 4
        %v662 = vshrl.u32 %v506, 16
        %v664 = vrot.slane %v662, 7
        %v665 = vshll.u32 %v506, 16
        %v667 = vor.u32 %v664, %v665
        %v668 = vrot.slane %v664, 4
        %v670 = vshrl.u32 %v507, 16
        %v672 = vrot.slane %v670, 7
        %v673 = vshll.u32 %v507, 16
        %v675 = vor.u32 %v672, %v673
        %v676 = vsel %vm524, %v668, %v675
        %v677 = vrot.slane %v672, 4
        %v679 = vshrl.u32 %v508, 16
        %v681 = vrot.slane %v679, 7
        %v682 = vshll.u32 %v508, 16
        %v684 = vor.u32 %v681, %v682
        %v685 = vrot.slane %v681, 4
        %v687 = vshrl.u32 %v509, 16
        %v689 = vrot.slane %v687, 7
        %v690 = vshll.u32 %v509, 16
        %v692 = vor.u32 %v689, %v690
        %v693 = vsel %vm524, %v685, %v692
        %v694 = vrot.slane %v689, 4
        %v696 = vshrl.u32 %v510, 16
        %v698 = vrot.slane %v696, 7
        %v699 = vshll.u32 %v510, 16
        %v701 = vor.u32 %v698, %v699
        %v702 = vrot.slane %v698, 4
        %v704 = vshrl.u32 %v511, 16
        %v706 = vrot.slane %v704, 7
        %v707 = vshll.u32 %v511, 16
        %v709 = vor.u32 %v706, %v707
        %v710 = vsel %vm524, %v702, %v709
        %v711 = vrot.slane %v706, 4
        %v713 = vshrl.u32 %v512, 16
        %v715 = vrot.slane %v713, 7
        %v716 = vshll.u32 %v512, 16
        %v718 = vor.u32 %v715, %v716
        %v719 = vrot.slane %v715, 4
        %v721 = vshrl.u32 %v513, 16
        %v723 = vrot.slane %v721, 7
        %v724 = vshll.u32 %v513, 16
        %v726 = vor.u32 %v723, %v724
        %v727 = vsel %vm524, %v719, %v726
        %v728 = vrot.slane %v723, 4
        %v730 = vshrl.u32 %v514, 16
        %v732 = vrot.slane %v730, 7
        %v733 = vshll.u32 %v514, 16
        %v735 = vor.u32 %v732, %v733
        %v736 = vrot.slane %v732, 4
        %v738 = vshrl.u32 %v515, 16
        %v740 = vrot.slane %v738, 7
        %v741 = vshll.u32 %v515, 16
        %v743 = vor.u32 %v740, %v741
        %v744 = vsel %vm524, %v736, %v743
        %v745 = vrot.slane %v740, 4
        %v747 = vshrl.u32 %v516, 16
        %v749 = vrot.slane %v747, 7
        %v750 = vshll.u32 %v516, 16
        %v752 = vor.u32 %v749, %v750
        %v753 = vrot.slane %v749, 4
        %v755 = vshrl.u32 %v517, 16
        %v757 = vrot.slane %v755, 7
        %v758 = vshll.u32 %v517, 16
        %v760 = vor.u32 %v757, %v758
        %v761 = vsel %vm524, %v753, %v760
        %v762 = vrot.slane %v757, 4
        %v764 = vshrl.u32 %v518, 16
        %v766 = vrot.slane %v764, 7
        %v767 = vshll.u32 %v518, 16
        %v769 = vor.u32 %v766, %v767
        %v770 = vrot.slane %v766, 4
        %v772 = vshrl.u32 %v519, 16
        %v774 = vrot.slane %v772, 7
        %v775 = vshll.u32 %v519, 16
        %v777 = vor.u32 %v774, %v775
        %v778 = vsel %vm524, %v770, %v777
        %v779 = vrot.slane %v774, 4
        %v781 = vshrl.u32 %v520, 16
        %v783 = vrot.slane %v781, 7
        %v784 = vshll.u32 %v520, 16
        %v786 = vor.u32 %v783, %v784
        %v787 = vrot.slane %v783, 4
        %v789 = vshrl.u32 %v521, 16
        %v791 = vrot.slane %v789, 7
        %v792 = vshll.u32 %v521, 16
        %v794 = vor.u32 %v791, %v792
        %v795 = vsel %vm524, %v787, %v794
        %v796 = vrot.slane %v791, 4
        %s845 = scalar_lea.vmem [#allocation2], 12
        %vm846 = vcmask 27648
        %vm847 = vsmask.f32 7938
        %vm848 = vmand %vm846, %vm847
        %v849 = vld [vmem:[%s845] sm:$0xf]
        %v850 = vsel %vm848, %v531, %v849
        %851 = vst [vmem:[%s845] sm:$0xf] %v850
        %vm852 = vcmask 27648
        %853 = vst.msk [vmem:[%s845 + $0x4] sm:$0xf] %vm852, %v540
        %vm854 = vcmask 24576
        %vm855 = vmand %vm854, %vm522
        %v856 = vld [vmem:[%s845 + $0x8] sm:$0x1]
        %v857 = vsel %vm855, %v541, %v856
        %858 = vst [vmem:[%s845 + $0x8] sm:$0x1] %v857
        %v859 = vld [vmem:[%s845 + $0xc] sm:$0xf]
        %v860 = vsel %vm848, %v548, %v859
        %861 = vst [vmem:[%s845 + $0xc] sm:$0xf] %v860
        %862 = vst.msk [vmem:[%s845 + $0x10] sm:$0xf] %vm852, %v557
        %v863 = vld [vmem:[%s845 + $0x14] sm:$0x1]
        %v864 = vsel %vm855, %v558, %v863
        %865 = vst [vmem:[%s845 + $0x14] sm:$0x1] %v864
        %v866 = vld [vmem:[%s845 + $0x18] sm:$0xf]
        %v867 = vsel %vm848, %v565, %v866
        %868 = vst [vmem:[%s845 + $0x18] sm:$0xf] %v867
        %869 = vst.msk [vmem:[%s845 + $0x1c] sm:$0xf] %vm852, %v574
        %v870 = vld [vmem:[%s845 + $0x20] sm:$0x1]
        %v871 = vsel %vm855, %v575, %v870
        %872 = vst [vmem:[%s845 + $0x20] sm:$0x1] %v871
        %v873 = vld [vmem:[%s845 + $0x24] sm:$0xf]
        %v874 = vsel %vm848, %v582, %v873
        %875 = vst [vmem:[%s845 + $0x24] sm:$0xf] %v874
        %876 = vst.msk [vmem:[%s845 + $0x28] sm:$0xf] %vm852, %v591
        %v877 = vld [vmem:[%s845 + $0x2c] sm:$0x1]
        %v878 = vsel %vm855, %v592, %v877
        %879 = vst [vmem:[%s845 + $0x2c] sm:$0x1] %v878
        %v880 = vld [vmem:[%s845 + $0x30] sm:$0xf]
        %v881 = vsel %vm848, %v599, %v880
        %882 = vst [vmem:[%s845 + $0x30] sm:$0xf] %v881
        %883 = vst.msk [vmem:[%s845 + $0x34] sm:$0xf] %vm852, %v608
        %v884 = vld [vmem:[%s845 + $0x38] sm:$0x1]
        %v885 = vsel %vm855, %v609, %v884
        %886 = vst [vmem:[%s845 + $0x38] sm:$0x1] %v885
        %v887 = vld [vmem:[%s845 + $0x3c] sm:$0xf]
        %v888 = vsel %vm848, %v616, %v887
        %889 = vst [vmem:[%s845 + $0x3c] sm:$0xf] %v888
        %890 = vst.msk [vmem:[%s845 + $0x40] sm:$0xf] %vm852, %v625
        %v891 = vld [vmem:[%s845 + $0x44] sm:$0x1]
        %v892 = vsel %vm855, %v626, %v891
        %893 = vst [vmem:[%s845 + $0x44] sm:$0x1] %v892
        %v894 = vld [vmem:[%s845 + $0x48] sm:$0xf]
        %v895 = vsel %vm848, %v633, %v894
        %896 = vst [vmem:[%s845 + $0x48] sm:$0xf] %v895
        %897 = vst.msk [vmem:[%s845 + $0x4c] sm:$0xf] %vm852, %v642
        %v898 = vld [vmem:[%s845 + $0x50] sm:$0x1]
        %v899 = vsel %vm855, %v643, %v898
        %900 = vst [vmem:[%s845 + $0x50] sm:$0x1] %v899
        %v901 = vld [vmem:[%s845 + $0x54] sm:$0xf]
        %v902 = vsel %vm848, %v650, %v901
        %903 = vst [vmem:[%s845 + $0x54] sm:$0xf] %v902
        %904 = vst.msk [vmem:[%s845 + $0x58] sm:$0xf] %vm852, %v659
        %v905 = vld [vmem:[%s845 + $0x5c] sm:$0x1]
        %v906 = vsel %vm855, %v660, %v905
        %907 = vst [vmem:[%s845 + $0x5c] sm:$0x1] %v906
        %v908 = vld [vmem:[%s845 + $0x60] sm:$0xf]
        %v909 = vsel %vm848, %v667, %v908
        %910 = vst [vmem:[%s845 + $0x60] sm:$0xf] %v909
        %911 = vst.msk [vmem:[%s845 + $0x64] sm:$0xf] %vm852, %v676
        %v912 = vld [vmem:[%s845 + $0x68] sm:$0x1]
        %v913 = vsel %vm855, %v677, %v912
        %914 = vst [vmem:[%s845 + $0x68] sm:$0x1] %v913
        %v915 = vld [vmem:[%s845 + $0x6c] sm:$0xf]
        %v916 = vsel %vm848, %v684, %v915
        %917 = vst [vmem:[%s845 + $0x6c] sm:$0xf] %v916
        %918 = vst.msk [vmem:[%s845 + $0x70] sm:$0xf] %vm852, %v693
        %v919 = vld [vmem:[%s845 + $0x74] sm:$0x1]
        %v920 = vsel %vm855, %v694, %v919
        %921 = vst [vmem:[%s845 + $0x74] sm:$0x1] %v920
        %v922 = vld [vmem:[%s845 + $0x78] sm:$0xf]
        %v923 = vsel %vm848, %v701, %v922
        %924 = vst [vmem:[%s845 + $0x78] sm:$0xf] %v923
        %925 = vst.msk [vmem:[%s845 + $0x7c] sm:$0xf] %vm852, %v710
        %v926 = vld [vmem:[%s845 + $0x80] sm:$0x1]
        %v927 = vsel %vm855, %v711, %v926
        %928 = vst [vmem:[%s845 + $0x80] sm:$0x1] %v927
        %v929 = vld [vmem:[%s845 + $0x84] sm:$0xf]
        %v930 = vsel %vm848, %v718, %v929
        %931 = vst [vmem:[%s845 + $0x84] sm:$0xf] %v930
        %932 = vst.msk [vmem:[%s845 + $0x88] sm:$0xf] %vm852, %v727
        %v933 = vld [vmem:[%s845 + $0x8c] sm:$0x1]
        %v934 = vsel %vm855, %v728, %v933
        %935 = vst [vmem:[%s845 + $0x8c] sm:$0x1] %v934
        %v936 = vld [vmem:[%s845 + $0x90] sm:$0xf]
        %v937 = vsel %vm848, %v735, %v936
        %938 = vst [vmem:[%s845 + $0x90] sm:$0xf] %v937
        %939 = vst.msk [vmem:[%s845 + $0x94] sm:$0xf] %vm852, %v744
        %v940 = vld [vmem:[%s845 + $0x98] sm:$0x1]
        %v941 = vsel %vm855, %v745, %v940
        %942 = vst [vmem:[%s845 + $0x98] sm:$0x1] %v941
        %v943 = vld [vmem:[%s845 + $0x9c] sm:$0xf]
        %v944 = vsel %vm848, %v752, %v943
        %945 = vst [vmem:[%s845 + $0x9c] sm:$0xf] %v944
        %946 = vst.msk [vmem:[%s845 + $0xa0] sm:$0xf] %vm852, %v761
        %v947 = vld [vmem:[%s845 + $0xa4] sm:$0x1]
        %v948 = vsel %vm855, %v762, %v947
        %949 = vst [vmem:[%s845 + $0xa4] sm:$0x1] %v948
        %v950 = vld [vmem:[%s845 + $0xa8] sm:$0xf]
        %v951 = vsel %vm848, %v769, %v950
        %952 = vst [vmem:[%s845 + $0xa8] sm:$0xf] %v951
        %953 = vst.msk [vmem:[%s845 + $0xac] sm:$0xf] %vm852, %v778
        %v954 = vld [vmem:[%s845 + $0xb0] sm:$0x1]
        %v955 = vsel %vm855, %v779, %v954
        %956 = vst [vmem:[%s845 + $0xb0] sm:$0x1] %v955
        %v957 = vld [vmem:[%s845 + $0xb4] sm:$0xf]
        %v958 = vsel %vm848, %v786, %v957
        %959 = vst [vmem:[%s845 + $0xb4] sm:$0xf] %v958
        %960 = vst.msk [vmem:[%s845 + $0xb8] sm:$0xf] %vm852, %v795
        %v961 = vld [vmem:[%s845 + $0xbc] sm:$0x1]
        %v962 = vsel %vm855, %v796, %v961
        %963 = vst [vmem:[%s845 + $0xbc] sm:$0x1] %v962
        %v964 = vld [vmem:[#allocation2] sm:$0xf]
        %v965 = vld [vmem:[#allocation2 + $0x4] sm:$0xf]
        %v966 = vld [vmem:[#allocation2 + $0x8] sm:$0x1]
        %v967 = vld [vmem:[#allocation2 + $0xc] sm:$0xf]
        %v968 = vld [vmem:[#allocation2 + $0x10] sm:$0xf]
        %v969 = vld [vmem:[#allocation2 + $0x14] sm:$0x1]
        %v970 = vld [vmem:[#allocation2 + $0x18] sm:$0xf]
        %v971 = vld [vmem:[#allocation2 + $0x1c] sm:$0xf]
        %v972 = vld [vmem:[#allocation2 + $0x20] sm:$0x1]
        %v973 = vld [vmem:[#allocation2 + $0x24] sm:$0xf]
        %v974 = vld [vmem:[#allocation2 + $0x28] sm:$0xf]
        %v975 = vld [vmem:[#allocation2 + $0x2c] sm:$0x1]
        %v976 = vld [vmem:[#allocation2 + $0x30] sm:$0xf]
        %v977 = vld [vmem:[#allocation2 + $0x34] sm:$0xf]
        %v978 = vld [vmem:[#allocation2 + $0x38] sm:$0x1]
        %v979 = vld [vmem:[#allocation2 + $0x3c] sm:$0xf]
        %v980 = vld [vmem:[#allocation2 + $0x40] sm:$0xf]
        %v981 = vld [vmem:[#allocation2 + $0x44] sm:$0x1]
        %v982 = vld [vmem:[#allocation2 + $0x48] sm:$0xf]
        %v983 = vld [vmem:[#allocation2 + $0x4c] sm:$0xf]
        %v984 = vld [vmem:[#allocation2 + $0x50] sm:$0x1]
        %v985 = vld [vmem:[#allocation2 + $0x54] sm:$0xf]
        %v986 = vld [vmem:[#allocation2 + $0x58] sm:$0xf]
        %v987 = vld [vmem:[#allocation2 + $0x5c] sm:$0x1]
        %v988 = vld [vmem:[#allocation2 + $0x60] sm:$0xf]
        %v989 = vld [vmem:[#allocation2 + $0x64] sm:$0xf]
        %v990 = vld [vmem:[#allocation2 + $0x68] sm:$0x1]
        %v991 = vld [vmem:[#allocation2 + $0x6c] sm:$0xf]
        %v992 = vld [vmem:[#allocation2 + $0x70] sm:$0xf]
        %v993 = vld [vmem:[#allocation2 + $0x74] sm:$0x1]
        %v994 = vld [vmem:[#allocation2 + $0x78] sm:$0xf]
        %v995 = vld [vmem:[#allocation2 + $0x7c] sm:$0xf]
        %v996 = vld [vmem:[#allocation2 + $0x80] sm:$0x1]
        %v997 = vld [vmem:[#allocation2 + $0x84] sm:$0xf]
        %v998 = vld [vmem:[#allocation2 + $0x88] sm:$0xf]
        %v999 = vld [vmem:[#allocation2 + $0x8c] sm:$0x1]
        %v1000 = vld [vmem:[#allocation2 + $0x90] sm:$0xf]
        %v1001 = vld [vmem:[#allocation2 + $0x94] sm:$0xf]
        %v1002 = vld [vmem:[#allocation2 + $0x98] sm:$0x1]
        %v1003 = vld [vmem:[#allocation2 + $0x9c] sm:$0xf]
        %v1004 = vld [vmem:[#allocation2 + $0xa0] sm:$0xf]
        %v1005 = vld [vmem:[#allocation2 + $0xa4] sm:$0x1]
        %v1006 = vld [vmem:[#allocation2 + $0xa8] sm:$0xf]
        %v1007 = vld [vmem:[#allocation2 + $0xac] sm:$0xf]
        %v1008 = vld [vmem:[#allocation2 + $0xb0] sm:$0x1]
        %v1009 = vld [vmem:[#allocation2 + $0xb4] sm:$0xf]
        %v1010 = vld [vmem:[#allocation2 + $0xb8] sm:$0xf]
        %v1011 = vld [vmem:[#allocation2 + $0xbc] sm:$0x1]
        %v1012 = vld [vmem:[#allocation2 + $0xc0] sm:$0xf]
        %v1013 = vld [vmem:[#allocation2 + $0xc4] sm:$0xf]
        %v1014 = vld [vmem:[#allocation2 + $0xc8] sm:$0x1]
        %v1015 = vld [vmem:[#allocation2 + $0xcc] sm:$0xf]
        %v1016 = vld [vmem:[#allocation2 + $0xd0] sm:$0xf]
        %v1017 = vld [vmem:[#allocation2 + $0xd4] sm:$0x1]
        %vm1018 = vsmask.f32 3328
        %vm1019 = vsmask.f32 7440
        %vm1020 = vmor %vm1018, %vm1019
        %v1022 = vshrl.u32 %v964, 16
        %v1024 = vrot.slane %v1022, 4
        %v1025 = vshll.u32 %v964, 16
        %v1027 = vrot.slane %v1025, 5
        %v1028 = vor.u32 %v1024, %v1027
        %v1029 = vrot.slane %v1028, 4
        %v1031 = vshll.u32 %v965, 16
        %v1033 = vrot.slane %v1031, 5
        %v1034 = vsel %vm1020, %v1029, %v1033
        %v1035 = vshrl.u32 %v965, 16
        %v1037 = vrot.slane %v1035, 4
        %v1038 = vor.u32 %v1037, %v1033
        %v1039 = vrot.slane %v1038, 4
        %v1041 = vshll.u32 %v966, 16
        %v1043 = vrot.slane %v1041, 5
        %v1044 = vsel %vm1020, %v1039, %v1043
        %v1046 = vshrl.u32 %v967, 16
        %v1048 = vrot.slane %v1046, 4
        %v1049 = vshll.u32 %v967, 16
        %v1051 = vrot.slane %v1049, 5
        %v1052 = vor.u32 %v1048, %v1051
        %v1053 = vrot.slane %v1052, 4
        %v1055 = vshll.u32 %v968, 16
        %v1057 = vrot.slane %v1055, 5
        %v1058 = vsel %vm1020, %v1053, %v1057
        %v1059 = vshrl.u32 %v968, 16
        %v1061 = vrot.slane %v1059, 4
        %v1062 = vor.u32 %v1061, %v1057
        %v1063 = vrot.slane %v1062, 4
        %v1065 = vshll.u32 %v969, 16
        %v1067 = vrot.slane %v1065, 5
        %v1068 = vsel %vm1020, %v1063, %v1067
        %v1070 = vshrl.u32 %v970, 16
        %v1072 = vrot.slane %v1070, 4
        %v1073 = vshll.u32 %v970, 16
        %v1075 = vrot.slane %v1073, 5
        %v1076 = vor.u32 %v1072, %v1075
        %v1077 = vrot.slane %v1076, 4
        %v1079 = vshll.u32 %v971, 16
        %v1081 = vrot.slane %v1079, 5
        %v1082 = vsel %vm1020, %v1077, %v1081
        %v1083 = vshrl.u32 %v971, 16
        %v1085 = vrot.slane %v1083, 4
        %v1086 = vor.u32 %v1085, %v1081
        %v1087 = vrot.slane %v1086, 4
        %v1089 = vshll.u32 %v972, 16
        %v1091 = vrot.slane %v1089, 5
        %v1092 = vsel %vm1020, %v1087, %v1091
        %v1094 = vshrl.u32 %v973, 16
        %v1096 = vrot.slane %v1094, 4
        %v1097 = vshll.u32 %v973, 16
        %v1099 = vrot.slane %v1097, 5
        %v1100 = vor.u32 %v1096, %v1099
        %v1101 = vrot.slane %v1100, 4
        %v1103 = vshll.u32 %v974, 16
        %v1105 = vrot.slane %v1103, 5
        %v1106 = vsel %vm1020, %v1101, %v1105
        %v1107 = vshrl.u32 %v974, 16
        %v1109 = vrot.slane %v1107, 4
        %v1110 = vor.u32 %v1109, %v1105
        %v1111 = vrot.slane %v1110, 4
        %v1113 = vshll.u32 %v975, 16
        %v1115 = vrot.slane %v1113, 5
        %v1116 = vsel %vm1020, %v1111, %v1115
        %v1118 = vshrl.u32 %v976, 16
        %v1120 = vrot.slane %v1118, 4
        %v1121 = vshll.u32 %v976, 16
        %v1123 = vrot.slane %v1121, 5
        %v1124 = vor.u32 %v1120, %v1123
        %v1125 = vrot.slane %v1124, 4
        %v1127 = vshll.u32 %v977, 16
        %v1129 = vrot.slane %v1127, 5
        %v1130 = vsel %vm1020, %v1125, %v1129
        %v1131 = vshrl.u32 %v977, 16
        %v1133 = vrot.slane %v1131, 4
        %v1134 = vor.u32 %v1133, %v1129
        %v1135 = vrot.slane %v1134, 4
        %v1137 = vshll.u32 %v978, 16
        %v1139 = vrot.slane %v1137, 5
        %v1140 = vsel %vm1020, %v1135, %v1139
        %v1142 = vshrl.u32 %v979, 16
        %v1144 = vrot.slane %v1142, 4
        %v1145 = vshll.u32 %v979, 16
        %v1147 = vrot.slane %v1145, 5
        %v1148 = vor.u32 %v1144, %v1147
        %v1149 = vrot.slane %v1148, 4
        %v1151 = vshll.u32 %v980, 16
        %v1153 = vrot.slane %v1151, 5
        %v1154 = vsel %vm1020, %v1149, %v1153
        %v1155 = vshrl.u32 %v980, 16
        %v1157 = vrot.slane %v1155, 4
        %v1158 = vor.u32 %v1157, %v1153
        %v1159 = vrot.slane %v1158, 4
        %v1161 = vshll.u32 %v981, 16
        %v1163 = vrot.slane %v1161, 5
        %v1164 = vsel %vm1020, %v1159, %v1163
        %v1166 = vshrl.u32 %v982, 16
        %v1168 = vrot.slane %v1166, 4
        %v1169 = vshll.u32 %v982, 16
        %v1171 = vrot.slane %v1169, 5
        %v1172 = vor.u32 %v1168, %v1171
        %v1173 = vrot.slane %v1172, 4
        %v1175 = vshll.u32 %v983, 16
        %v1177 = vrot.slane %v1175, 5
        %v1178 = vsel %vm1020, %v1173, %v1177
        %v1179 = vshrl.u32 %v983, 16
        %v1181 = vrot.slane %v1179, 4
        %v1182 = vor.u32 %v1181, %v1177
        %v1183 = vrot.slane %v1182, 4
        %v1185 = vshll.u32 %v984, 16
        %v1187 = vrot.slane %v1185, 5
        %v1188 = vsel %vm1020, %v1183, %v1187
        %v1190 = vshrl.u32 %v985, 16
        %v1192 = vrot.slane %v1190, 4
        %v1193 = vshll.u32 %v985, 16
        %v1195 = vrot.slane %v1193, 5
        %v1196 = vor.u32 %v1192, %v1195
        %v1197 = vrot.slane %v1196, 4
        %v1199 = vshll.u32 %v986, 16
        %v1201 = vrot.slane %v1199, 5
        %v1202 = vsel %vm1020, %v1197, %v1201
        %v1203 = vshrl.u32 %v986, 16
        %v1205 = vrot.slane %v1203, 4
        %v1206 = vor.u32 %v1205, %v1201
        %v1207 = vrot.slane %v1206, 4
        %v1209 = vshll.u32 %v987, 16
        %v1211 = vrot.slane %v1209, 5
        %v1212 = vsel %vm1020, %v1207, %v1211
        %v1214 = vshrl.u32 %v988, 16
        %v1216 = vrot.slane %v1214, 4
        %v1217 = vshll.u32 %v988, 16
        %v1219 = vrot.slane %v1217, 5
        %v1220 = vor.u32 %v1216, %v1219
        %v1221 = vrot.slane %v1220, 4
        %v1223 = vshll.u32 %v989, 16
        %v1225 = vrot.slane %v1223, 5
        %v1226 = vsel %vm1020, %v1221, %v1225
        %v1227 = vshrl.u32 %v989, 16
        %v1229 = vrot.slane %v1227, 4
        %v1230 = vor.u32 %v1229, %v1225
        %v1231 = vrot.slane %v1230, 4
        %v1233 = vshll.u32 %v990, 16
        %v1235 = vrot.slane %v1233, 5
        %v1236 = vsel %vm1020, %v1231, %v1235
        %v1238 = vshrl.u32 %v991, 16
        %v1240 = vrot.slane %v1238, 4
        %v1241 = vshll.u32 %v991, 16
        %v1243 = vrot.slane %v1241, 5
        %v1244 = vor.u32 %v1240, %v1243
        %v1245 = vrot.slane %v1244, 4
        %v1247 = vshll.u32 %v992, 16
        %v1249 = vrot.slane %v1247, 5
        %v1250 = vsel %vm1020, %v1245, %v1249
        %v1251 = vshrl.u32 %v992, 16
        %v1253 = vrot.slane %v1251, 4
        %v1254 = vor.u32 %v1253, %v1249
        %v1255 = vrot.slane %v1254, 4
        %v1257 = vshll.u32 %v993, 16
        %v1259 = vrot.slane %v1257, 5
        %v1260 = vsel %vm1020, %v1255, %v1259
        %v1262 = vshrl.u32 %v994, 16
        %v1264 = vrot.slane %v1262, 4
        %v1265 = vshll.u32 %v994, 16
        %v1267 = vrot.slane %v1265, 5
        %v1268 = vor.u32 %v1264, %v1267
        %v1269 = vrot.slane %v1268, 4
        %v1271 = vshll.u32 %v995, 16
        %v1273 = vrot.slane %v1271, 5
        %v1274 = vsel %vm1020, %v1269, %v1273
        %v1275 = vshrl.u32 %v995, 16
        %v1277 = vrot.slane %v1275, 4
        %v1278 = vor.u32 %v1277, %v1273
        %v1279 = vrot.slane %v1278, 4
        %v1281 = vshll.u32 %v996, 16
        %v1283 = vrot.slane %v1281, 5
        %v1284 = vsel %vm1020, %v1279, %v1283
        %v1286 = vshrl.u32 %v997, 16
        %v1288 = vrot.slane %v1286, 4
        %v1289 = vshll.u32 %v997, 16
        %v1291 = vrot.slane %v1289, 5
        %v1292 = vor.u32 %v1288, %v1291
        %v1293 = vrot.slane %v1292, 4
        %v1295 = vshll.u32 %v998, 16
        %v1297 = vrot.slane %v1295, 5
        %v1298 = vsel %vm1020, %v1293, %v1297
        %v1299 = vshrl.u32 %v998, 16
        %v1301 = vrot.slane %v1299, 4
        %v1302 = vor.u32 %v1301, %v1297
        %v1303 = vrot.slane %v1302, 4
        %v1305 = vshll.u32 %v999, 16
        %v1307 = vrot.slane %v1305, 5
        %v1308 = vsel %vm1020, %v1303, %v1307
        %v1310 = vshrl.u32 %v1000, 16
        %v1312 = vrot.slane %v1310, 4
        %v1313 = vshll.u32 %v1000, 16
        %v1315 = vrot.slane %v1313, 5
        %v1316 = vor.u32 %v1312, %v1315
        %v1317 = vrot.slane %v1316, 4
        %v1319 = vshll.u32 %v1001, 16
        %v1321 = vrot.slane %v1319, 5
        %v1322 = vsel %vm1020, %v1317, %v1321
        %v1323 = vshrl.u32 %v1001, 16
        %v1325 = vrot.slane %v1323, 4
        %v1326 = vor.u32 %v1325, %v1321
        %v1327 = vrot.slane %v1326, 4
        %v1329 = vshll.u32 %v1002, 16
        %v1331 = vrot.slane %v1329, 5
        %v1332 = vsel %vm1020, %v1327, %v1331
        %v1334 = vshrl.u32 %v1003, 16
        %v1336 = vrot.slane %v1334, 4
        %v1337 = vshll.u32 %v1003, 16
        %v1339 = vrot.slane %v1337, 5
        %v1340 = vor.u32 %v1336, %v1339
        %v1341 = vrot.slane %v1340, 4
        %v1343 = vshll.u32 %v1004, 16
        %v1345 = vrot.slane %v1343, 5
        %v1346 = vsel %vm1020, %v1341, %v1345
        %v1347 = vshrl.u32 %v1004, 16
        %v1349 = vrot.slane %v1347, 4
        %v1350 = vor.u32 %v1349, %v1345
        %v1351 = vrot.slane %v1350, 4
        %v1353 = vshll.u32 %v1005, 16
        %v1355 = vrot.slane %v1353, 5
        %v1356 = vsel %vm1020, %v1351, %v1355
        %v1358 = vshrl.u32 %v1006, 16
        %v1360 = vrot.slane %v1358, 4
        %v1361 = vshll.u32 %v1006, 16
        %v1363 = vrot.slane %v1361, 5
        %v1364 = vor.u32 %v1360, %v1363
        %v1365 = vrot.slane %v1364, 4
        %v1367 = vshll.u32 %v1007, 16
        %v1369 = vrot.slane %v1367, 5
        %v1370 = vsel %vm1020, %v1365, %v1369
        %v1371 = vshrl.u32 %v1007, 16
        %v1373 = vrot.slane %v1371, 4
        %v1374 = vor.u32 %v1373, %v1369
        %v1375 = vrot.slane %v1374, 4
        %v1377 = vshll.u32 %v1008, 16
        %v1379 = vrot.slane %v1377, 5
        %v1380 = vsel %vm1020, %v1375, %v1379
        %v1382 = vshrl.u32 %v1009, 16
        %v1384 = vrot.slane %v1382, 4
        %v1385 = vshll.u32 %v1009, 16
        %v1387 = vrot.slane %v1385, 5
        %v1388 = vor.u32 %v1384, %v1387
        %v1389 = vrot.slane %v1388, 4
        %v1391 = vshll.u32 %v1010, 16
        %v1393 = vrot.slane %v1391, 5
        %v1394 = vsel %vm1020, %v1389, %v1393
        %v1395 = vshrl.u32 %v1010, 16
        %v1397 = vrot.slane %v1395, 4
        %v1398 = vor.u32 %v1397, %v1393
        %v1399 = vrot.slane %v1398, 4
        %v1401 = vshll.u32 %v1011, 16
        %v1403 = vrot.slane %v1401, 5
        %v1404 = vsel %vm1020, %v1399, %v1403
        %vm1453 = vcmask 1042432
        %vm1454 = vcmask 1046532
        %vm1455 = vmor %vm1453, %vm1454
        %v1456 = vrot.slane %v964, 5
        %v1457 = vrot.slane %v1456, 4
        %v1458 = vrot.slane %v965, 5
        %v1459 = vsel %vm1455, %v1457, %v1458
        %v1460 = vrot.slane %v1458, 4
        %v1461 = vrot.slane %v966, 5
        %v1462 = vsel %vm1455, %v1460, %v1461
        %v1463 = vrot.slane %v967, 5
        %v1464 = vrot.slane %v1463, 4
        %v1465 = vrot.slane %v968, 5
        %v1466 = vsel %vm1455, %v1464, %v1465
        %v1467 = vrot.slane %v1465, 4
        %v1468 = vrot.slane %v969, 5
        %v1469 = vsel %vm1455, %v1467, %v1468
        %v1470 = vrot.slane %v970, 5
        %v1471 = vrot.slane %v1470, 4
        %v1472 = vrot.slane %v971, 5
        %v1473 = vsel %vm1455, %v1471, %v1472
        %v1474 = vrot.slane %v1472, 4
        %v1475 = vrot.slane %v972, 5
        %v1476 = vsel %vm1455, %v1474, %v1475
        %v1477 = vrot.slane %v973, 5
        %v1478 = vrot.slane %v1477, 4
        %v1479 = vrot.slane %v974, 5
        %v1480 = vsel %vm1455, %v1478, %v1479
        %v1481 = vrot.slane %v1479, 4
        %v1482 = vrot.slane %v975, 5
        %v1483 = vsel %vm1455, %v1481, %v1482
        %v1484 = vrot.slane %v976, 5
        %v1485 = vrot.slane %v1484, 4
        %v1486 = vrot.slane %v977, 5
        %v1487 = vsel %vm1455, %v1485, %v1486
        %v1488 = vrot.slane %v1486, 4
        %v1489 = vrot.slane %v978, 5
        %v1490 = vsel %vm1455, %v1488, %v1489
        %v1491 = vrot.slane %v979, 5
        %v1492 = vrot.slane %v1491, 4
        %v1493 = vrot.slane %v980, 5
        %v1494 = vsel %vm1455, %v1492, %v1493
        %v1495 = vrot.slane %v1493, 4
        %v1496 = vrot.slane %v981, 5
        %v1497 = vsel %vm1455, %v1495, %v1496
        %v1498 = vrot.slane %v982, 5
        %v1499 = vrot.slane %v1498, 4
        %v1500 = vrot.slane %v983, 5
        %v1501 = vsel %vm1455, %v1499, %v1500
        %v1502 = vrot.slane %v1500, 4
        %v1503 = vrot.slane %v984, 5
        %v1504 = vsel %vm1455, %v1502, %v1503
        %v1505 = vrot.slane %v985, 5
        %v1506 = vrot.slane %v1505, 4
        %v1507 = vrot.slane %v986, 5
        %v1508 = vsel %vm1455, %v1506, %v1507
        %v1509 = vrot.slane %v1507, 4
        %v1510 = vrot.slane %v987, 5
        %v1511 = vsel %vm1455, %v1509, %v1510
        %v1512 = vrot.slane %v988, 5
        %v1513 = vrot.slane %v1512, 4
        %v1514 = vrot.slane %v989, 5
        %v1515 = vsel %vm1455, %v1513, %v1514
        %v1516 = vrot.slane %v1514, 4
        %v1517 = vrot.slane %v990, 5
        %v1518 = vsel %vm1455, %v1516, %v1517
        %v1519 = vrot.slane %v991, 5
        %v1520 = vrot.slane %v1519, 4
        %v1521 = vrot.slane %v992, 5
        %v1522 = vsel %vm1455, %v1520, %v1521
        %v1523 = vrot.slane %v1521, 4
        %v1524 = vrot.slane %v993, 5
        %v1525 = vsel %vm1455, %v1523, %v1524
        %v1526 = vrot.slane %v994, 5
        %v1527 = vrot.slane %v1526, 4
        %v1528 = vrot.slane %v995, 5
        %v1529 = vsel %vm1455, %v1527, %v1528
        %v1530 = vrot.slane %v1528, 4
        %v1531 = vrot.slane %v996, 5
        %v1532 = vsel %vm1455, %v1530, %v1531
        %v1533 = vrot.slane %v997, 5
        %v1534 = vrot.slane %v1533, 4
        %v1535 = vrot.slane %v998, 5
        %v1536 = vsel %vm1455, %v1534, %v1535
        %v1537 = vrot.slane %v1535, 4
        %v1538 = vrot.slane %v999, 5
        %v1539 = vsel %vm1455, %v1537, %v1538
        %v1540 = vrot.slane %v1000, 5
        %v1541 = vrot.slane %v1540, 4
        %v1542 = vrot.slane %v1001, 5
        %v1543 = vsel %vm1455, %v1541, %v1542
        %v1544 = vrot.slane %v1542, 4
        %v1545 = vrot.slane %v1002, 5
        %v1546 = vsel %vm1455, %v1544, %v1545
        %v1547 = vrot.slane %v1003, 5
        %v1548 = vrot.slane %v1547, 4
        %v1549 = vrot.slane %v1004, 5
        %v1550 = vsel %vm1455, %v1548, %v1549
        %v1551 = vrot.slane %v1549, 4
        %v1552 = vrot.slane %v1005, 5
        %v1553 = vsel %vm1455, %v1551, %v1552
        %v1554 = vrot.slane %v1006, 5
        %v1555 = vrot.slane %v1554, 4
        %v1556 = vrot.slane %v1007, 5
        %v1557 = vsel %vm1455, %v1555, %v1556
        %v1558 = vrot.slane %v1556, 4
        %v1559 = vrot.slane %v1008, 5
        %v1560 = vsel %vm1455, %v1558, %v1559
        %v1561 = vrot.slane %v1009, 5
        %v1562 = vrot.slane %v1561, 4
        %v1563 = vrot.slane %v1010, 5
        %v1564 = vsel %vm1455, %v1562, %v1563
        %v1565 = vrot.slane %v1563, 4
        %v1566 = vrot.slane %v1011, 5
        %v1567 = vsel %vm1455, %v1565, %v1566
        %v1569 = vshrl.u32 %v1012, 16
        %v1571 = vrot.slane %v1569, 4
        %v1572 = vshll.u32 %v1012, 16
        %v1574 = vrot.slane %v1572, 5
        %v1575 = vor.u32 %v1571, %v1574
        %v1576 = vrot.slane %v1575, 4
        %v1578 = vshll.u32 %v1013, 16
        %v1580 = vrot.slane %v1578, 5
        %v1581 = vsel %vm1020, %v1576, %v1580
        %v1582 = vshrl.u32 %v1013, 16
        %v1584 = vrot.slane %v1582, 4
        %v1585 = vor.u32 %v1584, %v1580
        %v1586 = vrot.slane %v1585, 4
        %v1588 = vshll.u32 %v1014, 16
        %v1590 = vrot.slane %v1588, 5
        %v1591 = vsel %vm1020, %v1586, %v1590
        %v1595 = vrot.slane %v1012, 5
        %v1596 = vrot.slane %v1595, 4
        %v1597 = vrot.slane %v1013, 5
        %v1598 = vsel %vm1455, %v1596, %v1597
        %v1599 = vrot.slane %v1597, 4
        %v1600 = vrot.slane %v1014, 5
        %v1601 = vsel %vm1455, %v1599, %v1600
        %v1603 = vshrl.u32 %v1015, 16
        %v1605 = vrot.slane %v1603, 4
        %v1606 = vshll.u32 %v1015, 16
        %v1608 = vrot.slane %v1606, 5
        %v1609 = vor.u32 %v1605, %v1608
        %v1610 = vrot.slane %v1609, 4
        %v1612 = vshll.u32 %v1016, 16
        %v1614 = vrot.slane %v1612, 5
        %v1615 = vsel %vm1020, %v1610, %v1614
        %v1616 = vshrl.u32 %v1016, 16
        %v1618 = vrot.slane %v1616, 4
        %v1619 = vor.u32 %v1618, %v1614
        %v1620 = vrot.slane %v1619, 4
        %v1622 = vshll.u32 %v1017, 16
        %v1624 = vrot.slane %v1622, 5
        %v1625 = vsel %vm1020, %v1620, %v1624
        %v1629 = vrot.slane %v1015, 5
        %v1630 = vrot.slane %v1629, 4
        %v1631 = vrot.slane %v1016, 5
        %v1632 = vsel %vm1455, %v1630, %v1631
        %v1633 = vrot.slane %v1631, 4
        %v1634 = vrot.slane %v1017, 5
        %v1635 = vsel %vm1455, %v1633, %v1634
        %v1636 = vunpack.c.l.b16 %v964
        %v1637 = vunpack.c.l.b16 %v965
        %v1638 = vunpack.c.l.b16 %v967
        %v1639 = vunpack.c.l.b16 %v968
        %v1640 = vunpack.c.l.b16 %v970
        %v1641 = vunpack.c.l.b16 %v971
        %v1642 = vunpack.c.l.b16 %v973
        %v1643 = vunpack.c.l.b16 %v974
        %v1644 = vunpack.c.l.b16 %v976
        %v1645 = vunpack.c.l.b16 %v977
        %v1646 = vunpack.c.l.b16 %v979
        %v1647 = vunpack.c.l.b16 %v980
        %v1648 = vunpack.c.l.b16 %v982
        %v1649 = vunpack.c.l.b16 %v983
        %v1650 = vunpack.c.l.b16 %v985
        %v1651 = vunpack.c.l.b16 %v986
        %v1652 = vunpack.c.l.b16 %v988
        %v1653 = vunpack.c.l.b16 %v989
        %v1654 = vunpack.c.l.b16 %v991
        %v1655 = vunpack.c.l.b16 %v992
        %v1656 = vunpack.c.l.b16 %v994
        %v1657 = vunpack.c.l.b16 %v995
        %v1658 = vunpack.c.l.b16 %v997
        %v1659 = vunpack.c.l.b16 %v998
        %v1660 = vunpack.c.l.b16 %v1000
        %v1661 = vunpack.c.l.b16 %v1001
        %v1662 = vunpack.c.l.b16 %v1003
        %v1663 = vunpack.c.l.b16 %v1004
        %v1664 = vunpack.c.l.b16 %v1006
        %v1665 = vunpack.c.l.b16 %v1007
        %v1666 = vunpack.c.l.b16 %v1009
        %v1667 = vunpack.c.l.b16 %v1010
        %v1668 = vpack.c.b16 %v1637, %v1636
        %v1669 = vpack.c.b16 %v1639, %v1638
        %v1670 = vpack.c.b16 %v1641, %v1640
        %v1671 = vpack.c.b16 %v1643, %v1642
        %v1672 = vpack.c.b16 %v1645, %v1644
        %v1673 = vpack.c.b16 %v1647, %v1646
        %v1674 = vpack.c.b16 %v1649, %v1648
        %v1675 = vpack.c.b16 %v1651, %v1650
        %v1676 = vpack.c.b16 %v1653, %v1652
        %v1677 = vpack.c.b16 %v1655, %v1654
        %v1678 = vpack.c.b16 %v1657, %v1656
        %v1679 = vpack.c.b16 %v1659, %v1658
        %v1680 = vpack.c.b16 %v1661, %v1660
        %v1681 = vpack.c.b16 %v1663, %v1662
        %v1682 = vpack.c.b16 %v1665, %v1664
        %v1683 = vpack.c.b16 %v1667, %v1666
        %v1684 = vunpack.c.l.b16 %v1034
        %v1685 = vunpack.c.l.b16 %v1044
        %v1686 = vunpack.c.l.b16 %v1058
        %v1687 = vunpack.c.l.b16 %v1068
        %v1688 = vunpack.c.l.b16 %v1082
        %v1689 = vunpack.c.l.b16 %v1092
        %v1690 = vunpack.c.l.b16 %v1106
        %v1691 = vunpack.c.l.b16 %v1116
        %v1692 = vunpack.c.l.b16 %v1130
        %v1693 = vunpack.c.l.b16 %v1140
        %v1694 = vunpack.c.l.b16 %v1154
        %v1695 = vunpack.c.l.b16 %v1164
        %v1696 = vunpack.c.l.b16 %v1178
        %v1697 = vunpack.c.l.b16 %v1188
        %v1698 = vunpack.c.l.b16 %v1202
        %v1699 = vunpack.c.l.b16 %v1212
        %v1700 = vunpack.c.l.b16 %v1226
        %v1701 = vunpack.c.l.b16 %v1236
        %v1702 = vunpack.c.l.b16 %v1250
        %v1703 = vunpack.c.l.b16 %v1260
        %v1704 = vunpack.c.l.b16 %v1274
        %v1705 = vunpack.c.l.b16 %v1284
        %v1706 = vunpack.c.l.b16 %v1298
        %v1707 = vunpack.c.l.b16 %v1308
        %v1708 = vunpack.c.l.b16 %v1322
        %v1709 = vunpack.c.l.b16 %v1332
        %v1710 = vunpack.c.l.b16 %v1346
        %v1711 = vunpack.c.l.b16 %v1356
        %v1712 = vunpack.c.l.b16 %v1370
        %v1713 = vunpack.c.l.b16 %v1380
        %v1714 = vunpack.c.l.b16 %v1394
        %v1715 = vunpack.c.l.b16 %v1404
        %v1716 = vpack.c.b16 %v1685, %v1684
        %v1717 = vpack.c.b16 %v1687, %v1686
        %v1718 = vpack.c.b16 %v1689, %v1688
        %v1719 = vpack.c.b16 %v1691, %v1690
        %v1720 = vpack.c.b16 %v1693, %v1692
        %v1721 = vpack.c.b16 %v1695, %v1694
        %v1722 = vpack.c.b16 %v1697, %v1696
        %v1723 = vpack.c.b16 %v1699, %v1698
        %v1724 = vpack.c.b16 %v1701, %v1700
        %v1725 = vpack.c.b16 %v1703, %v1702
        %v1726 = vpack.c.b16 %v1705, %v1704
        %v1727 = vpack.c.b16 %v1707, %v1706
        %v1728 = vpack.c.b16 %v1709, %v1708
        %v1729 = vpack.c.b16 %v1711, %v1710
        %v1730 = vpack.c.b16 %v1713, %v1712
        %v1731 = vpack.c.b16 %v1715, %v1714
        %1732 = vrot.lane.b32.xlu0 %v1716, 4
        %v1733 = vpop.permute.xlu0 %1732
        %1734 = vrot.lane.b32.xlu0 %v1717, 4
        %v1735 = vpop.permute.xlu0 %1734
        %1736 = vrot.lane.b32.xlu0 %v1718, 4
        %v1737 = vpop.permute.xlu0 %1736
        %1738 = vrot.lane.b32.xlu0 %v1719, 4
        %v1739 = vpop.permute.xlu0 %1738
        %1740 = vrot.lane.b32.xlu0 %v1720, 4
        %v1741 = vpop.permute.xlu0 %1740
        %1742 = vrot.lane.b32.xlu0 %v1721, 4
        %v1743 = vpop.permute.xlu0 %1742
        %1744 = vrot.lane.b32.xlu0 %v1722, 4
        %v1745 = vpop.permute.xlu0 %1744
        %1746 = vrot.lane.b32.xlu0 %v1723, 4
        %v1747 = vpop.permute.xlu0 %1746
        %1748 = vrot.lane.b32.xlu0 %v1724, 4
        %v1749 = vpop.permute.xlu0 %1748
        %1750 = vrot.lane.b32.xlu0 %v1725, 4
        %v1751 = vpop.permute.xlu0 %1750
        %1752 = vrot.lane.b32.xlu0 %v1726, 4
        %v1753 = vpop.permute.xlu0 %1752
        %1754 = vrot.lane.b32.xlu0 %v1727, 4
        %v1755 = vpop.permute.xlu0 %1754
        %1756 = vrot.lane.b32.xlu0 %v1728, 4
        %v1757 = vpop.permute.xlu0 %1756
        %1758 = vrot.lane.b32.xlu0 %v1729, 4
        %v1759 = vpop.permute.xlu0 %1758
        %1760 = vrot.lane.b32.xlu0 %v1730, 4
        %v1761 = vpop.permute.xlu0 %1760
        %1762 = vrot.lane.b32.xlu0 %v1731, 4
        %v1763 = vpop.permute.xlu0 %1762
        %v1764 = vunpack.c.l.b16 %v1459
        %v1765 = vunpack.c.l.b16 %v1462
        %v1766 = vunpack.c.l.b16 %v1466
        %v1767 = vunpack.c.l.b16 %v1469
        %v1768 = vunpack.c.l.b16 %v1473
        %v1769 = vunpack.c.l.b16 %v1476
        %v1770 = vunpack.c.l.b16 %v1480
        %v1771 = vunpack.c.l.b16 %v1483
        %v1772 = vunpack.c.l.b16 %v1487
        %v1773 = vunpack.c.l.b16 %v1490
        %v1774 = vunpack.c.l.b16 %v1494
        %v1775 = vunpack.c.l.b16 %v1497
        %v1776 = vunpack.c.l.b16 %v1501
        %v1777 = vunpack.c.l.b16 %v1504
        %v1778 = vunpack.c.l.b16 %v1508
        %v1779 = vunpack.c.l.b16 %v1511
        %v1780 = vunpack.c.l.b16 %v1515
        %v1781 = vunpack.c.l.b16 %v1518
        %v1782 = vunpack.c.l.b16 %v1522
        %v1783 = vunpack.c.l.b16 %v1525
        %v1784 = vunpack.c.l.b16 %v1529
        %v1785 = vunpack.c.l.b16 %v1532
        %v1786 = vunpack.c.l.b16 %v1536
        %v1787 = vunpack.c.l.b16 %v1539
        %v1788 = vunpack.c.l.b16 %v1543
        %v1789 = vunpack.c.l.b16 %v1546
        %v1790 = vunpack.c.l.b16 %v1550
        %v1791 = vunpack.c.l.b16 %v1553
        %v1792 = vunpack.c.l.b16 %v1557
        %v1793 = vunpack.c.l.b16 %v1560
        %v1794 = vunpack.c.l.b16 %v1564
        %v1795 = vunpack.c.l.b16 %v1567
        %v1796 = vpack.c.b16 %v1765, %v1764
        %v1797 = vpack.c.b16 %v1767, %v1766
        %v1798 = vpack.c.b16 %v1769, %v1768
        %v1799 = vpack.c.b16 %v1771, %v1770
        %v1800 = vpack.c.b16 %v1773, %v1772
        %v1801 = vpack.c.b16 %v1775, %v1774
        %v1802 = vpack.c.b16 %v1777, %v1776
        %v1803 = vpack.c.b16 %v1779, %v1778
        %v1804 = vpack.c.b16 %v1781, %v1780
        %v1805 = vpack.c.b16 %v1783, %v1782
        %v1806 = vpack.c.b16 %v1785, %v1784
        %v1807 = vpack.c.b16 %v1787, %v1786
        %v1808 = vpack.c.b16 %v1789, %v1788
        %v1809 = vpack.c.b16 %v1791, %v1790
        %v1810 = vpack.c.b16 %v1793, %v1792
        %v1811 = vpack.c.b16 %v1795, %v1794
        %1812 = vrot.lane.b32.xlu0 %v1796, 8
        %v1813 = vpop.permute.xlu0 %1812
        %1814 = vrot.lane.b32.xlu0 %v1797, 8
        %v1815 = vpop.permute.xlu0 %1814
        %1816 = vrot.lane.b32.xlu0 %v1798, 8
        %v1817 = vpop.permute.xlu0 %1816
        %1818 = vrot.lane.b32.xlu0 %v1799, 8
        %v1819 = vpop.permute.xlu0 %1818
        %1820 = vrot.lane.b32.xlu0 %v1800, 8
        %v1821 = vpop.permute.xlu0 %1820
        %1822 = vrot.lane.b32.xlu0 %v1801, 8
        %v1823 = vpop.permute.xlu0 %1822
        %1824 = vrot.lane.b32.xlu0 %v1802, 8
        %v1825 = vpop.permute.xlu0 %1824
        %1826 = vrot.lane.b32.xlu0 %v1803, 8
        %v1827 = vpop.permute.xlu0 %1826
        %1828 = vrot.lane.b32.xlu0 %v1804, 8
        %v1829 = vpop.permute.xlu0 %1828
        %1830 = vrot.lane.b32.xlu0 %v1805, 8
        %v1831 = vpop.permute.xlu0 %1830
        %1832 = vrot.lane.b32.xlu0 %v1806, 8
        %v1833 = vpop.permute.xlu0 %1832
        %1834 = vrot.lane.b32.xlu0 %v1807, 8
        %v1835 = vpop.permute.xlu0 %1834
        %1836 = vrot.lane.b32.xlu0 %v1808, 8
        %v1837 = vpop.permute.xlu0 %1836
        %1838 = vrot.lane.b32.xlu0 %v1809, 8
        %v1839 = vpop.permute.xlu0 %1838
        %1840 = vrot.lane.b32.xlu0 %v1810, 8
        %v1841 = vpop.permute.xlu0 %1840
        %1842 = vrot.lane.b32.xlu0 %v1811, 8
        %v1843 = vpop.permute.xlu0 %1842
        %v1844 = vunpack.c.l.b16 %v1012
        %v1845 = vunpack.c.l.b16 %v1013
        %v1846 = vpack.c.b16 %v1845, %v1844
        %1847 = vrot.lane.b32.xlu0 %v1669, 12
        %v1848 = vpop.permute.xlu0 %1847
        %1849 = vrot.lane.b32.xlu0 %v1670, 12
        %v1850 = vpop.permute.xlu0 %1849
        %1851 = vrot.lane.b32.xlu0 %v1671, 12
        %v1852 = vpop.permute.xlu0 %1851
        %1853 = vrot.lane.b32.xlu0 %v1672, 12
        %v1854 = vpop.permute.xlu0 %1853
        %1855 = vrot.lane.b32.xlu0 %v1673, 12
        %v1856 = vpop.permute.xlu0 %1855
        %1857 = vrot.lane.b32.xlu0 %v1674, 12
        %v1858 = vpop.permute.xlu0 %1857
        %1859 = vrot.lane.b32.xlu0 %v1675, 12
        %v1860 = vpop.permute.xlu0 %1859
        %1861 = vrot.lane.b32.xlu0 %v1676, 12
        %v1862 = vpop.permute.xlu0 %1861
        %1863 = vrot.lane.b32.xlu0 %v1677, 12
        %v1864 = vpop.permute.xlu0 %1863
        %1865 = vrot.lane.b32.xlu0 %v1678, 12
        %v1866 = vpop.permute.xlu0 %1865
        %1867 = vrot.lane.b32.xlu0 %v1679, 12
        %v1868 = vpop.permute.xlu0 %1867
        %1869 = vrot.lane.b32.xlu0 %v1680, 12
        %v1870 = vpop.permute.xlu0 %1869
        %1871 = vrot.lane.b32.xlu0 %v1681, 12
        %v1872 = vpop.permute.xlu0 %1871
        %1873 = vrot.lane.b32.xlu0 %v1682, 12
        %v1874 = vpop.permute.xlu0 %1873
        %1875 = vrot.lane.b32.xlu0 %v1683, 12
        %v1876 = vpop.permute.xlu0 %1875
        %1877 = vrot.lane.b32.xlu0 %v1846, 12
        %v1878 = vpop.permute.xlu0 %1877
        %v1879 = vunpack.c.l.b16 %v1581
        %v1880 = vunpack.c.l.b16 %v1591
        %v1881 = vpack.c.b16 %v1880, %v1879
        %1882 = vrot.lane.b32.xlu0 %v1717, 16
        %v1883 = vpop.permute.xlu0 %1882
        %1884 = vrot.lane.b32.xlu0 %v1718, 16
        %v1885 = vpop.permute.xlu0 %1884
        %1886 = vrot.lane.b32.xlu0 %v1719, 16
        %v1887 = vpop.permute.xlu0 %1886
        %1888 = vrot.lane.b32.xlu0 %v1720, 16
        %v1889 = vpop.permute.xlu0 %1888
        %1890 = vrot.lane.b32.xlu0 %v1721, 16
        %v1891 = vpop.permute.xlu0 %1890
        %1892 = vrot.lane.b32.xlu0 %v1722, 16
        %v1893 = vpop.permute.xlu0 %1892
        %1894 = vrot.lane.b32.xlu0 %v1723, 16
        %v1895 = vpop.permute.xlu0 %1894
        %1896 = vrot.lane.b32.xlu0 %v1724, 16
        %v1897 = vpop.permute.xlu0 %1896
        %1898 = vrot.lane.b32.xlu0 %v1725, 16
        %v1899 = vpop.permute.xlu0 %1898
        %1900 = vrot.lane.b32.xlu0 %v1726, 16
        %v1901 = vpop.permute.xlu0 %1900
        %1902 = vrot.lane.b32.xlu0 %v1727, 16
        %v1903 = vpop.permute.xlu0 %1902
        %1904 = vrot.lane.b32.xlu0 %v1728, 16
        %v1905 = vpop.permute.xlu0 %1904
        %1906 = vrot.lane.b32.xlu0 %v1729, 16
        %v1907 = vpop.permute.xlu0 %1906
        %1908 = vrot.lane.b32.xlu0 %v1730, 16
        %v1909 = vpop.permute.xlu0 %1908
        %1910 = vrot.lane.b32.xlu0 %v1731, 16
        %v1911 = vpop.permute.xlu0 %1910
        %1912 = vrot.lane.b32.xlu0 %v1881, 16
        %v1913 = vpop.permute.xlu0 %1912
        %v1914 = vunpack.c.l.b16 %v1598
        %v1915 = vunpack.c.l.b16 %v1601
        %v1916 = vpack.c.b16 %v1915, %v1914
        %1917 = vrot.lane.b32.xlu0 %v1797, 20
        %v1918 = vpop.permute.xlu0 %1917
        %1919 = vrot.lane.b32.xlu0 %v1798, 20
        %v1920 = vpop.permute.xlu0 %1919
        %1921 = vrot.lane.b32.xlu0 %v1799, 20
        %v1922 = vpop.permute.xlu0 %1921
        %1923 = vrot.lane.b32.xlu0 %v1800, 20
        %v1924 = vpop.permute.xlu0 %1923
        %1925 = vrot.lane.b32.xlu0 %v1801, 20
        %v1926 = vpop.permute.xlu0 %1925
        %1927 = vrot.lane.b32.xlu0 %v1802, 20
        %v1928 = vpop.permute.xlu0 %1927
        %1929 = vrot.lane.b32.xlu0 %v1803, 20
        %v1930 = vpop.permute.xlu0 %1929
        %1931 = vrot.lane.b32.xlu0 %v1804, 20
        %v1932 = vpop.permute.xlu0 %1931
        %1933 = vrot.lane.b32.xlu0 %v1805, 20
        %v1934 = vpop.permute.xlu0 %1933
        %1935 = vrot.lane.b32.xlu0 %v1806, 20
        %v1936 = vpop.permute.xlu0 %1935
        %1937 = vrot.lane.b32.xlu0 %v1807, 20
        %v1938 = vpop.permute.xlu0 %1937
        %1939 = vrot.lane.b32.xlu0 %v1808, 20
        %v1940 = vpop.permute.xlu0 %1939
        %1941 = vrot.lane.b32.xlu0 %v1809, 20
        %v1942 = vpop.permute.xlu0 %1941
        %1943 = vrot.lane.b32.xlu0 %v1810, 20
        %v1944 = vpop.permute.xlu0 %1943
        %1945 = vrot.lane.b32.xlu0 %v1811, 20
        %v1946 = vpop.permute.xlu0 %1945
        %1947 = vrot.lane.b32.xlu0 %v1916, 20
        %v1948 = vpop.permute.xlu0 %1947
        %v1949 = vunpack.c.l.b16 %v1015
        %v1950 = vunpack.c.l.b16 %v1016
        %v1951 = vpack.c.b16 %v1950, %v1949
        %1952 = vrot.lane.b32.xlu0 %v1670, 24
        %v1953 = vpop.permute.xlu0 %1952
        %1954 = vrot.lane.b32.xlu0 %v1671, 24
        %v1955 = vpop.permute.xlu0 %1954
        %1956 = vrot.lane.b32.xlu0 %v1672, 24
        %v1957 = vpop.permute.xlu0 %1956
        %1958 = vrot.lane.b32.xlu0 %v1673, 24
        %v1959 = vpop.permute.xlu0 %1958
        %1960 = vrot.lane.b32.xlu0 %v1674, 24
        %v1961 = vpop.permute.xlu0 %1960
        %1962 = vrot.lane.b32.xlu0 %v1675, 24
        %v1963 = vpop.permute.xlu0 %1962
        %1964 = vrot.lane.b32.xlu0 %v1676, 24
        %v1965 = vpop.permute.xlu0 %1964
        %1966 = vrot.lane.b32.xlu0 %v1677, 24
        %v1967 = vpop.permute.xlu0 %1966
        %1968 = vrot.lane.b32.xlu0 %v1678, 24
        %v1969 = vpop.permute.xlu0 %1968
        %1970 = vrot.lane.b32.xlu0 %v1679, 24
        %v1971 = vpop.permute.xlu0 %1970
        %1972 = vrot.lane.b32.xlu0 %v1680, 24
        %v1973 = vpop.permute.xlu0 %1972
        %1974 = vrot.lane.b32.xlu0 %v1681, 24
        %v1975 = vpop.permute.xlu0 %1974
        %1976 = vrot.lane.b32.xlu0 %v1682, 24
        %v1977 = vpop.permute.xlu0 %1976
        %1978 = vrot.lane.b32.xlu0 %v1683, 24
        %v1979 = vpop.permute.xlu0 %1978
        %1980 = vrot.lane.b32.xlu0 %v1846, 24
        %v1981 = vpop.permute.xlu0 %1980
        %1982 = vrot.lane.b32.xlu0 %v1951, 24
        %v1983 = vpop.permute.xlu0 %1982
        %v1984 = vunpack.c.l.b16 %v1615
        %v1985 = vunpack.c.l.b16 %v1625
        %v1986 = vpack.c.b16 %v1985, %v1984
        %1987 = vrot.lane.b32.xlu0 %v1718, 28
        %v1988 = vpop.permute.xlu0 %1987
        %1989 = vrot.lane.b32.xlu0 %v1719, 28
        %v1990 = vpop.permute.xlu0 %1989
        %1991 = vrot.lane.b32.xlu0 %v1720, 28
        %v1992 = vpop.permute.xlu0 %1991
        %1993 = vrot.lane.b32.xlu0 %v1721, 28
        %v1994 = vpop.permute.xlu0 %1993
        %1995 = vrot.lane.b32.xlu0 %v1722, 28
        %v1996 = vpop.permute.xlu0 %1995
        %1997 = vrot.lane.b32.xlu0 %v1723, 28
        %v1998 = vpop.permute.xlu0 %1997
        %1999 = vrot.lane.b32.xlu0 %v1724, 28
        %v2000 = vpop.permute.xlu0 %1999
        %2001 = vrot.lane.b32.xlu0 %v1725, 28
        %v2002 = vpop.permute.xlu0 %2001
        %2003 = vrot.lane.b32.xlu0 %v1726, 28
        %v2004 = vpop.permute.xlu0 %2003
        %2005 = vrot.lane.b32.xlu0 %v1727, 28
        %v2006 = vpop.permute.xlu0 %2005
        %2007 = vrot.lane.b32.xlu0 %v1728, 28
        %v2008 = vpop.permute.xlu0 %2007
        %2009 = vrot.lane.b32.xlu0 %v1729, 28
        %v2010 = vpop.permute.xlu0 %2009
        %2011 = vrot.lane.b32.xlu0 %v1730, 28
        %v2012 = vpop.permute.xlu0 %2011
        %2013 = vrot.lane.b32.xlu0 %v1731, 28
        %v2014 = vpop.permute.xlu0 %2013
        %2015 = vrot.lane.b32.xlu0 %v1881, 28
        %v2016 = vpop.permute.xlu0 %2015
        %2017 = vrot.lane.b32.xlu0 %v1986, 28
        %v2018 = vpop.permute.xlu0 %2017
        %v2019 = vunpack.c.l.b16 %v1632
        %v2020 = vunpack.c.l.b16 %v1635
        %v2021 = vpack.c.b16 %v2020, %v2019
        %2022 = vrot.lane.b32.xlu0 %v1798, 32
        %v2023 = vpop.permute.xlu0 %2022
        %2024 = vrot.lane.b32.xlu0 %v1799, 32
        %v2025 = vpop.permute.xlu0 %2024
        %2026 = vrot.lane.b32.xlu0 %v1800, 32
        %v2027 = vpop.permute.xlu0 %2026
        %2028 = vrot.lane.b32.xlu0 %v1801, 32
        %v2029 = vpop.permute.xlu0 %2028
        %2030 = vrot.lane.b32.xlu0 %v1802, 32
        %v2031 = vpop.permute.xlu0 %2030
        %2032 = vrot.lane.b32.xlu0 %v1803, 32
        %v2033 = vpop.permute.xlu0 %2032
        %2034 = vrot.lane.b32.xlu0 %v1804, 32
        %v2035 = vpop.permute.xlu0 %2034
        %2036 = vrot.lane.b32.xlu0 %v1805, 32
        %v2037 = vpop.permute.xlu0 %2036
        %2038 = vrot.lane.b32.xlu0 %v1806, 32
        %v2039 = vpop.permute.xlu0 %2038
        %2040 = vrot.lane.b32.xlu0 %v1807, 32
        %v2041 = vpop.permute.xlu0 %2040
        %2042 = vrot.lane.b32.xlu0 %v1808, 32
        %v2043 = vpop.permute.xlu0 %2042
        %2044 = vrot.lane.b32.xlu0 %v1809, 32
        %v2045 = vpop.permute.xlu0 %2044
        %2046 = vrot.lane.b32.xlu0 %v1810, 32
        %v2047 = vpop.permute.xlu0 %2046
        %2048 = vrot.lane.b32.xlu0 %v1811, 32
        %v2049 = vpop.permute.xlu0 %2048
        %2050 = vrot.lane.b32.xlu0 %v1916, 32
        %v2051 = vpop.permute.xlu0 %2050
        %2052 = vrot.lane.b32.xlu0 %v2021, 32
        %v2053 = vpop.permute.xlu0 %2052
        %vm2054 = vcmask 31744
        %v2057 = vsel %vm2054, %v1668, %v1733
        %v2060 = vsel %vm2054, %v1669, %v1735
        %v2063 = vsel %vm2054, %v1670, %v1737
        %v2066 = vsel %vm2054, %v1671, %v1739
        %v2069 = vsel %vm2054, %v1672, %v1741
        %v2072 = vsel %vm2054, %v1673, %v1743
        %v2075 = vsel %vm2054, %v1674, %v1745
        %v2078 = vsel %vm2054, %v1675, %v1747
        %v2081 = vsel %vm2054, %v1676, %v1749
        %v2084 = vsel %vm2054, %v1677, %v1751
        %v2087 = vsel %vm2054, %v1678, %v1753
        %v2090 = vsel %vm2054, %v1679, %v1755
        %v2093 = vsel %vm2054, %v1680, %v1757
        %v2096 = vsel %vm2054, %v1681, %v1759
        %v2099 = vsel %vm2054, %v1682, %v1761
        %v2102 = vsel %vm2054, %v1683, %v1763
        %vm2103 = vcmask 64512
        %v2105 = vsel %vm2103, %v2057, %v1813
        %v2107 = vsel %vm2103, %v2060, %v1815
        %v2109 = vsel %vm2103, %v2063, %v1817
        %v2111 = vsel %vm2103, %v2066, %v1819
        %v2113 = vsel %vm2103, %v2069, %v1821
        %v2115 = vsel %vm2103, %v2072, %v1823
        %v2117 = vsel %vm2103, %v2075, %v1825
        %v2119 = vsel %vm2103, %v2078, %v1827
        %v2121 = vsel %vm2103, %v2081, %v1829
        %v2123 = vsel %vm2103, %v2084, %v1831
        %v2125 = vsel %vm2103, %v2087, %v1833
        %v2127 = vsel %vm2103, %v2090, %v1835
        %v2129 = vsel %vm2103, %v2093, %v1837
        %v2131 = vsel %vm2103, %v2096, %v1839
        %v2133 = vsel %vm2103, %v2099, %v1841
        %v2135 = vsel %vm2103, %v2102, %v1843
        %vm2136 = vcmask 97280
        %v2138 = vsel %vm2136, %v2105, %v1848
        %v2140 = vsel %vm2136, %v2107, %v1850
        %v2142 = vsel %vm2136, %v2109, %v1852
        %v2144 = vsel %vm2136, %v2111, %v1854
        %v2146 = vsel %vm2136, %v2113, %v1856
        %v2148 = vsel %vm2136, %v2115, %v1858
        %v2150 = vsel %vm2136, %v2117, %v1860
        %v2152 = vsel %vm2136, %v2119, %v1862
        %v2154 = vsel %vm2136, %v2121, %v1864
        %v2156 = vsel %vm2136, %v2123, %v1866
        %v2158 = vsel %vm2136, %v2125, %v1868
        %v2160 = vsel %vm2136, %v2127, %v1870
        %v2162 = vsel %vm2136, %v2129, %v1872
        %v2164 = vsel %vm2136, %v2131, %v1874
        %v2166 = vsel %vm2136, %v2133, %v1876
        %v2168 = vsel %vm2136, %v2135, %v1878
        %vm2169 = vcmask 130048
        %v2171 = vsel %vm2169, %v2138, %v1883
        %v2173 = vsel %vm2169, %v2140, %v1885
        %v2175 = vsel %vm2169, %v2142, %v1887
        %v2177 = vsel %vm2169, %v2144, %v1889
        %v2179 = vsel %vm2169, %v2146, %v1891
        %v2181 = vsel %vm2169, %v2148, %v1893
        %v2183 = vsel %vm2169, %v2150, %v1895
        %v2185 = vsel %vm2169, %v2152, %v1897
        %v2187 = vsel %vm2169, %v2154, %v1899
        %v2189 = vsel %vm2169, %v2156, %v1901
        %v2191 = vsel %vm2169, %v2158, %v1903
        %v2193 = vsel %vm2169, %v2160, %v1905
        %v2195 = vsel %vm2169, %v2162, %v1907
        %v2197 = vsel %vm2169, %v2164, %v1909
        %v2199 = vsel %vm2169, %v2166, %v1911
        %v2201 = vsel %vm2169, %v2168, %v1913
        %vm2202 = vcmask 162816
        %v2204 = vsel %vm2202, %v2171, %v1918
        %v2206 = vsel %vm2202, %v2173, %v1920
        %v2208 = vsel %vm2202, %v2175, %v1922
        %v2210 = vsel %vm2202, %v2177, %v1924
        %v2212 = vsel %vm2202, %v2179, %v1926
        %v2214 = vsel %vm2202, %v2181, %v1928
        %v2216 = vsel %vm2202, %v2183, %v1930
        %v2218 = vsel %vm2202, %v2185, %v1932
        %v2220 = vsel %vm2202, %v2187, %v1934
        %v2222 = vsel %vm2202, %v2189, %v1936
        %v2224 = vsel %vm2202, %v2191, %v1938
        %v2226 = vsel %vm2202, %v2193, %v1940
        %v2228 = vsel %vm2202, %v2195, %v1942
        %v2230 = vsel %vm2202, %v2197, %v1944
        %v2232 = vsel %vm2202, %v2199, %v1946
        %v2234 = vsel %vm2202, %v2201, %v1948
        %vm2235 = vcmask 195584
        %v2237 = vsel %vm2235, %v2204, %v1953
        %v2239 = vsel %vm2235, %v2206, %v1955
        %v2241 = vsel %vm2235, %v2208, %v1957
        %v2243 = vsel %vm2235, %v2210, %v1959
        %v2245 = vsel %vm2235, %v2212, %v1961
        %v2247 = vsel %vm2235, %v2214, %v1963
        %v2249 = vsel %vm2235, %v2216, %v1965
        %v2251 = vsel %vm2235, %v2218, %v1967
        %v2253 = vsel %vm2235, %v2220, %v1969
        %v2255 = vsel %vm2235, %v2222, %v1971
        %v2257 = vsel %vm2235, %v2224, %v1973
        %v2259 = vsel %vm2235, %v2226, %v1975
        %v2261 = vsel %vm2235, %v2228, %v1977
        %v2263 = vsel %vm2235, %v2230, %v1979
        %v2265 = vsel %vm2235, %v2232, %v1981
        %v2267 = vsel %vm2235, %v2234, %v1983
        %vm2268 = vcmask 228352
        %v2270 = vsel %vm2268, %v2237, %v1988
        %v2272 = vsel %vm2268, %v2239, %v1990
        %v2274 = vsel %vm2268, %v2241, %v1992
        %v2276 = vsel %vm2268, %v2243, %v1994
        %v2278 = vsel %vm2268, %v2245, %v1996
        %v2280 = vsel %vm2268, %v2247, %v1998
        %v2282 = vsel %vm2268, %v2249, %v2000
        %v2284 = vsel %vm2268, %v2251, %v2002
        %v2286 = vsel %vm2268, %v2253, %v2004
        %v2288 = vsel %vm2268, %v2255, %v2006
        %v2290 = vsel %vm2268, %v2257, %v2008
        %v2292 = vsel %vm2268, %v2259, %v2010
        %v2294 = vsel %vm2268, %v2261, %v2012
        %v2296 = vsel %vm2268, %v2263, %v2014
        %v2298 = vsel %vm2268, %v2265, %v2016
        %v2300 = vsel %vm2268, %v2267, %v2018
        %vm2301 = vcmask 261120
        %v2303 = vsel %vm2301, %v2270, %v2023
        %v2305 = vsel %vm2301, %v2272, %v2025
        %v2307 = vsel %vm2301, %v2274, %v2027
        %v2309 = vsel %vm2301, %v2276, %v2029
        %v2311 = vsel %vm2301, %v2278, %v2031
        %v2313 = vsel %vm2301, %v2280, %v2033
        %v2315 = vsel %vm2301, %v2282, %v2035
        %v2317 = vsel %vm2301, %v2284, %v2037
        %v2319 = vsel %vm2301, %v2286, %v2039
        %v2321 = vsel %vm2301, %v2288, %v2041
        %v2323 = vsel %vm2301, %v2290, %v2043
        %v2325 = vsel %vm2301, %v2292, %v2045
        %v2327 = vsel %vm2301, %v2294, %v2047
        %v2329 = vsel %vm2301, %v2296, %v2049
        %v2331 = vsel %vm2301, %v2298, %v2051
        %v2333 = vsel %vm2301, %v2300, %v2053
        %v2334 = vld [vmem:[%s1] sm:$0xf]
        %v2335 = vld [vmem:[%s1 + $0x4] sm:$0xf]
        %v2336 = vld [vmem:[%s1 + $0x8] sm:$0xf]
        %v2337 = vld [vmem:[%s1 + $0xc] sm:$0xf]
        %v2338 = vld [vmem:[%s1 + $0x10] sm:$0x3]
        %v2344 = vunpack.c.l.b16 %v2334
        %v2345 = vunpack.c.l.b16 %v2335
        %v2346 = vunpack.c.l.b16 %v2336
        %v2347 = vunpack.c.l.b16 %v2337
        %v2348 = vunpack.c.l.b16 %v2338
        %v2349 = vpack.c.b16 %v2345, %v2344
        %v2350 = vpack.c.b16 %v2347, %v2346
        %v2351 = vpack.c.b16 %v2348, %v2348
        %vm2354 = vcmask 293888
        %v2355 = vsel %vm2354, %v2303, 0
        %v2357 = vsel %vm2354, %v2305, 0
        %v2359 = vsel %vm2354, %v2307, 0
        %v2361 = vsel %vm2354, %v2309, 0
        %v2363 = vsel %vm2354, %v2311, 0
        %v2365 = vsel %vm2354, %v2313, 0
        %v2367 = vsel %vm2354, %v2315, 0
        %v2369 = vsel %vm2354, %v2317, 0
        %v2371 = vsel %vm2354, %v2319, 0
        %v2373 = vsel %vm2354, %v2321, 0
        %v2375 = vsel %vm2354, %v2323, 0
        %v2377 = vsel %vm2354, %v2325, 0
        %v2379 = vsel %vm2354, %v2327, 0
        %v2381 = vsel %vm2354, %v2329, 0
        %v2383 = vsel %vm2354, %v2331, 0
        %v2385 = vsel %vm2354, %v2333, 0
        %vm2387 = vcmask 1041408
        %v2389 = vsel %vm2387, %v2351, 0
        %2391 = vmatprep.subr.bf16.mxu0 0
        %2392 = vmatpush1.bf16.msra.mxu0 %v2349
        %2393 = vmatprep.subr.bf16.mxu0 0
        %2394 = vmatpush1.bf16.msra.mxu0 %v2350
        %2395 = vmatprep.subr.bf16.mxu0 0
        %2396 = vmatpush1.bf16.msra.mxu0 %v2389
        %2397 = vmatprep.subr.bf16.mxu0 0
        %2398 = vmatpush1.bf16.msra.mxu0 0
        %2399 = vmatprep.subr.bf16.mxu0 0
        %2400 = vmatpush1.bf16.msra.mxu0 0
        %2401 = vmatprep.subr.bf16.mxu0 0
        %2402 = vmatpush1.bf16.msra.mxu0 0
        %2403 = vmatprep.subr.bf16.mxu0 0
        %2404 = vmatpush1.bf16.msra.mxu0 0
        %2405 = vmatprep.subr.bf16.mxu0 0
        %2406 = vmatpush1.bf16.msra.mxu0 0
        %2407 = vmatprep.subr.bf16.mxu0 0
        %2408 = vmatpush1.bf16.msra.mxu0 0
        %2409 = vmatprep.subr.bf16.mxu0 0
        %2410 = vmatpush1.bf16.msra.mxu0 0
        %2411 = vmatprep.subr.bf16.mxu0 0
        %2412 = vmatpush1.bf16.msra.mxu0 0
        %2413 = vmatprep.subr.bf16.mxu0 0
        %2414 = vmatpush1.bf16.msra.mxu0 0
        %2415 = vmatprep.subr.bf16.mxu0 0
        %2416 = vmatpush1.bf16.msra.mxu0 0
        %2417 = vmatprep.subr.bf16.mxu0 0
        %2418 = vmatpush1.bf16.msra.mxu0 0
        %2419 = vmatprep.subr.bf16.mxu0 0
        %2420 = vmatpush1.bf16.msra.mxu0 0
        %2421 = vmatprep.subr.bf16.mxu0 0
        %2422 = vmatpush1.bf16.msra.mxu0 0
        %2423 = vmatprep.mubr.bf16.mxu0 0
        %2424 = vmatmul.mubr.bf16.gmra.mrb[0].mxu0 %v2355
        %v2425 = vpop.f32.mrb[0].mxu0
        %v2426 = vadd.f32 0.0, %v2425
        %v2427 = vpop.f32.mrb[0].mxu0
        %v2428 = vpop.f32.mrb[0].mxu0
        %v2429 = vadd.f32 0.0, %v2428
        %v2430 = vpop.f32.mrb[0].mxu0
        %2431 = vmatprep.mubr.bf16.mxu0 0
        %2432 = vmatmul.mubr.bf16.gmra.mrb[0].mxu0 %v2357
        %v2433 = vpop.f32.mrb[0].mxu0
        %v2434 = vadd.f32 0.0, %v2433
        %v2435 = vpop.f32.mrb[0].mxu0
        %v2436 = vpop.f32.mrb[0].mxu0
        %v2437 = vadd.f32 0.0, %v2436
        %v2438 = vpop.f32.mrb[0].mxu0
        %2439 = vmatprep.mubr.bf16.mxu0 0
        %2440 = vmatmul.mubr.bf16.gmra.mrb[0].mxu0 %v2359
        %v2441 = vpop.f32.mrb[0].mxu0
        %v2442 = vadd.f32 0.0, %v2441
        %v2443 = vpop.f32.mrb[0].mxu0
        %v2444 = vpop.f32.mrb[0].mxu0
        %v2445 = vadd.f32 0.0, %v2444
        %v2446 = vpop.f32.mrb[0].mxu0
        %2447 = vmatprep.mubr.bf16.mxu0 0
        %2448 = vmatmul.mubr.bf16.gmra.mrb[0].mxu0 %v2361
        %v2449 = vpop.f32.mrb[0].mxu0
        %v2450 = vadd.f32 0.0, %v2449
        %v2451 = vpop.f32.mrb[0].mxu0
        %v2452 = vpop.f32.mrb[0].mxu0
        %v2453 = vadd.f32 0.0, %v2452
        %v2454 = vpop.f32.mrb[0].mxu0
        %2455 = vmatprep.mubr.bf16.mxu0 0
        %2456 = vmatmul.mubr.bf16.gmra.mrb[0].mxu0 %v2363
        %v2457 = vpop.f32.mrb[0].mxu0
        %v2458 = vadd.f32 0.0, %v2457
        %v2459 = vpop.f32.mrb[0].mxu0
        %v2460 = vpop.f32.mrb[0].mxu0
        %v2461 = vadd.f32 0.0, %v2460
        %v2462 = vpop.f32.mrb[0].mxu0
        %2463 = vmatprep.mubr.bf16.mxu0 0
        %2464 = vmatmul.mubr.bf16.gmra.mrb[0].mxu0 %v2365
        %v2465 = vpop.f32.mrb[0].mxu0
        %v2466 = vadd.f32 0.0, %v2465
        %v2467 = vpop.f32.mrb[0].mxu0
        %v2468 = vpop.f32.mrb[0].mxu0
        %v2469 = vadd.f32 0.0, %v2468
        %v2470 = vpop.f32.mrb[0].mxu0
        %2471 = vmatprep.mubr.bf16.mxu0 0
        %2472 = vmatmul.mubr.bf16.gmra.mrb[0].mxu0 %v2367
        %v2473 = vpop.f32.mrb[0].mxu0
        %v2474 = vadd.f32 0.0, %v2473
        %v2475 = vpop.f32.mrb[0].mxu0
        %v2476 = vpop.f32.mrb[0].mxu0
        %v2477 = vadd.f32 0.0, %v2476
        %v2478 = vpop.f32.mrb[0].mxu0
        %2479 = vmatprep.mubr.bf16.mxu0 0
        %2480 = vmatmul.mubr.bf16.gmra.mrb[0].mxu0 %v2369
        %v2481 = vpop.f32.mrb[0].mxu0
        %v2482 = vadd.f32 0.0, %v2481
        %v2483 = vpop.f32.mrb[0].mxu0
        %v2484 = vpop.f32.mrb[0].mxu0
        %v2485 = vadd.f32 0.0, %v2484
        %v2486 = vpop.f32.mrb[0].mxu0
        %2487 = vmatprep.mubr.bf16.mxu0 0
        %2488 = vmatmul.mubr.bf16.gmra.mrb[0].mxu0 %v2371
        %v2489 = vpop.f32.mrb[0].mxu0
        %v2490 = vadd.f32 0.0, %v2489
        %v2491 = vpop.f32.mrb[0].mxu0
        %v2492 = vpop.f32.mrb[0].mxu0
        %v2493 = vadd.f32 0.0, %v2492
        %v2494 = vpop.f32.mrb[0].mxu0
        %2495 = vmatprep.mubr.bf16.mxu0 0
        %2496 = vmatmul.mubr.bf16.gmra.mrb[0].mxu0 %v2373
        %v2497 = vpop.f32.mrb[0].mxu0
        %v2498 = vadd.f32 0.0, %v2497
        %v2499 = vpop.f32.mrb[0].mxu0
        %v2500 = vpop.f32.mrb[0].mxu0
        %v2501 = vadd.f32 0.0, %v2500
        %v2502 = vpop.f32.mrb[0].mxu0
        %2503 = vmatprep.mubr.bf16.mxu0 0
        %2504 = vmatmul.mubr.bf16.gmra.mrb[0].mxu0 %v2375
        %v2505 = vpop.f32.mrb[0].mxu0
        %v2506 = vadd.f32 0.0, %v2505
        %v2507 = vpop.f32.mrb[0].mxu0
        %v2508 = vpop.f32.mrb[0].mxu0
        %v2509 = vadd.f32 0.0, %v2508
        %v2510 = vpop.f32.mrb[0].mxu0
        %2511 = vmatprep.mubr.bf16.mxu0 0
        %2512 = vmatmul.mubr.bf16.gmra.mrb[0].mxu0 %v2377
        %v2513 = vpop.f32.mrb[0].mxu0
        %v2514 = vadd.f32 0.0, %v2513
        %v2515 = vpop.f32.mrb[0].mxu0
        %v2516 = vpop.f32.mrb[0].mxu0
        %v2517 = vadd.f32 0.0, %v2516
        %v2518 = vpop.f32.mrb[0].mxu0
        %2519 = vmatprep.mubr.bf16.mxu0 0
        %2520 = vmatmul.mubr.bf16.gmra.mrb[0].mxu0 %v2379
        %v2521 = vpop.f32.mrb[0].mxu0
        %v2522 = vadd.f32 0.0, %v2521
        %v2523 = vpop.f32.mrb[0].mxu0
        %v2524 = vpop.f32.mrb[0].mxu0
        %v2525 = vadd.f32 0.0, %v2524
        %v2526 = vpop.f32.mrb[0].mxu0
        %2527 = vmatprep.mubr.bf16.mxu0 0
        %2528 = vmatmul.mubr.bf16.gmra.mrb[0].mxu0 %v2381
        %v2529 = vpop.f32.mrb[0].mxu0
        %v2530 = vadd.f32 0.0, %v2529
        %v2531 = vpop.f32.mrb[0].mxu0
        %v2532 = vpop.f32.mrb[0].mxu0
        %v2533 = vadd.f32 0.0, %v2532
        %v2534 = vpop.f32.mrb[0].mxu0
        %2535 = vmatprep.mubr.bf16.mxu0 0
        %2536 = vmatmul.mubr.bf16.gmra.mrb[0].mxu0 %v2383
        %v2537 = vpop.f32.mrb[0].mxu0
        %v2538 = vadd.f32 0.0, %v2537
        %v2539 = vpop.f32.mrb[0].mxu0
        %v2540 = vpop.f32.mrb[0].mxu0
        %v2541 = vadd.f32 0.0, %v2540
        %v2542 = vpop.f32.mrb[0].mxu0
        %2543 = vmatprep.mubr.bf16.mxu0 0
        %2544 = vmatmul.mubr.bf16.gmra.mrb[0].mxu0 %v2385
        %v2545 = vpop.f32.mrb[0].mxu0
        %v2546 = vadd.f32 0.0, %v2545
        %v2547 = vpop.f32.mrb[0].mxu0
        %v2548 = vpop.f32.mrb[0].mxu0
        %v2549 = vadd.f32 0.0, %v2548
        %v2550 = vpop.f32.mrb[0].mxu0
        %2551 = vdwg.mxu0
        %v2552 = vld [vmem:[%s3] sm:$0x1]
        %v2554 = vlaneseq
        %v2555 = vshrl.u32 %v2554, 7
        %v2556 = vsub.s32 0, %v2555
        %v2557 = vrot.slane %v2552, %v2556
        %v2559 = vmul.f32 %v2426, %v2557
        %v2560 = vmul.f32 %v2429, %v2557
        %v2561 = vmul.f32 %v2434, %v2557
        %v2562 = vmul.f32 %v2437, %v2557
        %v2563 = vmul.f32 %v2442, %v2557
        %v2564 = vmul.f32 %v2445, %v2557
        %v2565 = vmul.f32 %v2450, %v2557
        %v2566 = vmul.f32 %v2453, %v2557
        %v2567 = vmul.f32 %v2458, %v2557
        %v2568 = vmul.f32 %v2461, %v2557
        %v2569 = vmul.f32 %v2466, %v2557
        %v2570 = vmul.f32 %v2469, %v2557
        %v2571 = vmul.f32 %v2474, %v2557
        %v2572 = vmul.f32 %v2477, %v2557
        %v2573 = vmul.f32 %v2482, %v2557
        %v2574 = vmul.f32 %v2485, %v2557
        %v2575 = vmul.f32 %v2490, %v2557
        %v2576 = vmul.f32 %v2493, %v2557
        %v2577 = vmul.f32 %v2498, %v2557
        %v2578 = vmul.f32 %v2501, %v2557
        %v2579 = vmul.f32 %v2506, %v2557
        %v2580 = vmul.f32 %v2509, %v2557
        %v2581 = vmul.f32 %v2514, %v2557
        %v2582 = vmul.f32 %v2517, %v2557
        %v2583 = vmul.f32 %v2522, %v2557
        %v2584 = vmul.f32 %v2525, %v2557
        %v2585 = vmul.f32 %v2530, %v2557
        %v2586 = vmul.f32 %v2533, %v2557
        %v2587 = vmul.f32 %v2538, %v2557
        %v2588 = vmul.f32 %v2541, %v2557
        %v2589 = vmul.f32 %v2546, %v2557
        %v2590 = vmul.f32 %v2549, %v2557
        %v2591 = vld [vmem:[%s4] sm:$0x1]
        %v2593 = vlaneseq
        %v2594 = vshrl.u32 %v2593, 7
        %v2595 = vsub.s32 0, %v2594
        %v2596 = vrot.slane %v2591, %v2595
        %v2598 = vadd.f32 %v2559, %v2596
        %v2599 = vadd.f32 %v2560, %v2596
        %v2600 = vadd.f32 %v2561, %v2596
        %v2601 = vadd.f32 %v2562, %v2596
        %v2602 = vadd.f32 %v2563, %v2596
        %v2603 = vadd.f32 %v2564, %v2596
        %v2604 = vadd.f32 %v2565, %v2596
        %v2605 = vadd.f32 %v2566, %v2596
        %v2606 = vadd.f32 %v2567, %v2596
        %v2607 = vadd.f32 %v2568, %v2596
        %v2608 = vadd.f32 %v2569, %v2596
        %v2609 = vadd.f32 %v2570, %v2596
        %v2610 = vadd.f32 %v2571, %v2596
        %v2611 = vadd.f32 %v2572, %v2596
        %v2612 = vadd.f32 %v2573, %v2596
        %v2613 = vadd.f32 %v2574, %v2596
        %v2614 = vadd.f32 %v2575, %v2596
        %v2615 = vadd.f32 %v2576, %v2596
        %v2616 = vadd.f32 %v2577, %v2596
        %v2617 = vadd.f32 %v2578, %v2596
        %v2618 = vadd.f32 %v2579, %v2596
        %v2619 = vadd.f32 %v2580, %v2596
        %v2620 = vadd.f32 %v2581, %v2596
        %v2621 = vadd.f32 %v2582, %v2596
        %v2622 = vadd.f32 %v2583, %v2596
        %v2623 = vadd.f32 %v2584, %v2596
        %v2624 = vadd.f32 %v2585, %v2596
        %v2625 = vadd.f32 %v2586, %v2596
        %v2626 = vadd.f32 %v2587, %v2596
        %v2627 = vadd.f32 %v2588, %v2596
        %v2628 = vadd.f32 %v2589, %v2596
        %v2629 = vadd.f32 %v2590, %v2596
        %v2630 = vmax.f32 %v2598, 0.0
        %v2631 = vmax.f32 %v2599, 0.0
        %v2632 = vmax.f32 %v2600, 0.0
        %v2633 = vmax.f32 %v2601, 0.0
        %v2634 = vmax.f32 %v2602, 0.0
        %v2635 = vmax.f32 %v2603, 0.0
        %v2636 = vmax.f32 %v2604, 0.0
        %v2637 = vmax.f32 %v2605, 0.0
        %v2638 = vmax.f32 %v2606, 0.0
        %v2639 = vmax.f32 %v2607, 0.0
        %v2640 = vmax.f32 %v2608, 0.0
        %v2641 = vmax.f32 %v2609, 0.0
        %v2642 = vmax.f32 %v2610, 0.0
        %v2643 = vmax.f32 %v2611, 0.0
        %v2644 = vmax.f32 %v2612, 0.0
        %v2645 = vmax.f32 %v2613, 0.0
        %v2646 = vmax.f32 %v2614, 0.0
        %v2647 = vmax.f32 %v2615, 0.0
        %v2648 = vmax.f32 %v2616, 0.0
        %v2649 = vmax.f32 %v2617, 0.0
        %v2650 = vmax.f32 %v2618, 0.0
        %v2651 = vmax.f32 %v2619, 0.0
        %v2652 = vmax.f32 %v2620, 0.0
        %v2653 = vmax.f32 %v2621, 0.0
        %v2654 = vmax.f32 %v2622, 0.0
        %v2655 = vmax.f32 %v2623, 0.0
        %v2656 = vmax.f32 %v2624, 0.0
        %v2657 = vmax.f32 %v2625, 0.0
        %v2658 = vmax.f32 %v2626, 0.0
        %v2659 = vmax.f32 %v2627, 0.0
        %v2660 = vmax.f32 %v2628, 0.0
        %v2661 = vmax.f32 %v2629, 0.0
        %v2662 = vpack.c.bf16 %v2631, %v2630
        %v2663 = vpack.c.bf16 %v2633, %v2632
        %v2664 = vpack.c.bf16 %v2635, %v2634
        %v2665 = vpack.c.bf16 %v2637, %v2636
        %v2666 = vpack.c.bf16 %v2639, %v2638
        %v2667 = vpack.c.bf16 %v2641, %v2640
        %v2668 = vpack.c.bf16 %v2643, %v2642
        %v2669 = vpack.c.bf16 %v2645, %v2644
        %v2670 = vpack.c.bf16 %v2647, %v2646
        %v2671 = vpack.c.bf16 %v2649, %v2648
        %v2672 = vpack.c.bf16 %v2651, %v2650
        %v2673 = vpack.c.bf16 %v2653, %v2652
        %v2674 = vpack.c.bf16 %v2655, %v2654
        %v2675 = vpack.c.bf16 %v2657, %v2656
        %v2676 = vpack.c.bf16 %v2659, %v2658
        %v2677 = vpack.c.bf16 %v2661, %v2660
        %v2694 = vunpack.c.l.b16 %v2662
        %v2695 = vunpack.c.h.b16 %v2662
        %v2696 = vunpack.c.l.b16 %v2663
        %v2697 = vunpack.c.h.b16 %v2663
        %v2698 = vunpack.c.l.b16 %v2664
        %v2699 = vunpack.c.h.b16 %v2664
        %v2700 = vunpack.c.l.b16 %v2665
        %v2701 = vunpack.c.h.b16 %v2665
        %v2702 = vunpack.c.l.b16 %v2666
        %v2703 = vunpack.c.h.b16 %v2666
        %v2704 = vunpack.c.l.b16 %v2667
        %v2705 = vunpack.c.h.b16 %v2667
        %v2706 = vunpack.c.l.b16 %v2668
        %v2707 = vunpack.c.h.b16 %v2668
        %v2708 = vunpack.c.l.b16 %v2669
        %v2709 = vunpack.c.h.b16 %v2669
        %v2710 = vunpack.c.l.b16 %v2670
        %v2711 = vunpack.c.h.b16 %v2670
        %v2712 = vunpack.c.l.b16 %v2671
        %v2713 = vunpack.c.h.b16 %v2671
        %v2714 = vunpack.c.l.b16 %v2672
        %v2715 = vunpack.c.h.b16 %v2672
        %v2716 = vunpack.c.l.b16 %v2673
        %v2717 = vunpack.c.h.b16 %v2673
        %v2718 = vunpack.c.l.b16 %v2674
        %v2719 = vunpack.c.h.b16 %v2674
        %v2720 = vunpack.c.l.b16 %v2675
        %v2721 = vunpack.c.h.b16 %v2675
        %v2722 = vunpack.c.l.b16 %v2676
        %v2723 = vunpack.c.h.b16 %v2676
        %v2724 = vunpack.c.l.b16 %v2677
        %v2725 = vunpack.c.h.b16 %v2677
        %v2726 = vpack.c.b16 %v2694, %v2694
        %v2727 = vpack.c.b16 %v2695, %v2695
        %v2728 = vpack.c.b16 %v2696, %v2696
        %v2729 = vpack.c.b16 %v2697, %v2697
        %v2730 = vpack.c.b16 %v2698, %v2698
        %v2731 = vpack.c.b16 %v2699, %v2699
        %v2732 = vpack.c.b16 %v2700, %v2700
        %v2733 = vpack.c.b16 %v2701, %v2701
        %v2734 = vpack.c.b16 %v2702, %v2702
        %v2735 = vpack.c.b16 %v2703, %v2703
        %v2736 = vpack.c.b16 %v2704, %v2704
        %v2737 = vpack.c.b16 %v2705, %v2705
        %v2738 = vpack.c.b16 %v2706, %v2706
        %v2739 = vpack.c.b16 %v2707, %v2707
        %v2740 = vpack.c.b16 %v2708, %v2708
        %v2741 = vpack.c.b16 %v2709, %v2709
        %v2742 = vpack.c.b16 %v2710, %v2710
        %v2743 = vpack.c.b16 %v2711, %v2711
        %v2744 = vpack.c.b16 %v2712, %v2712
        %v2745 = vpack.c.b16 %v2713, %v2713
        %v2746 = vpack.c.b16 %v2714, %v2714
        %v2747 = vpack.c.b16 %v2715, %v2715
        %v2748 = vpack.c.b16 %v2716, %v2716
        %v2749 = vpack.c.b16 %v2717, %v2717
        %v2750 = vpack.c.b16 %v2718, %v2718
        %v2751 = vpack.c.b16 %v2719, %v2719
        %v2752 = vpack.c.b16 %v2720, %v2720
        %v2753 = vpack.c.b16 %v2721, %v2721
        %v2754 = vpack.c.b16 %v2722, %v2722
        %v2755 = vpack.c.b16 %v2723, %v2723
        %v2756 = vpack.c.b16 %v2724, %v2724
        %v2757 = vpack.c.b16 %v2725, %v2725
        %v2759 = vshrl.u32 %v2726, 16
        %v2761 = vrot.slane %v2759, 7
        %v2762 = vshll.u32 %v2726, 16
        %v2764 = vor.u32 %v2761, %v2762
        %v2765 = vrot.slane %v2761, 4
        %v2767 = vshrl.u32 %v2727, 16
        %v2769 = vrot.slane %v2767, 7
        %v2770 = vshll.u32 %v2727, 16
        %v2772 = vor.u32 %v2769, %v2770
        %v2773 = vsel %vm524, %v2765, %v2772
        %v2774 = vrot.slane %v2769, 4
        %v2776 = vshrl.u32 %v2728, 16
        %v2778 = vrot.slane %v2776, 7
        %v2779 = vshll.u32 %v2728, 16
        %v2781 = vor.u32 %v2778, %v2779
        %v2782 = vrot.slane %v2778, 4
        %v2784 = vshrl.u32 %v2729, 16
        %v2786 = vrot.slane %v2784, 7
        %v2787 = vshll.u32 %v2729, 16
        %v2789 = vor.u32 %v2786, %v2787
        %v2790 = vsel %vm524, %v2782, %v2789
        %v2791 = vrot.slane %v2786, 4
        %v2793 = vshrl.u32 %v2730, 16
        %v2795 = vrot.slane %v2793, 7
        %v2796 = vshll.u32 %v2730, 16
        %v2798 = vor.u32 %v2795, %v2796
        %v2799 = vrot.slane %v2795, 4
        %v2801 = vshrl.u32 %v2731, 16
        %v2803 = vrot.slane %v2801, 7
        %v2804 = vshll.u32 %v2731, 16
        %v2806 = vor.u32 %v2803, %v2804
        %v2807 = vsel %vm524, %v2799, %v2806
        %v2808 = vrot.slane %v2803, 4
        %v2810 = vshrl.u32 %v2732, 16
        %v2812 = vrot.slane %v2810, 7
        %v2813 = vshll.u32 %v2732, 16
        %v2815 = vor.u32 %v2812, %v2813
        %v2816 = vrot.slane %v2812, 4
        %v2818 = vshrl.u32 %v2733, 16
        %v2820 = vrot.slane %v2818, 7
        %v2821 = vshll.u32 %v2733, 16
        %v2823 = vor.u32 %v2820, %v2821
        %v2824 = vsel %vm524, %v2816, %v2823
        %v2825 = vrot.slane %v2820, 4
        %v2827 = vshrl.u32 %v2734, 16
        %v2829 = vrot.slane %v2827, 7
        %v2830 = vshll.u32 %v2734, 16
        %v2832 = vor.u32 %v2829, %v2830
        %v2833 = vrot.slane %v2829, 4
        %v2835 = vshrl.u32 %v2735, 16
        %v2837 = vrot.slane %v2835, 7
        %v2838 = vshll.u32 %v2735, 16
        %v2840 = vor.u32 %v2837, %v2838
        %v2841 = vsel %vm524, %v2833, %v2840
        %v2842 = vrot.slane %v2837, 4
        %v2844 = vshrl.u32 %v2736, 16
        %v2846 = vrot.slane %v2844, 7
        %v2847 = vshll.u32 %v2736, 16
        %v2849 = vor.u32 %v2846, %v2847
        %v2850 = vrot.slane %v2846, 4
        %v2852 = vshrl.u32 %v2737, 16
        %v2854 = vrot.slane %v2852, 7
        %v2855 = vshll.u32 %v2737, 16
        %v2857 = vor.u32 %v2854, %v2855
        %v2858 = vsel %vm524, %v2850, %v2857
        %v2859 = vrot.slane %v2854, 4
        %v2861 = vshrl.u32 %v2738, 16
        %v2863 = vrot.slane %v2861, 7
        %v2864 = vshll.u32 %v2738, 16
        %v2866 = vor.u32 %v2863, %v2864
        %v2867 = vrot.slane %v2863, 4
        %v2869 = vshrl.u32 %v2739, 16
        %v2871 = vrot.slane %v2869, 7
        %v2872 = vshll.u32 %v2739, 16
        %v2874 = vor.u32 %v2871, %v2872
        %v2875 = vsel %vm524, %v2867, %v2874
        %v2876 = vrot.slane %v2871, 4
        %v2878 = vshrl.u32 %v2740, 16
        %v2880 = vrot.slane %v2878, 7
        %v2881 = vshll.u32 %v2740, 16
        %v2883 = vor.u32 %v2880, %v2881
        %v2884 = vrot.slane %v2880, 4
        %v2886 = vshrl.u32 %v2741, 16
        %v2888 = vrot.slane %v2886, 7
        %v2889 = vshll.u32 %v2741, 16
        %v2891 = vor.u32 %v2888, %v2889
        %v2892 = vsel %vm524, %v2884, %v2891
        %v2893 = vrot.slane %v2888, 4
        %v2895 = vshrl.u32 %v2742, 16
        %v2897 = vrot.slane %v2895, 7
        %v2898 = vshll.u32 %v2742, 16
        %v2900 = vor.u32 %v2897, %v2898
        %v2901 = vrot.slane %v2897, 4
        %v2903 = vshrl.u32 %v2743, 16
        %v2905 = vrot.slane %v2903, 7
        %v2906 = vshll.u32 %v2743, 16
        %v2908 = vor.u32 %v2905, %v2906
        %v2909 = vsel %vm524, %v2901, %v2908
        %v2910 = vrot.slane %v2905, 4
        %v2912 = vshrl.u32 %v2744, 16
        %v2914 = vrot.slane %v2912, 7
        %v2915 = vshll.u32 %v2744, 16
        %v2917 = vor.u32 %v2914, %v2915
        %v2918 = vrot.slane %v2914, 4
        %v2920 = vshrl.u32 %v2745, 16
        %v2922 = vrot.slane %v2920, 7
        %v2923 = vshll.u32 %v2745, 16
        %v2925 = vor.u32 %v2922, %v2923
        %v2926 = vsel %vm524, %v2918, %v2925
        %v2927 = vrot.slane %v2922, 4
        %v2929 = vshrl.u32 %v2746, 16
        %v2931 = vrot.slane %v2929, 7
        %v2932 = vshll.u32 %v2746, 16
        %v2934 = vor.u32 %v2931, %v2932
        %v2935 = vrot.slane %v2931, 4
        %v2937 = vshrl.u32 %v2747, 16
        %v2939 = vrot.slane %v2937, 7
        %v2940 = vshll.u32 %v2747, 16
        %v2942 = vor.u32 %v2939, %v2940
        %v2943 = vsel %vm524, %v2935, %v2942
        %v2944 = vrot.slane %v2939, 4
        %v2946 = vshrl.u32 %v2748, 16
        %v2948 = vrot.slane %v2946, 7
        %v2949 = vshll.u32 %v2748, 16
        %v2951 = vor.u32 %v2948, %v2949
        %v2952 = vrot.slane %v2948, 4
        %v2954 = vshrl.u32 %v2749, 16
        %v2956 = vrot.slane %v2954, 7
        %v2957 = vshll.u32 %v2749, 16
        %v2959 = vor.u32 %v2956, %v2957
        %v2960 = vsel %vm524, %v2952, %v2959
        %v2961 = vrot.slane %v2956, 4
        %v2963 = vshrl.u32 %v2750, 16
        %v2965 = vrot.slane %v2963, 7
        %v2966 = vshll.u32 %v2750, 16
        %v2968 = vor.u32 %v2965, %v2966
        %v2969 = vrot.slane %v2965, 4
        %v2971 = vshrl.u32 %v2751, 16
        %v2973 = vrot.slane %v2971, 7
        %v2974 = vshll.u32 %v2751, 16
        %v2976 = vor.u32 %v2973, %v2974
        %v2977 = vsel %vm524, %v2969, %v2976
        %v2978 = vrot.slane %v2973, 4
        %v2980 = vshrl.u32 %v2752, 16
        %v2982 = vrot.slane %v2980, 7
        %v2983 = vshll.u32 %v2752, 16
        %v2985 = vor.u32 %v2982, %v2983
        %v2986 = vrot.slane %v2982, 4
        %v2988 = vshrl.u32 %v2753, 16
        %v2990 = vrot.slane %v2988, 7
        %v2991 = vshll.u32 %v2753, 16
        %v2993 = vor.u32 %v2990, %v2991
        %v2994 = vsel %vm524, %v2986, %v2993
        %v2995 = vrot.slane %v2990, 4
        %v2997 = vshrl.u32 %v2754, 16
        %v2999 = vrot.slane %v2997, 7
        %v3000 = vshll.u32 %v2754, 16
        %v3002 = vor.u32 %v2999, %v3000
        %v3003 = vrot.slane %v2999, 4
        %v3005 = vshrl.u32 %v2755, 16
        %v3007 = vrot.slane %v3005, 7
        %v3008 = vshll.u32 %v2755, 16
        %v3010 = vor.u32 %v3007, %v3008
        %v3011 = vsel %vm524, %v3003, %v3010
        %v3012 = vrot.slane %v3007, 4
        %v3014 = vshrl.u32 %v2756, 16
        %v3016 = vrot.slane %v3014, 7
        %v3017 = vshll.u32 %v2756, 16
        %v3019 = vor.u32 %v3016, %v3017
        %v3020 = vrot.slane %v3016, 4
        %v3022 = vshrl.u32 %v2757, 16
        %v3024 = vrot.slane %v3022, 7
        %v3025 = vshll.u32 %v2757, 16
        %v3027 = vor.u32 %v3024, %v3025
        %v3028 = vsel %vm524, %v3020, %v3027
        %v3029 = vrot.slane %v3024, 4
        %s3078 = scalar_lea.vmem [#allocation3], 12
        %vm3079 = vcmask 257024
        %vm3080 = vmand %vm3079, %vm847
        %v3081 = vld [vmem:[%s3078] sm:$0xf]
        %v3082 = vsel %vm3080, %v2764, %v3081
        %3083 = vst [vmem:[%s3078] sm:$0xf] %v3082
        %vm3084 = vcmask 257024
        %3085 = vst.msk [vmem:[%s3078 + $0x4] sm:$0xf] %vm3084, %v2773
        %vm3086 = vcmask 253952
        %vm3087 = vmand %vm3086, %vm522
        %v3088 = vld [vmem:[%s3078 + $0x8] sm:$0x1]
        %v3089 = vsel %vm3087, %v2774, %v3088
        %3090 = vst [vmem:[%s3078 + $0x8] sm:$0x1] %v3089
        %v3091 = vld [vmem:[%s3078 + $0xc] sm:$0xf]
        %v3092 = vsel %vm3080, %v2781, %v3091
        %3093 = vst [vmem:[%s3078 + $0xc] sm:$0xf] %v3092
        %3094 = vst.msk [vmem:[%s3078 + $0x10] sm:$0xf] %vm3084, %v2790
        %v3095 = vld [vmem:[%s3078 + $0x14] sm:$0x1]
        %v3096 = vsel %vm3087, %v2791, %v3095
        %3097 = vst [vmem:[%s3078 + $0x14] sm:$0x1] %v3096
        %v3098 = vld [vmem:[%s3078 + $0x18] sm:$0xf]
        %v3099 = vsel %vm3080, %v2798, %v3098
        %3100 = vst [vmem:[%s3078 + $0x18] sm:$0xf] %v3099
        %3101 = vst.msk [vmem:[%s3078 + $0x1c] sm:$0xf] %vm3084, %v2807
        %v3102 = vld [vmem:[%s3078 + $0x20] sm:$0x1]
        %v3103 = vsel %vm3087, %v2808, %v3102
        %3104 = vst [vmem:[%s3078 + $0x20] sm:$0x1] %v3103
        %v3105 = vld [vmem:[%s3078 + $0x24] sm:$0xf]
        %v3106 = vsel %vm3080, %v2815, %v3105
        %3107 = vst [vmem:[%s3078 + $0x24] sm:$0xf] %v3106
        %3108 = vst.msk [vmem:[%s3078 + $0x28] sm:$0xf] %vm3084, %v2824
        %v3109 = vld [vmem:[%s3078 + $0x2c] sm:$0x1]
        %v3110 = vsel %vm3087, %v2825, %v3109
        %3111 = vst [vmem:[%s3078 + $0x2c] sm:$0x1] %v3110
        %v3112 = vld [vmem:[%s3078 + $0x30] sm:$0xf]
        %v3113 = vsel %vm3080, %v2832, %v3112
        %3114 = vst [vmem:[%s3078 + $0x30] sm:$0xf] %v3113
        %3115 = vst.msk [vmem:[%s3078 + $0x34] sm:$0xf] %vm3084, %v2841
        %v3116 = vld [vmem:[%s3078 + $0x38] sm:$0x1]
        %v3117 = vsel %vm3087, %v2842, %v3116
        %3118 = vst [vmem:[%s3078 + $0x38] sm:$0x1] %v3117
        %v3119 = vld [vmem:[%s3078 + $0x3c] sm:$0xf]
        %v3120 = vsel %vm3080, %v2849, %v3119
        %3121 = vst [vmem:[%s3078 + $0x3c] sm:$0xf] %v3120
        %3122 = vst.msk [vmem:[%s3078 + $0x40] sm:$0xf] %vm3084, %v2858
        %v3123 = vld [vmem:[%s3078 + $0x44] sm:$0x1]
        %v3124 = vsel %vm3087, %v2859, %v3123
        %3125 = vst [vmem:[%s3078 + $0x44] sm:$0x1] %v3124
        %v3126 = vld [vmem:[%s3078 + $0x48] sm:$0xf]
        %v3127 = vsel %vm3080, %v2866, %v3126
        %3128 = vst [vmem:[%s3078 + $0x48] sm:$0xf] %v3127
        %3129 = vst.msk [vmem:[%s3078 + $0x4c] sm:$0xf] %vm3084, %v2875
        %v3130 = vld [vmem:[%s3078 + $0x50] sm:$0x1]
        %v3131 = vsel %vm3087, %v2876, %v3130
        %3132 = vst [vmem:[%s3078 + $0x50] sm:$0x1] %v3131
        %v3133 = vld [vmem:[%s3078 + $0x54] sm:$0xf]
        %v3134 = vsel %vm3080, %v2883, %v3133
        %3135 = vst [vmem:[%s3078 + $0x54] sm:$0xf] %v3134
        %3136 = vst.msk [vmem:[%s3078 + $0x58] sm:$0xf] %vm3084, %v2892
        %v3137 = vld [vmem:[%s3078 + $0x5c] sm:$0x1]
        %v3138 = vsel %vm3087, %v2893, %v3137
        %3139 = vst [vmem:[%s3078 + $0x5c] sm:$0x1] %v3138
        %v3140 = vld [vmem:[%s3078 + $0x60] sm:$0xf]
        %v3141 = vsel %vm3080, %v2900, %v3140
        %3142 = vst [vmem:[%s3078 + $0x60] sm:$0xf] %v3141
        %3143 = vst.msk [vmem:[%s3078 + $0x64] sm:$0xf] %vm3084, %v2909
        %v3144 = vld [vmem:[%s3078 + $0x68] sm:$0x1]
        %v3145 = vsel %vm3087, %v2910, %v3144
        %3146 = vst [vmem:[%s3078 + $0x68] sm:$0x1] %v3145
        %v3147 = vld [vmem:[%s3078 + $0x6c] sm:$0xf]
        %v3148 = vsel %vm3080, %v2917, %v3147
        %3149 = vst [vmem:[%s3078 + $0x6c] sm:$0xf] %v3148
        %3150 = vst.msk [vmem:[%s3078 + $0x70] sm:$0xf] %vm3084, %v2926
        %v3151 = vld [vmem:[%s3078 + $0x74] sm:$0x1]
        %v3152 = vsel %vm3087, %v2927, %v3151
        %3153 = vst [vmem:[%s3078 + $0x74] sm:$0x1] %v3152
        %v3154 = vld [vmem:[%s3078 + $0x78] sm:$0xf]
        %v3155 = vsel %vm3080, %v2934, %v3154
        %3156 = vst [vmem:[%s3078 + $0x78] sm:$0xf] %v3155
        %3157 = vst.msk [vmem:[%s3078 + $0x7c] sm:$0xf] %vm3084, %v2943
        %v3158 = vld [vmem:[%s3078 + $0x80] sm:$0x1]
        %v3159 = vsel %vm3087, %v2944, %v3158
        %3160 = vst [vmem:[%s3078 + $0x80] sm:$0x1] %v3159
        %v3161 = vld [vmem:[%s3078 + $0x84] sm:$0xf]
        %v3162 = vsel %vm3080, %v2951, %v3161
        %3163 = vst [vmem:[%s3078 + $0x84] sm:$0xf] %v3162
        %3164 = vst.msk [vmem:[%s3078 + $0x88] sm:$0xf] %vm3084, %v2960
        %v3165 = vld [vmem:[%s3078 + $0x8c] sm:$0x1]
        %v3166 = vsel %vm3087, %v2961, %v3165
        %3167 = vst [vmem:[%s3078 + $0x8c] sm:$0x1] %v3166
        %v3168 = vld [vmem:[%s3078 + $0x90] sm:$0xf]
        %v3169 = vsel %vm3080, %v2968, %v3168
        %3170 = vst [vmem:[%s3078 + $0x90] sm:$0xf] %v3169
        %3171 = vst.msk [vmem:[%s3078 + $0x94] sm:$0xf] %vm3084, %v2977
        %v3172 = vld [vmem:[%s3078 + $0x98] sm:$0x1]
        %v3173 = vsel %vm3087, %v2978, %v3172
        %3174 = vst [vmem:[%s3078 + $0x98] sm:$0x1] %v3173
        %v3175 = vld [vmem:[%s3078 + $0x9c] sm:$0xf]
        %v3176 = vsel %vm3080, %v2985, %v3175
        %3177 = vst [vmem:[%s3078 + $0x9c] sm:$0xf] %v3176
        %3178 = vst.msk [vmem:[%s3078 + $0xa0] sm:$0xf] %vm3084, %v2994
        %v3179 = vld [vmem:[%s3078 + $0xa4] sm:$0x1]
        %v3180 = vsel %vm3087, %v2995, %v3179
        %3181 = vst [vmem:[%s3078 + $0xa4] sm:$0x1] %v3180
        %v3182 = vld [vmem:[%s3078 + $0xa8] sm:$0xf]
        %v3183 = vsel %vm3080, %v3002, %v3182
        %3184 = vst [vmem:[%s3078 + $0xa8] sm:$0xf] %v3183
        %3185 = vst.msk [vmem:[%s3078 + $0xac] sm:$0xf] %vm3084, %v3011
        %v3186 = vld [vmem:[%s3078 + $0xb0] sm:$0x1]
        %v3187 = vsel %vm3087, %v3012, %v3186
        %3188 = vst [vmem:[%s3078 + $0xb0] sm:$0x1] %v3187
        %v3189 = vld [vmem:[%s3078 + $0xb4] sm:$0xf]
        %v3190 = vsel %vm3080, %v3019, %v3189
        %3191 = vst [vmem:[%s3078 + $0xb4] sm:$0xf] %v3190
        %3192 = vst.msk [vmem:[%s3078 + $0xb8] sm:$0xf] %vm3084, %v3028
        %v3193 = vld [vmem:[%s3078 + $0xbc] sm:$0x1]
        %v3194 = vsel %vm3087, %v3029, %v3193
        %3195 = vst [vmem:[%s3078 + $0xbc] sm:$0x1] %v3194
        %v3196 = vld [vmem:[#allocation3] sm:$0xf]
        %v3197 = vld [vmem:[#allocation3 + $0x4] sm:$0xf]
        %v3198 = vld [vmem:[#allocation3 + $0x8] sm:$0x1]
        %v3199 = vld [vmem:[#allocation3 + $0xc] sm:$0xf]
        %v3200 = vld [vmem:[#allocation3 + $0x10] sm:$0xf]
        %v3201 = vld [vmem:[#allocation3 + $0x14] sm:$0x1]
        %v3202 = vld [vmem:[#allocation3 + $0x18] sm:$0xf]
        %v3203 = vld [vmem:[#allocation3 + $0x1c] sm:$0xf]
        %v3204 = vld [vmem:[#allocation3 + $0x20] sm:$0x1]
        %v3205 = vld [vmem:[#allocation3 + $0x24] sm:$0xf]
        %v3206 = vld [vmem:[#allocation3 + $0x28] sm:$0xf]
        %v3207 = vld [vmem:[#allocation3 + $0x2c] sm:$0x1]
        %v3208 = vld [vmem:[#allocation3 + $0x30] sm:$0xf]
        %v3209 = vld [vmem:[#allocation3 + $0x34] sm:$0xf]
        %v3210 = vld [vmem:[#allocation3 + $0x38] sm:$0x1]
        %v3211 = vld [vmem:[#allocation3 + $0x3c] sm:$0xf]
        %v3212 = vld [vmem:[#allocation3 + $0x40] sm:$0xf]
        %v3213 = vld [vmem:[#allocation3 + $0x44] sm:$0x1]
        %v3214 = vld [vmem:[#allocation3 + $0x48] sm:$0xf]
        %v3215 = vld [vmem:[#allocation3 + $0x4c] sm:$0xf]
        %v3216 = vld [vmem:[#allocation3 + $0x50] sm:$0x1]
        %v3217 = vld [vmem:[#allocation3 + $0x54] sm:$0xf]
        %v3218 = vld [vmem:[#allocation3 + $0x58] sm:$0xf]
        %v3219 = vld [vmem:[#allocation3 + $0x5c] sm:$0x1]
        %v3220 = vld [vmem:[#allocation3 + $0x60] sm:$0xf]
        %v3221 = vld [vmem:[#allocation3 + $0x64] sm:$0xf]
        %v3222 = vld [vmem:[#allocation3 + $0x68] sm:$0x1]
        %v3223 = vld [vmem:[#allocation3 + $0x6c] sm:$0xf]
        %v3224 = vld [vmem:[#allocation3 + $0x70] sm:$0xf]
        %v3225 = vld [vmem:[#allocation3 + $0x74] sm:$0x1]
        %v3226 = vld [vmem:[#allocation3 + $0x78] sm:$0xf]
        %v3227 = vld [vmem:[#allocation3 + $0x7c] sm:$0xf]
        %v3228 = vld [vmem:[#allocation3 + $0x80] sm:$0x1]
        %v3229 = vld [vmem:[#allocation3 + $0x84] sm:$0xf]
        %v3230 = vld [vmem:[#allocation3 + $0x88] sm:$0xf]
        %v3231 = vld [vmem:[#allocation3 + $0x8c] sm:$0x1]
        %v3232 = vld [vmem:[#allocation3 + $0x90] sm:$0xf]
        %v3233 = vld [vmem:[#allocation3 + $0x94] sm:$0xf]
        %v3234 = vld [vmem:[#allocation3 + $0x98] sm:$0x1]
        %v3235 = vld [vmem:[#allocation3 + $0x9c] sm:$0xf]
        %v3236 = vld [vmem:[#allocation3 + $0xa0] sm:$0xf]
        %v3237 = vld [vmem:[#allocation3 + $0xa4] sm:$0x1]
        %v3238 = vld [vmem:[#allocation3 + $0xa8] sm:$0xf]
        %v3239 = vld [vmem:[#allocation3 + $0xac] sm:$0xf]
        %v3240 = vld [vmem:[#allocation3 + $0xb0] sm:$0x1]
        %v3241 = vld [vmem:[#allocation3 + $0xb4] sm:$0xf]
        %v3242 = vld [vmem:[#allocation3 + $0xb8] sm:$0xf]
        %v3243 = vld [vmem:[#allocation3 + $0xbc] sm:$0x1]
        %v3244 = vld [vmem:[#allocation3 + $0xc0] sm:$0xf]
        %v3245 = vld [vmem:[#allocation3 + $0xc4] sm:$0xf]
        %v3246 = vld [vmem:[#allocation3 + $0xc8] sm:$0x1]
        %v3247 = vld [vmem:[#allocation3 + $0xcc] sm:$0xf]
        %v3248 = vld [vmem:[#allocation3 + $0xd0] sm:$0xf]
        %v3249 = vld [vmem:[#allocation3 + $0xd4] sm:$0x1]
        %v3251 = vshrl.u32 %v3196, 16
        %v3253 = vrot.slane %v3251, 4
        %v3254 = vshll.u32 %v3196, 16
        %v3256 = vrot.slane %v3254, 5
        %v3257 = vor.u32 %v3253, %v3256
        %v3258 = vrot.slane %v3257, 4
        %v3260 = vshll.u32 %v3197, 16
        %v3262 = vrot.slane %v3260, 5
        %v3263 = vsel %vm1020, %v3258, %v3262
        %v3264 = vshrl.u32 %v3197, 16
        %v3266 = vrot.slane %v3264, 4
        %v3267 = vor.u32 %v3266, %v3262
        %v3268 = vrot.slane %v3267, 4
        %v3270 = vshll.u32 %v3198, 16
        %v3272 = vrot.slane %v3270, 5
        %v3273 = vsel %vm1020, %v3268, %v3272
        %v3275 = vshrl.u32 %v3199, 16
        %v3277 = vrot.slane %v3275, 4
        %v3278 = vshll.u32 %v3199, 16
        %v3280 = vrot.slane %v3278, 5
        %v3281 = vor.u32 %v3277, %v3280
        %v3282 = vrot.slane %v3281, 4
        %v3284 = vshll.u32 %v3200, 16
        %v3286 = vrot.slane %v3284, 5
        %v3287 = vsel %vm1020, %v3282, %v3286
        %v3288 = vshrl.u32 %v3200, 16
        %v3290 = vrot.slane %v3288, 4
        %v3291 = vor.u32 %v3290, %v3286
        %v3292 = vrot.slane %v3291, 4
        %v3294 = vshll.u32 %v3201, 16
        %v3296 = vrot.slane %v3294, 5
        %v3297 = vsel %vm1020, %v3292, %v3296
        %v3299 = vshrl.u32 %v3202, 16
        %v3301 = vrot.slane %v3299, 4
        %v3302 = vshll.u32 %v3202, 16
        %v3304 = vrot.slane %v3302, 5
        %v3305 = vor.u32 %v3301, %v3304
        %v3306 = vrot.slane %v3305, 4
        %v3308 = vshll.u32 %v3203, 16
        %v3310 = vrot.slane %v3308, 5
        %v3311 = vsel %vm1020, %v3306, %v3310
        %v3312 = vshrl.u32 %v3203, 16
        %v3314 = vrot.slane %v3312, 4
        %v3315 = vor.u32 %v3314, %v3310
        %v3316 = vrot.slane %v3315, 4
        %v3318 = vshll.u32 %v3204, 16
        %v3320 = vrot.slane %v3318, 5
        %v3321 = vsel %vm1020, %v3316, %v3320
        %v3323 = vshrl.u32 %v3205, 16
        %v3325 = vrot.slane %v3323, 4
        %v3326 = vshll.u32 %v3205, 16
        %v3328 = vrot.slane %v3326, 5
        %v3329 = vor.u32 %v3325, %v3328
        %v3330 = vrot.slane %v3329, 4
        %v3332 = vshll.u32 %v3206, 16
        %v3334 = vrot.slane %v3332, 5
        %v3335 = vsel %vm1020, %v3330, %v3334
        %v3336 = vshrl.u32 %v3206, 16
        %v3338 = vrot.slane %v3336, 4
        %v3339 = vor.u32 %v3338, %v3334
        %v3340 = vrot.slane %v3339, 4
        %v3342 = vshll.u32 %v3207, 16
        %v3344 = vrot.slane %v3342, 5
        %v3345 = vsel %vm1020, %v3340, %v3344
        %v3347 = vshrl.u32 %v3208, 16
        %v3349 = vrot.slane %v3347, 4
        %v3350 = vshll.u32 %v3208, 16
        %v3352 = vrot.slane %v3350, 5
        %v3353 = vor.u32 %v3349, %v3352
        %v3354 = vrot.slane %v3353, 4
        %v3356 = vshll.u32 %v3209, 16
        %v3358 = vrot.slane %v3356, 5
        %v3359 = vsel %vm1020, %v3354, %v3358
        %v3360 = vshrl.u32 %v3209, 16
        %v3362 = vrot.slane %v3360, 4
        %v3363 = vor.u32 %v3362, %v3358
        %v3364 = vrot.slane %v3363, 4
        %v3366 = vshll.u32 %v3210, 16
        %v3368 = vrot.slane %v3366, 5
        %v3369 = vsel %vm1020, %v3364, %v3368
        %v3371 = vshrl.u32 %v3211, 16
        %v3373 = vrot.slane %v3371, 4
        %v3374 = vshll.u32 %v3211, 16
        %v3376 = vrot.slane %v3374, 5
        %v3377 = vor.u32 %v3373, %v3376
        %v3378 = vrot.slane %v3377, 4
        %v3380 = vshll.u32 %v3212, 16
        %v3382 = vrot.slane %v3380, 5
        %v3383 = vsel %vm1020, %v3378, %v3382
        %v3384 = vshrl.u32 %v3212, 16
        %v3386 = vrot.slane %v3384, 4
        %v3387 = vor.u32 %v3386, %v3382
        %v3388 = vrot.slane %v3387, 4
        %v3390 = vshll.u32 %v3213, 16
        %v3392 = vrot.slane %v3390, 5
        %v3393 = vsel %vm1020, %v3388, %v3392
        %v3395 = vshrl.u32 %v3214, 16
        %v3397 = vrot.slane %v3395, 4
        %v3398 = vshll.u32 %v3214, 16
        %v3400 = vrot.slane %v3398, 5
        %v3401 = vor.u32 %v3397, %v3400
        %v3402 = vrot.slane %v3401, 4
        %v3404 = vshll.u32 %v3215, 16
        %v3406 = vrot.slane %v3404, 5
        %v3407 = vsel %vm1020, %v3402, %v3406
        %v3408 = vshrl.u32 %v3215, 16
        %v3410 = vrot.slane %v3408, 4
        %v3411 = vor.u32 %v3410, %v3406
        %v3412 = vrot.slane %v3411, 4
        %v3414 = vshll.u32 %v3216, 16
        %v3416 = vrot.slane %v3414, 5
        %v3417 = vsel %vm1020, %v3412, %v3416
        %v3419 = vshrl.u32 %v3217, 16
        %v3421 = vrot.slane %v3419, 4
        %v3422 = vshll.u32 %v3217, 16
        %v3424 = vrot.slane %v3422, 5
        %v3425 = vor.u32 %v3421, %v3424
        %v3426 = vrot.slane %v3425, 4
        %v3428 = vshll.u32 %v3218, 16
        %v3430 = vrot.slane %v3428, 5
        %v3431 = vsel %vm1020, %v3426, %v3430
        %v3432 = vshrl.u32 %v3218, 16
        %v3434 = vrot.slane %v3432, 4
        %v3435 = vor.u32 %v3434, %v3430
        %v3436 = vrot.slane %v3435, 4
        %v3438 = vshll.u32 %v3219, 16
        %v3440 = vrot.slane %v3438, 5
        %v3441 = vsel %vm1020, %v3436, %v3440
        %v3443 = vshrl.u32 %v3220, 16
        %v3445 = vrot.slane %v3443, 4
        %v3446 = vshll.u32 %v3220, 16
        %v3448 = vrot.slane %v3446, 5
        %v3449 = vor.u32 %v3445, %v3448
        %v3450 = vrot.slane %v3449, 4
        %v3452 = vshll.u32 %v3221, 16
        %v3454 = vrot.slane %v3452, 5
        %v3455 = vsel %vm1020, %v3450, %v3454
        %v3456 = vshrl.u32 %v3221, 16
        %v3458 = vrot.slane %v3456, 4
        %v3459 = vor.u32 %v3458, %v3454
        %v3460 = vrot.slane %v3459, 4
        %v3462 = vshll.u32 %v3222, 16
        %v3464 = vrot.slane %v3462, 5
        %v3465 = vsel %vm1020, %v3460, %v3464
        %v3467 = vshrl.u32 %v3223, 16
        %v3469 = vrot.slane %v3467, 4
        %v3470 = vshll.u32 %v3223, 16
        %v3472 = vrot.slane %v3470, 5
        %v3473 = vor.u32 %v3469, %v3472
        %v3474 = vrot.slane %v3473, 4
        %v3476 = vshll.u32 %v3224, 16
        %v3478 = vrot.slane %v3476, 5
        %v3479 = vsel %vm1020, %v3474, %v3478
        %v3480 = vshrl.u32 %v3224, 16
        %v3482 = vrot.slane %v3480, 4
        %v3483 = vor.u32 %v3482, %v3478
        %v3484 = vrot.slane %v3483, 4
        %v3486 = vshll.u32 %v3225, 16
        %v3488 = vrot.slane %v3486, 5
        %v3489 = vsel %vm1020, %v3484, %v3488
        %v3491 = vshrl.u32 %v3226, 16
        %v3493 = vrot.slane %v3491, 4
        %v3494 = vshll.u32 %v3226, 16
        %v3496 = vrot.slane %v3494, 5
        %v3497 = vor.u32 %v3493, %v3496
        %v3498 = vrot.slane %v3497, 4
        %v3500 = vshll.u32 %v3227, 16
        %v3502 = vrot.slane %v3500, 5
        %v3503 = vsel %vm1020, %v3498, %v3502
        %v3504 = vshrl.u32 %v3227, 16
        %v3506 = vrot.slane %v3504, 4
        %v3507 = vor.u32 %v3506, %v3502
        %v3508 = vrot.slane %v3507, 4
        %v3510 = vshll.u32 %v3228, 16
        %v3512 = vrot.slane %v3510, 5
        %v3513 = vsel %vm1020, %v3508, %v3512
        %v3515 = vshrl.u32 %v3229, 16
        %v3517 = vrot.slane %v3515, 4
        %v3518 = vshll.u32 %v3229, 16
        %v3520 = vrot.slane %v3518, 5
        %v3521 = vor.u32 %v3517, %v3520
        %v3522 = vrot.slane %v3521, 4
        %v3524 = vshll.u32 %v3230, 16
        %v3526 = vrot.slane %v3524, 5
        %v3527 = vsel %vm1020, %v3522, %v3526
        %v3528 = vshrl.u32 %v3230, 16
        %v3530 = vrot.slane %v3528, 4
        %v3531 = vor.u32 %v3530, %v3526
        %v3532 = vrot.slane %v3531, 4
        %v3534 = vshll.u32 %v3231, 16
        %v3536 = vrot.slane %v3534, 5
        %v3537 = vsel %vm1020, %v3532, %v3536
        %v3539 = vshrl.u32 %v3232, 16
        %v3541 = vrot.slane %v3539, 4
        %v3542 = vshll.u32 %v3232, 16
        %v3544 = vrot.slane %v3542, 5
        %v3545 = vor.u32 %v3541, %v3544
        %v3546 = vrot.slane %v3545, 4
        %v3548 = vshll.u32 %v3233, 16
        %v3550 = vrot.slane %v3548, 5
        %v3551 = vsel %vm1020, %v3546, %v3550
        %v3552 = vshrl.u32 %v3233, 16
        %v3554 = vrot.slane %v3552, 4
        %v3555 = vor.u32 %v3554, %v3550
        %v3556 = vrot.slane %v3555, 4
        %v3558 = vshll.u32 %v3234, 16
        %v3560 = vrot.slane %v3558, 5
        %v3561 = vsel %vm1020, %v3556, %v3560
        %v3563 = vshrl.u32 %v3235, 16
        %v3565 = vrot.slane %v3563, 4
        %v3566 = vshll.u32 %v3235, 16
        %v3568 = vrot.slane %v3566, 5
        %v3569 = vor.u32 %v3565, %v3568
        %v3570 = vrot.slane %v3569, 4
        %v3572 = vshll.u32 %v3236, 16
        %v3574 = vrot.slane %v3572, 5
        %v3575 = vsel %vm1020, %v3570, %v3574
        %v3576 = vshrl.u32 %v3236, 16
        %v3578 = vrot.slane %v3576, 4
        %v3579 = vor.u32 %v3578, %v3574
        %v3580 = vrot.slane %v3579, 4
        %v3582 = vshll.u32 %v3237, 16
        %v3584 = vrot.slane %v3582, 5
        %v3585 = vsel %vm1020, %v3580, %v3584
        %v3587 = vshrl.u32 %v3238, 16
        %v3589 = vrot.slane %v3587, 4
        %v3590 = vshll.u32 %v3238, 16
        %v3592 = vrot.slane %v3590, 5
        %v3593 = vor.u32 %v3589, %v3592
        %v3594 = vrot.slane %v3593, 4
        %v3596 = vshll.u32 %v3239, 16
        %v3598 = vrot.slane %v3596, 5
        %v3599 = vsel %vm1020, %v3594, %v3598
        %v3600 = vshrl.u32 %v3239, 16
        %v3602 = vrot.slane %v3600, 4
        %v3603 = vor.u32 %v3602, %v3598
        %v3604 = vrot.slane %v3603, 4
        %v3606 = vshll.u32 %v3240, 16
        %v3608 = vrot.slane %v3606, 5
        %v3609 = vsel %vm1020, %v3604, %v3608
        %v3611 = vshrl.u32 %v3241, 16
        %v3613 = vrot.slane %v3611, 4
        %v3614 = vshll.u32 %v3241, 16
        %v3616 = vrot.slane %v3614, 5
        %v3617 = vor.u32 %v3613, %v3616
        %v3618 = vrot.slane %v3617, 4
        %v3620 = vshll.u32 %v3242, 16
        %v3622 = vrot.slane %v3620, 5
        %v3623 = vsel %vm1020, %v3618, %v3622
        %v3624 = vshrl.u32 %v3242, 16
        %v3626 = vrot.slane %v3624, 4
        %v3627 = vor.u32 %v3626, %v3622
        %v3628 = vrot.slane %v3627, 4
        %v3630 = vshll.u32 %v3243, 16
        %v3632 = vrot.slane %v3630, 5
        %v3633 = vsel %vm1020, %v3628, %v3632
        %v3682 = vrot.slane %v3196, 5
        %v3683 = vrot.slane %v3682, 4
        %v3684 = vrot.slane %v3197, 5
        %v3685 = vsel %vm1455, %v3683, %v3684
        %v3686 = vrot.slane %v3684, 4
        %v3687 = vrot.slane %v3198, 5
        %v3688 = vsel %vm1455, %v3686, %v3687
        %v3689 = vrot.slane %v3199, 5
        %v3690 = vrot.slane %v3689, 4
        %v3691 = vrot.slane %v3200, 5
        %v3692 = vsel %vm1455, %v3690, %v3691
        %v3693 = vrot.slane %v3691, 4
        %v3694 = vrot.slane %v3201, 5
        %v3695 = vsel %vm1455, %v3693, %v3694
        %v3696 = vrot.slane %v3202, 5
        %v3697 = vrot.slane %v3696, 4
        %v3698 = vrot.slane %v3203, 5
        %v3699 = vsel %vm1455, %v3697, %v3698
        %v3700 = vrot.slane %v3698, 4
        %v3701 = vrot.slane %v3204, 5
        %v3702 = vsel %vm1455, %v3700, %v3701
        %v3703 = vrot.slane %v3205, 5
        %v3704 = vrot.slane %v3703, 4
        %v3705 = vrot.slane %v3206, 5
        %v3706 = vsel %vm1455, %v3704, %v3705
        %v3707 = vrot.slane %v3705, 4
        %v3708 = vrot.slane %v3207, 5
        %v3709 = vsel %vm1455, %v3707, %v3708
        %v3710 = vrot.slane %v3208, 5
        %v3711 = vrot.slane %v3710, 4
        %v3712 = vrot.slane %v3209, 5
        %v3713 = vsel %vm1455, %v3711, %v3712
        %v3714 = vrot.slane %v3712, 4
        %v3715 = vrot.slane %v3210, 5
        %v3716 = vsel %vm1455, %v3714, %v3715
        %v3717 = vrot.slane %v3211, 5
        %v3718 = vrot.slane %v3717, 4
        %v3719 = vrot.slane %v3212, 5
        %v3720 = vsel %vm1455, %v3718, %v3719
        %v3721 = vrot.slane %v3719, 4
        %v3722 = vrot.slane %v3213, 5
        %v3723 = vsel %vm1455, %v3721, %v3722
        %v3724 = vrot.slane %v3214, 5
        %v3725 = vrot.slane %v3724, 4
        %v3726 = vrot.slane %v3215, 5
        %v3727 = vsel %vm1455, %v3725, %v3726
        %v3728 = vrot.slane %v3726, 4
        %v3729 = vrot.slane %v3216, 5
        %v3730 = vsel %vm1455, %v3728, %v3729
        %v3731 = vrot.slane %v3217, 5
        %v3732 = vrot.slane %v3731, 4
        %v3733 = vrot.slane %v3218, 5
        %v3734 = vsel %vm1455, %v3732, %v3733
        %v3735 = vrot.slane %v3733, 4
        %v3736 = vrot.slane %v3219, 5
        %v3737 = vsel %vm1455, %v3735, %v3736
        %v3738 = vrot.slane %v3220, 5
        %v3739 = vrot.slane %v3738, 4
        %v3740 = vrot.slane %v3221, 5
        %v3741 = vsel %vm1455, %v3739, %v3740
        %v3742 = vrot.slane %v3740, 4
        %v3743 = vrot.slane %v3222, 5
        %v3744 = vsel %vm1455, %v3742, %v3743
        %v3745 = vrot.slane %v3223, 5
        %v3746 = vrot.slane %v3745, 4
        %v3747 = vrot.slane %v3224, 5
        %v3748 = vsel %vm1455, %v3746, %v3747
        %v3749 = vrot.slane %v3747, 4
        %v3750 = vrot.slane %v3225, 5
        %v3751 = vsel %vm1455, %v3749, %v3750
        %v3752 = vrot.slane %v3226, 5
        %v3753 = vrot.slane %v3752, 4
        %v3754 = vrot.slane %v3227, 5
        %v3755 = vsel %vm1455, %v3753, %v3754
        %v3756 = vrot.slane %v3754, 4
        %v3757 = vrot.slane %v3228, 5
        %v3758 = vsel %vm1455, %v3756, %v3757
        %v3759 = vrot.slane %v3229, 5
        %v3760 = vrot.slane %v3759, 4
        %v3761 = vrot.slane %v3230, 5
        %v3762 = vsel %vm1455, %v3760, %v3761
        %v3763 = vrot.slane %v3761, 4
        %v3764 = vrot.slane %v3231, 5
        %v3765 = vsel %vm1455, %v3763, %v3764
        %v3766 = vrot.slane %v3232, 5
        %v3767 = vrot.slane %v3766, 4
        %v3768 = vrot.slane %v3233, 5
        %v3769 = vsel %vm1455, %v3767, %v3768
        %v3770 = vrot.slane %v3768, 4
        %v3771 = vrot.slane %v3234, 5
        %v3772 = vsel %vm1455, %v3770, %v3771
        %v3773 = vrot.slane %v3235, 5
        %v3774 = vrot.slane %v3773, 4
        %v3775 = vrot.slane %v3236, 5
        %v3776 = vsel %vm1455, %v3774, %v3775
        %v3777 = vrot.slane %v3775, 4
        %v3778 = vrot.slane %v3237, 5
        %v3779 = vsel %vm1455, %v3777, %v3778
        %v3780 = vrot.slane %v3238, 5
        %v3781 = vrot.slane %v3780, 4
        %v3782 = vrot.slane %v3239, 5
        %v3783 = vsel %vm1455, %v3781, %v3782
        %v3784 = vrot.slane %v3782, 4
        %v3785 = vrot.slane %v3240, 5
        %v3786 = vsel %vm1455, %v3784, %v3785
        %v3787 = vrot.slane %v3241, 5
        %v3788 = vrot.slane %v3787, 4
        %v3789 = vrot.slane %v3242, 5
        %v3790 = vsel %vm1455, %v3788, %v3789
        %v3791 = vrot.slane %v3789, 4
        %v3792 = vrot.slane %v3243, 5
        %v3793 = vsel %vm1455, %v3791, %v3792
        %v3795 = vshrl.u32 %v3244, 16
        %v3797 = vrot.slane %v3795, 4
        %v3798 = vshll.u32 %v3244, 16
        %v3800 = vrot.slane %v3798, 5
        %v3801 = vor.u32 %v3797, %v3800
        %v3802 = vrot.slane %v3801, 4
        %v3804 = vshll.u32 %v3245, 16
        %v3806 = vrot.slane %v3804, 5
        %v3807 = vsel %vm1020, %v3802, %v3806
        %v3808 = vshrl.u32 %v3245, 16
        %v3810 = vrot.slane %v3808, 4
        %v3811 = vor.u32 %v3810, %v3806
        %v3812 = vrot.slane %v3811, 4
        %v3814 = vshll.u32 %v3246, 16
        %v3816 = vrot.slane %v3814, 5
        %v3817 = vsel %vm1020, %v3812, %v3816
        %v3821 = vrot.slane %v3244, 5
        %v3822 = vrot.slane %v3821, 4
        %v3823 = vrot.slane %v3245, 5
        %v3824 = vsel %vm1455, %v3822, %v3823
        %v3825 = vrot.slane %v3823, 4
        %v3826 = vrot.slane %v3246, 5
        %v3827 = vsel %vm1455, %v3825, %v3826
        %v3829 = vshrl.u32 %v3247, 16
        %v3831 = vrot.slane %v3829, 4
        %v3832 = vshll.u32 %v3247, 16
        %v3834 = vrot.slane %v3832, 5
        %v3835 = vor.u32 %v3831, %v3834
        %v3836 = vrot.slane %v3835, 4
        %v3838 = vshll.u32 %v3248, 16
        %v3840 = vrot.slane %v3838, 5
        %v3841 = vsel %vm1020, %v3836, %v3840
        %v3842 = vshrl.u32 %v3248, 16
        %v3844 = vrot.slane %v3842, 4
        %v3845 = vor.u32 %v3844, %v3840
        %v3846 = vrot.slane %v3845, 4
        %v3848 = vshll.u32 %v3249, 16
        %v3850 = vrot.slane %v3848, 5
        %v3851 = vsel %vm1020, %v3846, %v3850
        %v3855 = vrot.slane %v3247, 5
        %v3856 = vrot.slane %v3855, 4
        %v3857 = vrot.slane %v3248, 5
        %v3858 = vsel %vm1455, %v3856, %v3857
        %v3859 = vrot.slane %v3857, 4
        %v3860 = vrot.slane %v3249, 5
        %v3861 = vsel %vm1455, %v3859, %v3860
        %v3862 = vunpack.c.l.b16 %v3196
        %v3863 = vunpack.c.l.b16 %v3197
        %v3864 = vunpack.c.l.b16 %v3199
        %v3865 = vunpack.c.l.b16 %v3200
        %v3866 = vunpack.c.l.b16 %v3202
        %v3867 = vunpack.c.l.b16 %v3203
        %v3868 = vunpack.c.l.b16 %v3205
        %v3869 = vunpack.c.l.b16 %v3206
        %v3870 = vunpack.c.l.b16 %v3208
        %v3871 = vunpack.c.l.b16 %v3209
        %v3872 = vunpack.c.l.b16 %v3211
        %v3873 = vunpack.c.l.b16 %v3212
        %v3874 = vunpack.c.l.b16 %v3214
        %v3875 = vunpack.c.l.b16 %v3215
        %v3876 = vunpack.c.l.b16 %v3217
        %v3877 = vunpack.c.l.b16 %v3218
        %v3878 = vunpack.c.l.b16 %v3220
        %v3879 = vunpack.c.l.b16 %v3221
        %v3880 = vunpack.c.l.b16 %v3223
        %v3881 = vunpack.c.l.b16 %v3224
        %v3882 = vunpack.c.l.b16 %v3226
        %v3883 = vunpack.c.l.b16 %v3227
        %v3884 = vunpack.c.l.b16 %v3229
        %v3885 = vunpack.c.l.b16 %v3230
        %v3886 = vunpack.c.l.b16 %v3232
        %v3887 = vunpack.c.l.b16 %v3233
        %v3888 = vunpack.c.l.b16 %v3235
        %v3889 = vunpack.c.l.b16 %v3236
        %v3890 = vunpack.c.l.b16 %v3238
        %v3891 = vunpack.c.l.b16 %v3239
        %v3892 = vunpack.c.l.b16 %v3241
        %v3893 = vunpack.c.l.b16 %v3242
        %v3894 = vpack.c.b16 %v3863, %v3862
        %v3895 = vpack.c.b16 %v3865, %v3864
        %v3896 = vpack.c.b16 %v3867, %v3866
        %v3897 = vpack.c.b16 %v3869, %v3868
        %v3898 = vpack.c.b16 %v3871, %v3870
        %v3899 = vpack.c.b16 %v3873, %v3872
        %v3900 = vpack.c.b16 %v3875, %v3874
        %v3901 = vpack.c.b16 %v3877, %v3876
        %v3902 = vpack.c.b16 %v3879, %v3878
        %v3903 = vpack.c.b16 %v3881, %v3880
        %v3904 = vpack.c.b16 %v3883, %v3882
        %v3905 = vpack.c.b16 %v3885, %v3884
        %v3906 = vpack.c.b16 %v3887, %v3886
        %v3907 = vpack.c.b16 %v3889, %v3888
        %v3908 = vpack.c.b16 %v3891, %v3890
        %v3909 = vpack.c.b16 %v3893, %v3892
        %v3910 = vunpack.c.l.b16 %v3263
        %v3911 = vunpack.c.l.b16 %v3273
        %v3912 = vunpack.c.l.b16 %v3287
        %v3913 = vunpack.c.l.b16 %v3297
        %v3914 = vunpack.c.l.b16 %v3311
        %v3915 = vunpack.c.l.b16 %v3321
        %v3916 = vunpack.c.l.b16 %v3335
        %v3917 = vunpack.c.l.b16 %v3345
        %v3918 = vunpack.c.l.b16 %v3359
        %v3919 = vunpack.c.l.b16 %v3369
        %v3920 = vunpack.c.l.b16 %v3383
        %v3921 = vunpack.c.l.b16 %v3393
        %v3922 = vunpack.c.l.b16 %v3407
        %v3923 = vunpack.c.l.b16 %v3417
        %v3924 = vunpack.c.l.b16 %v3431
        %v3925 = vunpack.c.l.b16 %v3441
        %v3926 = vunpack.c.l.b16 %v3455
        %v3927 = vunpack.c.l.b16 %v3465
        %v3928 = vunpack.c.l.b16 %v3479
        %v3929 = vunpack.c.l.b16 %v3489
        %v3930 = vunpack.c.l.b16 %v3503
        %v3931 = vunpack.c.l.b16 %v3513
        %v3932 = vunpack.c.l.b16 %v3527
        %v3933 = vunpack.c.l.b16 %v3537
        %v3934 = vunpack.c.l.b16 %v3551
        %v3935 = vunpack.c.l.b16 %v3561
        %v3936 = vunpack.c.l.b16 %v3575
        %v3937 = vunpack.c.l.b16 %v3585
        %v3938 = vunpack.c.l.b16 %v3599
        %v3939 = vunpack.c.l.b16 %v3609
        %v3940 = vunpack.c.l.b16 %v3623
        %v3941 = vunpack.c.l.b16 %v3633
        %v3942 = vpack.c.b16 %v3911, %v3910
        %v3943 = vpack.c.b16 %v3913, %v3912
        %v3944 = vpack.c.b16 %v3915, %v3914
        %v3945 = vpack.c.b16 %v3917, %v3916
        %v3946 = vpack.c.b16 %v3919, %v3918
        %v3947 = vpack.c.b16 %v3921, %v3920
        %v3948 = vpack.c.b16 %v3923, %v3922
        %v3949 = vpack.c.b16 %v3925, %v3924
        %v3950 = vpack.c.b16 %v3927, %v3926
        %v3951 = vpack.c.b16 %v3929, %v3928
        %v3952 = vpack.c.b16 %v3931, %v3930
        %v3953 = vpack.c.b16 %v3933, %v3932
        %v3954 = vpack.c.b16 %v3935, %v3934
        %v3955 = vpack.c.b16 %v3937, %v3936
        %v3956 = vpack.c.b16 %v3939, %v3938
        %v3957 = vpack.c.b16 %v3941, %v3940
        %3958 = vrot.lane.b32.xlu0 %v3942, 32
        %v3959 = vpop.permute.xlu0 %3958
        %3960 = vrot.lane.b32.xlu0 %v3943, 32
        %v3961 = vpop.permute.xlu0 %3960
        %3962 = vrot.lane.b32.xlu0 %v3944, 32
        %v3963 = vpop.permute.xlu0 %3962
        %3964 = vrot.lane.b32.xlu0 %v3945, 32
        %v3965 = vpop.permute.xlu0 %3964
        %3966 = vrot.lane.b32.xlu0 %v3946, 32
        %v3967 = vpop.permute.xlu0 %3966
        %3968 = vrot.lane.b32.xlu0 %v3947, 32
        %v3969 = vpop.permute.xlu0 %3968
        %3970 = vrot.lane.b32.xlu0 %v3948, 32
        %v3971 = vpop.permute.xlu0 %3970
        %3972 = vrot.lane.b32.xlu0 %v3949, 32
        %v3973 = vpop.permute.xlu0 %3972
        %3974 = vrot.lane.b32.xlu0 %v3950, 32
        %v3975 = vpop.permute.xlu0 %3974
        %3976 = vrot.lane.b32.xlu0 %v3951, 32
        %v3977 = vpop.permute.xlu0 %3976
        %3978 = vrot.lane.b32.xlu0 %v3952, 32
        %v3979 = vpop.permute.xlu0 %3978
        %3980 = vrot.lane.b32.xlu0 %v3953, 32
        %v3981 = vpop.permute.xlu0 %3980
        %3982 = vrot.lane.b32.xlu0 %v3954, 32
        %v3983 = vpop.permute.xlu0 %3982
        %3984 = vrot.lane.b32.xlu0 %v3955, 32
        %v3985 = vpop.permute.xlu0 %3984
        %3986 = vrot.lane.b32.xlu0 %v3956, 32
        %v3987 = vpop.permute.xlu0 %3986
        %3988 = vrot.lane.b32.xlu0 %v3957, 32
        %v3989 = vpop.permute.xlu0 %3988
        %v3990 = vunpack.c.l.b16 %v3685
        %v3991 = vunpack.c.l.b16 %v3688
        %v3992 = vunpack.c.l.b16 %v3692
        %v3993 = vunpack.c.l.b16 %v3695
        %v3994 = vunpack.c.l.b16 %v3699
        %v3995 = vunpack.c.l.b16 %v3702
        %v3996 = vunpack.c.l.b16 %v3706
        %v3997 = vunpack.c.l.b16 %v3709
        %v3998 = vunpack.c.l.b16 %v3713
        %v3999 = vunpack.c.l.b16 %v3716
        %v4000 = vunpack.c.l.b16 %v3720
        %v4001 = vunpack.c.l.b16 %v3723
        %v4002 = vunpack.c.l.b16 %v3727
        %v4003 = vunpack.c.l.b16 %v3730
        %v4004 = vunpack.c.l.b16 %v3734
        %v4005 = vunpack.c.l.b16 %v3737
        %v4006 = vunpack.c.l.b16 %v3741
        %v4007 = vunpack.c.l.b16 %v3744
        %v4008 = vunpack.c.l.b16 %v3748
        %v4009 = vunpack.c.l.b16 %v3751
        %v4010 = vunpack.c.l.b16 %v3755
        %v4011 = vunpack.c.l.b16 %v3758
        %v4012 = vunpack.c.l.b16 %v3762
        %v4013 = vunpack.c.l.b16 %v3765
        %v4014 = vunpack.c.l.b16 %v3769
        %v4015 = vunpack.c.l.b16 %v3772
        %v4016 = vunpack.c.l.b16 %v3776
        %v4017 = vunpack.c.l.b16 %v3779
        %v4018 = vunpack.c.l.b16 %v3783
        %v4019 = vunpack.c.l.b16 %v3786
        %v4020 = vunpack.c.l.b16 %v3790
        %v4021 = vunpack.c.l.b16 %v3793
        %v4022 = vpack.c.b16 %v3991, %v3990
        %v4023 = vpack.c.b16 %v3993, %v3992
        %v4024 = vpack.c.b16 %v3995, %v3994
        %v4025 = vpack.c.b16 %v3997, %v3996
        %v4026 = vpack.c.b16 %v3999, %v3998
        %v4027 = vpack.c.b16 %v4001, %v4000
        %v4028 = vpack.c.b16 %v4003, %v4002
        %v4029 = vpack.c.b16 %v4005, %v4004
        %v4030 = vpack.c.b16 %v4007, %v4006
        %v4031 = vpack.c.b16 %v4009, %v4008
        %v4032 = vpack.c.b16 %v4011, %v4010
        %v4033 = vpack.c.b16 %v4013, %v4012
        %v4034 = vpack.c.b16 %v4015, %v4014
        %v4035 = vpack.c.b16 %v4017, %v4016
        %v4036 = vpack.c.b16 %v4019, %v4018
        %v4037 = vpack.c.b16 %v4021, %v4020
        %4038 = vrot.lane.b32.xlu0 %v4022, 64
        %v4039 = vpop.permute.xlu0 %4038
        %4040 = vrot.lane.b32.xlu0 %v4023, 64
        %v4041 = vpop.permute.xlu0 %4040
        %4042 = vrot.lane.b32.xlu0 %v4024, 64
        %v4043 = vpop.permute.xlu0 %4042
        %4044 = vrot.lane.b32.xlu0 %v4025, 64
        %v4045 = vpop.permute.xlu0 %4044
        %4046 = vrot.lane.b32.xlu0 %v4026, 64
        %v4047 = vpop.permute.xlu0 %4046
        %4048 = vrot.lane.b32.xlu0 %v4027, 64
        %v4049 = vpop.permute.xlu0 %4048
        %4050 = vrot.lane.b32.xlu0 %v4028, 64
        %v4051 = vpop.permute.xlu0 %4050
        %4052 = vrot.lane.b32.xlu0 %v4029, 64
        %v4053 = vpop.permute.xlu0 %4052
        %4054 = vrot.lane.b32.xlu0 %v4030, 64
        %v4055 = vpop.permute.xlu0 %4054
        %4056 = vrot.lane.b32.xlu0 %v4031, 64
        %v4057 = vpop.permute.xlu0 %4056
        %4058 = vrot.lane.b32.xlu0 %v4032, 64
        %v4059 = vpop.permute.xlu0 %4058
        %4060 = vrot.lane.b32.xlu0 %v4033, 64
        %v4061 = vpop.permute.xlu0 %4060
        %4062 = vrot.lane.b32.xlu0 %v4034, 64
        %v4063 = vpop.permute.xlu0 %4062
        %4064 = vrot.lane.b32.xlu0 %v4035, 64
        %v4065 = vpop.permute.xlu0 %4064
        %4066 = vrot.lane.b32.xlu0 %v4036, 64
        %v4067 = vpop.permute.xlu0 %4066
        %4068 = vrot.lane.b32.xlu0 %v4037, 64
        %v4069 = vpop.permute.xlu0 %4068
        %v4070 = vunpack.c.l.b16 %v3244
        %v4071 = vunpack.c.l.b16 %v3245
        %v4072 = vpack.c.b16 %v4071, %v4070
        %4073 = vrot.lane.b32.xlu0 %v3895, 96
        %v4074 = vpop.permute.xlu0 %4073
        %4075 = vrot.lane.b32.xlu0 %v3896, 96
        %v4076 = vpop.permute.xlu0 %4075
        %4077 = vrot.lane.b32.xlu0 %v3897, 96
        %v4078 = vpop.permute.xlu0 %4077
        %4079 = vrot.lane.b32.xlu0 %v3898, 96
        %v4080 = vpop.permute.xlu0 %4079
        %4081 = vrot.lane.b32.xlu0 %v3899, 96
        %v4082 = vpop.permute.xlu0 %4081
        %4083 = vrot.lane.b32.xlu0 %v3900, 96
        %v4084 = vpop.permute.xlu0 %4083
        %4085 = vrot.lane.b32.xlu0 %v3901, 96
        %v4086 = vpop.permute.xlu0 %4085
        %4087 = vrot.lane.b32.xlu0 %v3902, 96
        %v4088 = vpop.permute.xlu0 %4087
        %4089 = vrot.lane.b32.xlu0 %v3903, 96
        %v4090 = vpop.permute.xlu0 %4089
        %4091 = vrot.lane.b32.xlu0 %v3904, 96
        %v4092 = vpop.permute.xlu0 %4091
        %4093 = vrot.lane.b32.xlu0 %v3905, 96
        %v4094 = vpop.permute.xlu0 %4093
        %4095 = vrot.lane.b32.xlu0 %v3906, 96
        %v4096 = vpop.permute.xlu0 %4095
        %4097 = vrot.lane.b32.xlu0 %v3907, 96
        %v4098 = vpop.permute.xlu0 %4097
        %4099 = vrot.lane.b32.xlu0 %v3908, 96
        %v4100 = vpop.permute.xlu0 %4099
        %4101 = vrot.lane.b32.xlu0 %v3909, 96
        %v4102 = vpop.permute.xlu0 %4101
        %4103 = vrot.lane.b32.xlu0 %v4072, 96
        %v4104 = vpop.permute.xlu0 %4103
        %v4105 = vunpack.c.l.b16 %v3807
        %v4106 = vunpack.c.l.b16 %v3817
        %v4107 = vpack.c.b16 %v4106, %v4105
        %v4108 = vunpack.c.l.b16 %v3824
        %v4109 = vunpack.c.l.b16 %v3827
        %v4110 = vpack.c.b16 %v4109, %v4108
        %4111 = vrot.lane.b32.xlu0 %v4023, 32
        %v4112 = vpop.permute.xlu0 %4111
        %4113 = vrot.lane.b32.xlu0 %v4024, 32
        %v4114 = vpop.permute.xlu0 %4113
        %4115 = vrot.lane.b32.xlu0 %v4025, 32
        %v4116 = vpop.permute.xlu0 %4115
        %4117 = vrot.lane.b32.xlu0 %v4026, 32
        %v4118 = vpop.permute.xlu0 %4117
        %4119 = vrot.lane.b32.xlu0 %v4027, 32
        %v4120 = vpop.permute.xlu0 %4119
        %4121 = vrot.lane.b32.xlu0 %v4028, 32
        %v4122 = vpop.permute.xlu0 %4121
        %4123 = vrot.lane.b32.xlu0 %v4029, 32
        %v4124 = vpop.permute.xlu0 %4123
        %4125 = vrot.lane.b32.xlu0 %v4030, 32
        %v4126 = vpop.permute.xlu0 %4125
        %4127 = vrot.lane.b32.xlu0 %v4031, 32
        %v4128 = vpop.permute.xlu0 %4127
        %4129 = vrot.lane.b32.xlu0 %v4032, 32
        %v4130 = vpop.permute.xlu0 %4129
        %4131 = vrot.lane.b32.xlu0 %v4033, 32
        %v4132 = vpop.permute.xlu0 %4131
        %4133 = vrot.lane.b32.xlu0 %v4034, 32
        %v4134 = vpop.permute.xlu0 %4133
        %4135 = vrot.lane.b32.xlu0 %v4035, 32
        %v4136 = vpop.permute.xlu0 %4135
        %4137 = vrot.lane.b32.xlu0 %v4036, 32
        %v4138 = vpop.permute.xlu0 %4137
        %4139 = vrot.lane.b32.xlu0 %v4037, 32
        %v4140 = vpop.permute.xlu0 %4139
        %4141 = vrot.lane.b32.xlu0 %v4110, 32
        %v4142 = vpop.permute.xlu0 %4141
        %v4143 = vunpack.c.l.b16 %v3247
        %v4144 = vunpack.c.l.b16 %v3248
        %v4145 = vpack.c.b16 %v4144, %v4143
        %4146 = vrot.lane.b32.xlu0 %v3896, 64
        %v4147 = vpop.permute.xlu0 %4146
        %4148 = vrot.lane.b32.xlu0 %v3897, 64
        %v4149 = vpop.permute.xlu0 %4148
        %4150 = vrot.lane.b32.xlu0 %v3898, 64
        %v4151 = vpop.permute.xlu0 %4150
        %4152 = vrot.lane.b32.xlu0 %v3899, 64
        %v4153 = vpop.permute.xlu0 %4152
        %4154 = vrot.lane.b32.xlu0 %v3900, 64
        %v4155 = vpop.permute.xlu0 %4154
        %4156 = vrot.lane.b32.xlu0 %v3901, 64
        %v4157 = vpop.permute.xlu0 %4156
        %4158 = vrot.lane.b32.xlu0 %v3902, 64
        %v4159 = vpop.permute.xlu0 %4158
        %4160 = vrot.lane.b32.xlu0 %v3903, 64
        %v4161 = vpop.permute.xlu0 %4160
        %4162 = vrot.lane.b32.xlu0 %v3904, 64
        %v4163 = vpop.permute.xlu0 %4162
        %4164 = vrot.lane.b32.xlu0 %v3905, 64
        %v4165 = vpop.permute.xlu0 %4164
        %4166 = vrot.lane.b32.xlu0 %v3906, 64
        %v4167 = vpop.permute.xlu0 %4166
        %4168 = vrot.lane.b32.xlu0 %v3907, 64
        %v4169 = vpop.permute.xlu0 %4168
        %4170 = vrot.lane.b32.xlu0 %v3908, 64
        %v4171 = vpop.permute.xlu0 %4170
        %4172 = vrot.lane.b32.xlu0 %v3909, 64
        %v4173 = vpop.permute.xlu0 %4172
        %4174 = vrot.lane.b32.xlu0 %v4072, 64
        %v4175 = vpop.permute.xlu0 %4174
        %4176 = vrot.lane.b32.xlu0 %v4145, 64
        %v4177 = vpop.permute.xlu0 %4176
        %v4178 = vunpack.c.l.b16 %v3841
        %v4179 = vunpack.c.l.b16 %v3851
        %v4180 = vpack.c.b16 %v4179, %v4178
        %4181 = vrot.lane.b32.xlu0 %v3944, 96
        %v4182 = vpop.permute.xlu0 %4181
        %4183 = vrot.lane.b32.xlu0 %v3945, 96
        %v4184 = vpop.permute.xlu0 %4183
        %4185 = vrot.lane.b32.xlu0 %v3946, 96
        %v4186 = vpop.permute.xlu0 %4185
        %4187 = vrot.lane.b32.xlu0 %v3947, 96
        %v4188 = vpop.permute.xlu0 %4187
        %4189 = vrot.lane.b32.xlu0 %v3948, 96
        %v4190 = vpop.permute.xlu0 %4189
        %4191 = vrot.lane.b32.xlu0 %v3949, 96
        %v4192 = vpop.permute.xlu0 %4191
        %4193 = vrot.lane.b32.xlu0 %v3950, 96
        %v4194 = vpop.permute.xlu0 %4193
        %4195 = vrot.lane.b32.xlu0 %v3951, 96
        %v4196 = vpop.permute.xlu0 %4195
        %4197 = vrot.lane.b32.xlu0 %v3952, 96
        %v4198 = vpop.permute.xlu0 %4197
        %4199 = vrot.lane.b32.xlu0 %v3953, 96
        %v4200 = vpop.permute.xlu0 %4199
        %4201 = vrot.lane.b32.xlu0 %v3954, 96
        %v4202 = vpop.permute.xlu0 %4201
        %4203 = vrot.lane.b32.xlu0 %v3955, 96
        %v4204 = vpop.permute.xlu0 %4203
        %4205 = vrot.lane.b32.xlu0 %v3956, 96
        %v4206 = vpop.permute.xlu0 %4205
        %4207 = vrot.lane.b32.xlu0 %v3957, 96
        %v4208 = vpop.permute.xlu0 %4207
        %4209 = vrot.lane.b32.xlu0 %v4107, 96
        %v4210 = vpop.permute.xlu0 %4209
        %4211 = vrot.lane.b32.xlu0 %v4180, 96
        %v4212 = vpop.permute.xlu0 %4211
        %v4213 = vunpack.c.l.b16 %v3858
        %v4214 = vunpack.c.l.b16 %v3861
        %v4215 = vpack.c.b16 %v4214, %v4213
        %v4218 = vsel %vm2301, %v3894, %v3959
        %v4221 = vsel %vm2301, %v3895, %v3961
        %v4224 = vsel %vm2301, %v3896, %v3963
        %v4227 = vsel %vm2301, %v3897, %v3965
        %v4230 = vsel %vm2301, %v3898, %v3967
        %v4233 = vsel %vm2301, %v3899, %v3969
        %v4236 = vsel %vm2301, %v3900, %v3971
        %v4239 = vsel %vm2301, %v3901, %v3973
        %v4242 = vsel %vm2301, %v3902, %v3975
        %v4245 = vsel %vm2301, %v3903, %v3977
        %v4248 = vsel %vm2301, %v3904, %v3979
        %v4251 = vsel %vm2301, %v3905, %v3981
        %v4254 = vsel %vm2301, %v3906, %v3983
        %v4257 = vsel %vm2301, %v3907, %v3985
        %v4260 = vsel %vm2301, %v3908, %v3987
        %v4263 = vsel %vm2301, %v3909, %v3989
        %vm4264 = vcmask 523264
        %v4266 = vsel %vm4264, %v4218, %v4039
        %v4268 = vsel %vm4264, %v4221, %v4041
        %v4270 = vsel %vm4264, %v4224, %v4043
        %v4272 = vsel %vm4264, %v4227, %v4045
        %v4274 = vsel %vm4264, %v4230, %v4047
        %v4276 = vsel %vm4264, %v4233, %v4049
        %v4278 = vsel %vm4264, %v4236, %v4051
        %v4280 = vsel %vm4264, %v4239, %v4053
        %v4282 = vsel %vm4264, %v4242, %v4055
        %v4284 = vsel %vm4264, %v4245, %v4057
        %v4286 = vsel %vm4264, %v4248, %v4059
        %v4288 = vsel %vm4264, %v4251, %v4061
        %v4290 = vsel %vm4264, %v4254, %v4063
        %v4292 = vsel %vm4264, %v4257, %v4065
        %v4294 = vsel %vm4264, %v4260, %v4067
        %v4296 = vsel %vm4264, %v4263, %v4069
        %vm4297 = vcmask 785408
        %v4299 = vsel %vm4297, %v4266, %v4074
        %v4302 = vsel %vm4297, %v4268, %v4076
        %v4305 = vsel %vm4297, %v4270, %v4078
        %v4308 = vsel %vm4297, %v4272, %v4080
        %v4311 = vsel %vm4297, %v4274, %v4082
        %v4314 = vsel %vm4297, %v4276, %v4084
        %v4317 = vsel %vm4297, %v4278, %v4086
        %v4320 = vsel %vm4297, %v4280, %v4088
        %v4323 = vsel %vm4297, %v4282, %v4090
        %v4326 = vsel %vm4297, %v4284, %v4092
        %v4329 = vsel %vm4297, %v4286, %v4094
        %v4332 = vsel %vm4297, %v4288, %v4096
        %v4335 = vsel %vm4297, %v4290, %v4098
        %v4338 = vsel %vm4297, %v4292, %v4100
        %v4341 = vsel %vm4297, %v4294, %v4102
        %v4344 = vsel %vm4297, %v4296, %v4104
        %v4348 = vsel %vm2301, %v3943, %v4112
        %v4351 = vsel %vm2301, %v3944, %v4114
        %v4354 = vsel %vm2301, %v3945, %v4116
        %v4357 = vsel %vm2301, %v3946, %v4118
        %v4360 = vsel %vm2301, %v3947, %v4120
        %v4363 = vsel %vm2301, %v3948, %v4122
        %v4366 = vsel %vm2301, %v3949, %v4124
        %v4369 = vsel %vm2301, %v3950, %v4126
        %v4372 = vsel %vm2301, %v3951, %v4128
        %v4375 = vsel %vm2301, %v3952, %v4130
        %v4378 = vsel %vm2301, %v3953, %v4132
        %v4381 = vsel %vm2301, %v3954, %v4134
        %v4384 = vsel %vm2301, %v3955, %v4136
        %v4387 = vsel %vm2301, %v3956, %v4138
        %v4390 = vsel %vm2301, %v3957, %v4140
        %v4393 = vsel %vm2301, %v4107, %v4142
        %v4395 = vsel %vm4264, %v4348, %v4147
        %v4397 = vsel %vm4264, %v4351, %v4149
        %v4399 = vsel %vm4264, %v4354, %v4151
        %v4401 = vsel %vm4264, %v4357, %v4153
        %v4403 = vsel %vm4264, %v4360, %v4155
        %v4405 = vsel %vm4264, %v4363, %v4157
        %v4407 = vsel %vm4264, %v4366, %v4159
        %v4409 = vsel %vm4264, %v4369, %v4161
        %v4411 = vsel %vm4264, %v4372, %v4163
        %v4413 = vsel %vm4264, %v4375, %v4165
        %v4415 = vsel %vm4264, %v4378, %v4167
        %v4417 = vsel %vm4264, %v4381, %v4169
        %v4419 = vsel %vm4264, %v4384, %v4171
        %v4421 = vsel %vm4264, %v4387, %v4173
        %v4423 = vsel %vm4264, %v4390, %v4175
        %v4425 = vsel %vm4264, %v4393, %v4177
        %v4427 = vsel %vm4297, %v4395, %v4182
        %v4430 = vsel %vm4297, %v4397, %v4184
        %v4433 = vsel %vm4297, %v4399, %v4186
        %v4436 = vsel %vm4297, %v4401, %v4188
        %v4439 = vsel %vm4297, %v4403, %v4190
        %v4442 = vsel %vm4297, %v4405, %v4192
        %v4445 = vsel %vm4297, %v4407, %v4194
        %v4448 = vsel %vm4297, %v4409, %v4196
        %v4451 = vsel %vm4297, %v4411, %v4198
        %v4454 = vsel %vm4297, %v4413, %v4200
        %v4457 = vsel %vm4297, %v4415, %v4202
        %v4460 = vsel %vm4297, %v4417, %v4204
        %v4463 = vsel %vm4297, %v4419, %v4206
        %v4466 = vsel %vm4297, %v4421, %v4208
        %v4469 = vsel %vm4297, %v4423, %v4210
        %v4472 = vsel %vm4297, %v4425, %v4212
        %v4474 = vld [vmem:[%s2] sm:$0xf]
        %v4475 = vld [vmem:[%s2 + $0x4] sm:$0xf]
        %v4476 = vld [vmem:[%s2 + $0x8] sm:$0xf]
        %v4477 = vld [vmem:[%s2 + $0xc] sm:$0xf]
        %v4478 = vld [vmem:[%s2 + $0x10] sm:$0xf]
        %v4479 = vld [vmem:[%s2 + $0x14] sm:$0xf]
        %v4480 = vld [vmem:[%s2 + $0x18] sm:$0xf]
        %v4481 = vld [vmem:[%s2 + $0x1c] sm:$0xf]
        %v4482 = vld [vmem:[%s2 + $0x20] sm:$0xf]
        %v4483 = vld [vmem:[%s2 + $0x24] sm:$0xf]
        %v4484 = vld [vmem:[%s2 + $0x28] sm:$0xf]
        %v4485 = vld [vmem:[%s2 + $0x2c] sm:$0xf]
        %v4486 = vld [vmem:[%s2 + $0x30] sm:$0xf]
        %v4487 = vld [vmem:[%s2 + $0x34] sm:$0xf]
        %v4488 = vld [vmem:[%s2 + $0x38] sm:$0xf]
        %v4489 = vld [vmem:[%s2 + $0x3c] sm:$0xf]
        %v4490 = vld [vmem:[%s2 + $0x40] sm:$0xf]
        %v4491 = vld [vmem:[%s2 + $0x44] sm:$0xf]
        %v4492 = vld [vmem:[%s2 + $0x48] sm:$0xf]
        %v4493 = vld [vmem:[%s2 + $0x4c] sm:$0xf]
        %v4494 = vld [vmem:[%s2 + $0x50] sm:$0xf]
        %v4495 = vld [vmem:[%s2 + $0x54] sm:$0xf]
        %v4496 = vld [vmem:[%s2 + $0x58] sm:$0xf]
        %v4497 = vld [vmem:[%s2 + $0x5c] sm:$0xf]
        %v4498 = vld [vmem:[%s2 + $0x60] sm:$0xf]
        %v4499 = vld [vmem:[%s2 + $0x64] sm:$0xf]
        %v4500 = vld [vmem:[%s2 + $0x68] sm:$0xf]
        %v4501 = vld [vmem:[%s2 + $0x6c] sm:$0xf]
        %v4502 = vld [vmem:[%s2 + $0x70] sm:$0xf]
        %v4503 = vld [vmem:[%s2 + $0x74] sm:$0xf]
        %v4504 = vld [vmem:[%s2 + $0x78] sm:$0xf]
        %v4505 = vld [vmem:[%s2 + $0x7c] sm:$0xf]
        %v4506 = vld [vmem:[%s2 + $0x80] sm:$0xf]
        %v4507 = vld [vmem:[%s2 + $0x84] sm:$0xf]
        %v4508 = vld [vmem:[%s2 + $0x88] sm:$0xf]
        %v4509 = vld [vmem:[%s2 + $0x8c] sm:$0xf]
        %v4546 = vunpack.c.l.b16 %v4474
        %v4547 = vunpack.c.l.b16 %v4475
        %v4548 = vunpack.c.l.b16 %v4476
        %v4549 = vunpack.c.l.b16 %v4477
        %v4550 = vunpack.c.l.b16 %v4478
        %v4551 = vunpack.c.l.b16 %v4479
        %v4552 = vunpack.c.l.b16 %v4480
        %v4553 = vunpack.c.l.b16 %v4481
        %v4554 = vunpack.c.l.b16 %v4482
        %v4555 = vunpack.c.l.b16 %v4483
        %v4556 = vunpack.c.l.b16 %v4484
        %v4557 = vunpack.c.l.b16 %v4485
        %v4558 = vunpack.c.l.b16 %v4486
        %v4559 = vunpack.c.l.b16 %v4487
        %v4560 = vunpack.c.l.b16 %v4488
        %v4561 = vunpack.c.l.b16 %v4489
        %v4562 = vunpack.c.l.b16 %v4490
        %v4563 = vunpack.c.l.b16 %v4491
        %v4564 = vunpack.c.l.b16 %v4492
        %v4565 = vunpack.c.l.b16 %v4493
        %v4566 = vunpack.c.l.b16 %v4494
        %v4567 = vunpack.c.l.b16 %v4495
        %v4568 = vunpack.c.l.b16 %v4496
        %v4569 = vunpack.c.l.b16 %v4497
        %v4570 = vunpack.c.l.b16 %v4498
        %v4571 = vunpack.c.l.b16 %v4499
        %v4572 = vunpack.c.l.b16 %v4500
        %v4573 = vunpack.c.l.b16 %v4501
        %v4574 = vunpack.c.l.b16 %v4502
        %v4575 = vunpack.c.l.b16 %v4503
        %v4576 = vunpack.c.l.b16 %v4504
        %v4577 = vunpack.c.l.b16 %v4505
        %v4578 = vunpack.c.l.b16 %v4506
        %v4579 = vunpack.c.l.b16 %v4507
        %v4580 = vunpack.c.l.b16 %v4508
        %v4581 = vunpack.c.l.b16 %v4509
        %v4582 = vpack.c.b16 %v4547, %v4546
        %v4583 = vpack.c.b16 %v4549, %v4548
        %v4584 = vpack.c.b16 %v4551, %v4550
        %v4585 = vpack.c.b16 %v4553, %v4552
        %v4586 = vpack.c.b16 %v4555, %v4554
        %v4587 = vpack.c.b16 %v4557, %v4556
        %v4588 = vpack.c.b16 %v4559, %v4558
        %v4589 = vpack.c.b16 %v4561, %v4560
        %v4590 = vpack.c.b16 %v4563, %v4562
        %v4591 = vpack.c.b16 %v4565, %v4564
        %v4592 = vpack.c.b16 %v4567, %v4566
        %v4593 = vpack.c.b16 %v4569, %v4568
        %v4594 = vpack.c.b16 %v4571, %v4570
        %v4595 = vpack.c.b16 %v4573, %v4572
        %v4596 = vpack.c.b16 %v4575, %v4574
        %v4597 = vpack.c.b16 %v4577, %v4576
        %v4598 = vpack.c.b16 %v4579, %v4578
        %v4599 = vpack.c.b16 %v4581, %v4580
        %v4619 = vsel %vm2301, %v4024, 0
        %v4622 = vsel %vm2301, %v4025, 0
        %v4625 = vsel %vm2301, %v4026, 0
        %v4628 = vsel %vm2301, %v4027, 0
        %v4631 = vsel %vm2301, %v4028, 0
        %v4634 = vsel %vm2301, %v4029, 0
        %v4637 = vsel %vm2301, %v4030, 0
        %v4640 = vsel %vm2301, %v4031, 0
        %v4643 = vsel %vm2301, %v4032, 0
        %v4646 = vsel %vm2301, %v4033, 0
        %v4649 = vsel %vm2301, %v4034, 0
        %v4652 = vsel %vm2301, %v4035, 0
        %v4655 = vsel %vm2301, %v4036, 0
        %v4658 = vsel %vm2301, %v4037, 0
        %v4661 = vsel %vm2301, %v4110, 0
        %v4664 = vsel %vm2301, %v4215, 0
        %4666 = vmatprep.subr.bf16.mxu0 0
        %4667 = vmatpush1.bf16.msra.mxu0 %v4582
        %4668 = vmatprep.subr.bf16.mxu0 0
        %4669 = vmatpush1.bf16.msra.mxu0 %v4583
        %4670 = vmatprep.subr.bf16.mxu0 0
        %4671 = vmatpush1.bf16.msra.mxu0 %v4584
        %4672 = vmatprep.subr.bf16.mxu0 0
        %4673 = vmatpush1.bf16.msra.mxu0 %v4585
        %4674 = vmatprep.subr.bf16.mxu0 0
        %4675 = vmatpush1.bf16.msra.mxu0 %v4586
        %4676 = vmatprep.subr.bf16.mxu0 0
        %4677 = vmatpush1.bf16.msra.mxu0 %v4587
        %4678 = vmatprep.subr.bf16.mxu0 0
        %4679 = vmatpush1.bf16.msra.mxu0 %v4588
        %4680 = vmatprep.subr.bf16.mxu0 0
        %4681 = vmatpush1.bf16.msra.mxu0 %v4589
        %4682 = vmatprep.subr.bf16.mxu0 0
        %4683 = vmatpush1.bf16.msra.mxu0 %v4590
        %4684 = vmatprep.subr.bf16.mxu0 0
        %4685 = vmatpush1.bf16.msra.mxu0 %v4591
        %4686 = vmatprep.subr.bf16.mxu0 0
        %4687 = vmatpush1.bf16.msra.mxu0 %v4592
        %4688 = vmatprep.subr.bf16.mxu0 0
        %4689 = vmatpush1.bf16.msra.mxu0 %v4593
        %4690 = vmatprep.subr.bf16.mxu0 0
        %4691 = vmatpush1.bf16.msra.mxu0 %v4594
        %4692 = vmatprep.subr.bf16.mxu0 0
        %4693 = vmatpush1.bf16.msra.mxu0 %v4595
        %4694 = vmatprep.subr.bf16.mxu0 0
        %4695 = vmatpush1.bf16.msra.mxu0 %v4596
        %4696 = vmatprep.subr.bf16.mxu0 0
        %4697 = vmatpush1.bf16.msra.mxu0 %v4597
        %4698 = vmatprep.mubr.bf16.mxu0 %v4427
        %4699 = vmatmul.mubr.bf16.gmra.mrb[0].mxu0 %v4299
        %v4700 = vpop.f32.mrb[0].mxu0
        %v4701 = vadd.f32 0.0, %v4700
        %v4702 = vpop.f32.mrb[0].mxu0
        %v4703 = vpop.f32.mrb[0].mxu0
        %v4704 = vadd.f32 0.0, %v4703
        %v4705 = vpop.f32.mrb[0].mxu0
        %4706 = vmatprep.mubr.bf16.mxu0 %v4430
        %4707 = vmatmul.mubr.bf16.gmra.mrb[0].mxu0 %v4302
        %v4708 = vpop.f32.mrb[0].mxu0
        %v4709 = vadd.f32 0.0, %v4708
        %v4710 = vpop.f32.mrb[0].mxu0
        %v4711 = vpop.f32.mrb[0].mxu0
        %v4712 = vadd.f32 0.0, %v4711
        %v4713 = vpop.f32.mrb[0].mxu0
        %4714 = vmatprep.mubr.bf16.mxu0 %v4433
        %4715 = vmatmul.mubr.bf16.gmra.mrb[0].mxu0 %v4305
        %v4716 = vpop.f32.mrb[0].mxu0
        %v4717 = vadd.f32 0.0, %v4716
        %v4718 = vpop.f32.mrb[0].mxu0
        %v4719 = vpop.f32.mrb[0].mxu0
        %v4720 = vadd.f32 0.0, %v4719
        %v4721 = vpop.f32.mrb[0].mxu0
        %4722 = vmatprep.mubr.bf16.mxu0 %v4436
        %4723 = vmatmul.mubr.bf16.gmra.mrb[0].mxu0 %v4308
        %v4724 = vpop.f32.mrb[0].mxu0
        %v4725 = vadd.f32 0.0, %v4724
        %v4726 = vpop.f32.mrb[0].mxu0
        %v4727 = vpop.f32.mrb[0].mxu0
        %v4728 = vadd.f32 0.0, %v4727
        %v4729 = vpop.f32.mrb[0].mxu0
        %4730 = vmatprep.mubr.bf16.mxu0 %v4439
        %4731 = vmatmul.mubr.bf16.gmra.mrb[0].mxu0 %v4311
        %v4732 = vpop.f32.mrb[0].mxu0
        %v4733 = vadd.f32 0.0, %v4732
        %v4734 = vpop.f32.mrb[0].mxu0
        %v4735 = vpop.f32.mrb[0].mxu0
        %v4736 = vadd.f32 0.0, %v4735
        %v4737 = vpop.f32.mrb[0].mxu0
        %4738 = vmatprep.mubr.bf16.mxu0 %v4442
        %4739 = vmatmul.mubr.bf16.gmra.mrb[0].mxu0 %v4314
        %v4740 = vpop.f32.mrb[0].mxu0
        %v4741 = vadd.f32 0.0, %v4740
        %v4742 = vpop.f32.mrb[0].mxu0
        %v4743 = vpop.f32.mrb[0].mxu0
        %v4744 = vadd.f32 0.0, %v4743
        %v4745 = vpop.f32.mrb[0].mxu0
        %4746 = vmatprep.mubr.bf16.mxu0 %v4445
        %4747 = vmatmul.mubr.bf16.gmra.mrb[0].mxu0 %v4317
        %v4748 = vpop.f32.mrb[0].mxu0
        %v4749 = vadd.f32 0.0, %v4748
        %v4750 = vpop.f32.mrb[0].mxu0
        %v4751 = vpop.f32.mrb[0].mxu0
        %v4752 = vadd.f32 0.0, %v4751
        %v4753 = vpop.f32.mrb[0].mxu0
        %4754 = vmatprep.mubr.bf16.mxu0 %v4448
        %4755 = vmatmul.mubr.bf16.gmra.mrb[0].mxu0 %v4320
        %v4756 = vpop.f32.mrb[0].mxu0
        %v4757 = vadd.f32 0.0, %v4756
        %v4758 = vpop.f32.mrb[0].mxu0
        %v4759 = vpop.f32.mrb[0].mxu0
        %v4760 = vadd.f32 0.0, %v4759
        %v4761 = vpop.f32.mrb[0].mxu0
        %4762 = vmatprep.mubr.bf16.mxu0 %v4451
        %4763 = vmatmul.mubr.bf16.gmra.mrb[0].mxu0 %v4323
        %v4764 = vpop.f32.mrb[0].mxu0
        %v4765 = vadd.f32 0.0, %v4764
        %v4766 = vpop.f32.mrb[0].mxu0
        %v4767 = vpop.f32.mrb[0].mxu0
        %v4768 = vadd.f32 0.0, %v4767
        %v4769 = vpop.f32.mrb[0].mxu0
        %4770 = vmatprep.mubr.bf16.mxu0 %v4454
        %4771 = vmatmul.mubr.bf16.gmra.mrb[0].mxu0 %v4326
        %v4772 = vpop.f32.mrb[0].mxu0
        %v4773 = vadd.f32 0.0, %v4772
        %v4774 = vpop.f32.mrb[0].mxu0
        %v4775 = vpop.f32.mrb[0].mxu0
        %v4776 = vadd.f32 0.0, %v4775
        %v4777 = vpop.f32.mrb[0].mxu0
        %4778 = vmatprep.mubr.bf16.mxu0 %v4457
        %4779 = vmatmul.mubr.bf16.gmra.mrb[0].mxu0 %v4329
        %v4780 = vpop.f32.mrb[0].mxu0
        %v4781 = vadd.f32 0.0, %v4780
        %v4782 = vpop.f32.mrb[0].mxu0
        %v4783 = vpop.f32.mrb[0].mxu0
        %v4784 = vadd.f32 0.0, %v4783
        %v4785 = vpop.f32.mrb[0].mxu0
        %4786 = vmatprep.mubr.bf16.mxu0 %v4460
        %4787 = vmatmul.mubr.bf16.gmra.mrb[0].mxu0 %v4332
        %v4788 = vpop.f32.mrb[0].mxu0
        %v4789 = vadd.f32 0.0, %v4788
        %v4790 = vpop.f32.mrb[0].mxu0
        %v4791 = vpop.f32.mrb[0].mxu0
        %v4792 = vadd.f32 0.0, %v4791
        %v4793 = vpop.f32.mrb[0].mxu0
        %4794 = vmatprep.mubr.bf16.mxu0 %v4463
        %4795 = vmatmul.mubr.bf16.gmra.mrb[0].mxu0 %v4335
        %v4796 = vpop.f32.mrb[0].mxu0
        %v4797 = vadd.f32 0.0, %v4796
        %v4798 = vpop.f32.mrb[0].mxu0
        %v4799 = vpop.f32.mrb[0].mxu0
        %v4800 = vadd.f32 0.0, %v4799
        %v4801 = vpop.f32.mrb[0].mxu0
        %4802 = vmatprep.mubr.bf16.mxu0 %v4466
        %4803 = vmatmul.mubr.bf16.gmra.mrb[0].mxu0 %v4338
        %v4804 = vpop.f32.mrb[0].mxu0
        %v4805 = vadd.f32 0.0, %v4804
        %v4806 = vpop.f32.mrb[0].mxu0
        %v4807 = vpop.f32.mrb[0].mxu0
        %v4808 = vadd.f32 0.0, %v4807
        %v4809 = vpop.f32.mrb[0].mxu0
        %4810 = vmatprep.mubr.bf16.mxu0 %v4469
        %4811 = vmatmul.mubr.bf16.gmra.mrb[0].mxu0 %v4341
        %v4812 = vpop.f32.mrb[0].mxu0
        %v4813 = vadd.f32 0.0, %v4812
        %v4814 = vpop.f32.mrb[0].mxu0
        %v4815 = vpop.f32.mrb[0].mxu0
        %v4816 = vadd.f32 0.0, %v4815
        %v4817 = vpop.f32.mrb[0].mxu0
        %4818 = vmatprep.mubr.bf16.mxu0 %v4472
        %4819 = vmatmul.mubr.bf16.gmra.mrb[0].mxu0 %v4344
        %v4820 = vpop.f32.mrb[0].mxu0
        %v4821 = vadd.f32 0.0, %v4820
        %v4822 = vpop.f32.mrb[0].mxu0
        %v4823 = vpop.f32.mrb[0].mxu0
        %v4824 = vadd.f32 0.0, %v4823
        %v4825 = vpop.f32.mrb[0].mxu0
        %4826 = vdwg.mxu0
        %4827 = vmatprep.subr.bf16.mxu0 0
        %4828 = vmatpush1.bf16.msra.mxu0 %v4598
        %4829 = vmatprep.subr.bf16.mxu0 0
        %4830 = vmatpush1.bf16.msra.mxu0 %v4599
        %4831 = vmatprep.subr.bf16.mxu0 0
        %4832 = vmatpush1.bf16.msra.mxu0 0
        %4833 = vmatprep.subr.bf16.mxu0 0
        %4834 = vmatpush1.bf16.msra.mxu0 0
        %4835 = vmatprep.subr.bf16.mxu0 0
        %4836 = vmatpush1.bf16.msra.mxu0 0
        %4837 = vmatprep.subr.bf16.mxu0 0
        %4838 = vmatpush1.bf16.msra.mxu0 0
        %4839 = vmatprep.subr.bf16.mxu0 0
        %4840 = vmatpush1.bf16.msra.mxu0 0
        %4841 = vmatprep.subr.bf16.mxu0 0
        %4842 = vmatpush1.bf16.msra.mxu0 0
        %4843 = vmatprep.subr.bf16.mxu0 0
        %4844 = vmatpush1.bf16.msra.mxu0 0
        %4845 = vmatprep.subr.bf16.mxu0 0
        %4846 = vmatpush1.bf16.msra.mxu0 0
        %4847 = vmatprep.subr.bf16.mxu0 0
        %4848 = vmatpush1.bf16.msra.mxu0 0
        %4849 = vmatprep.subr.bf16.mxu0 0
        %4850 = vmatpush1.bf16.msra.mxu0 0
        %4851 = vmatprep.subr.bf16.mxu0 0
        %4852 = vmatpush1.bf16.msra.mxu0 0
        %4853 = vmatprep.subr.bf16.mxu0 0
        %4854 = vmatpush1.bf16.msra.mxu0 0
        %4855 = vmatprep.subr.bf16.mxu0 0
        %4856 = vmatpush1.bf16.msra.mxu0 0
        %4857 = vmatprep.subr.bf16.mxu0 0
        %4858 = vmatpush1.bf16.msra.mxu0 0
        %4859 = vmatprep.mubr.bf16.mxu0 0
        %4860 = vmatmul.mubr.bf16.gmra.mrb[0].mxu0 %v4619
        %v4861 = vpop.f32.mrb[0].mxu0
        %v4862 = vadd.f32 %v4701, %v4861
        %v4863 = vpop.f32.mrb[0].mxu0
        %v4864 = vpop.f32.mrb[0].mxu0
        %v4865 = vadd.f32 %v4704, %v4864
        %v4866 = vpop.f32.mrb[0].mxu0
        %4867 = vmatprep.mubr.bf16.mxu0 0
        %4868 = vmatmul.mubr.bf16.gmra.mrb[0].mxu0 %v4622
        %v4869 = vpop.f32.mrb[0].mxu0
        %v4870 = vadd.f32 %v4709, %v4869
        %v4871 = vpop.f32.mrb[0].mxu0
        %v4872 = vpop.f32.mrb[0].mxu0
        %v4873 = vadd.f32 %v4712, %v4872
        %v4874 = vpop.f32.mrb[0].mxu0
        %4875 = vmatprep.mubr.bf16.mxu0 0
        %4876 = vmatmul.mubr.bf16.gmra.mrb[0].mxu0 %v4625
        %v4877 = vpop.f32.mrb[0].mxu0
        %v4878 = vadd.f32 %v4717, %v4877
        %v4879 = vpop.f32.mrb[0].mxu0
        %v4880 = vpop.f32.mrb[0].mxu0
        %v4881 = vadd.f32 %v4720, %v4880
        %v4882 = vpop.f32.mrb[0].mxu0
        %4883 = vmatprep.mubr.bf16.mxu0 0
        %4884 = vmatmul.mubr.bf16.gmra.mrb[0].mxu0 %v4628
        %v4885 = vpop.f32.mrb[0].mxu0
        %v4886 = vadd.f32 %v4725, %v4885
        %v4887 = vpop.f32.mrb[0].mxu0
        %v4888 = vpop.f32.mrb[0].mxu0
        %v4889 = vadd.f32 %v4728, %v4888
        %v4890 = vpop.f32.mrb[0].mxu0
        %4891 = vmatprep.mubr.bf16.mxu0 0
        %4892 = vmatmul.mubr.bf16.gmra.mrb[0].mxu0 %v4631
        %v4893 = vpop.f32.mrb[0].mxu0
        %v4894 = vadd.f32 %v4733, %v4893
        %v4895 = vpop.f32.mrb[0].mxu0
        %v4896 = vpop.f32.mrb[0].mxu0
        %v4897 = vadd.f32 %v4736, %v4896
        %v4898 = vpop.f32.mrb[0].mxu0
        %4899 = vmatprep.mubr.bf16.mxu0 0
        %4900 = vmatmul.mubr.bf16.gmra.mrb[0].mxu0 %v4634
        %v4901 = vpop.f32.mrb[0].mxu0
        %v4902 = vadd.f32 %v4741, %v4901
        %v4903 = vpop.f32.mrb[0].mxu0
        %v4904 = vpop.f32.mrb[0].mxu0
        %v4905 = vadd.f32 %v4744, %v4904
        %v4906 = vpop.f32.mrb[0].mxu0
        %4907 = vmatprep.mubr.bf16.mxu0 0
        %4908 = vmatmul.mubr.bf16.gmra.mrb[0].mxu0 %v4637
        %v4909 = vpop.f32.mrb[0].mxu0
        %v4910 = vadd.f32 %v4749, %v4909
        %v4911 = vpop.f32.mrb[0].mxu0
        %v4912 = vpop.f32.mrb[0].mxu0
        %v4913 = vadd.f32 %v4752, %v4912
        %v4914 = vpop.f32.mrb[0].mxu0
        %4915 = vmatprep.mubr.bf16.mxu0 0
        %4916 = vmatmul.mubr.bf16.gmra.mrb[0].mxu0 %v4640
        %v4917 = vpop.f32.mrb[0].mxu0
        %v4918 = vadd.f32 %v4757, %v4917
        %v4919 = vpop.f32.mrb[0].mxu0
        %v4920 = vpop.f32.mrb[0].mxu0
        %v4921 = vadd.f32 %v4760, %v4920
        %v4922 = vpop.f32.mrb[0].mxu0
        %4923 = vmatprep.mubr.bf16.mxu0 0
        %4924 = vmatmul.mubr.bf16.gmra.mrb[0].mxu0 %v4643
        %v4925 = vpop.f32.mrb[0].mxu0
        %v4926 = vadd.f32 %v4765, %v4925
        %v4927 = vpop.f32.mrb[0].mxu0
        %v4928 = vpop.f32.mrb[0].mxu0
        %v4929 = vadd.f32 %v4768, %v4928
        %v4930 = vpop.f32.mrb[0].mxu0
        %4931 = vmatprep.mubr.bf16.mxu0 0
        %4932 = vmatmul.mubr.bf16.gmra.mrb[0].mxu0 %v4646
        %v4933 = vpop.f32.mrb[0].mxu0
        %v4934 = vadd.f32 %v4773, %v4933
        %v4935 = vpop.f32.mrb[0].mxu0
        %v4936 = vpop.f32.mrb[0].mxu0
        %v4937 = vadd.f32 %v4776, %v4936
        %v4938 = vpop.f32.mrb[0].mxu0
        %4939 = vmatprep.mubr.bf16.mxu0 0
        %4940 = vmatmul.mubr.bf16.gmra.mrb[0].mxu0 %v4649
        %v4941 = vpop.f32.mrb[0].mxu0
        %v4942 = vadd.f32 %v4781, %v4941
        %v4943 = vpop.f32.mrb[0].mxu0
        %v4944 = vpop.f32.mrb[0].mxu0
        %v4945 = vadd.f32 %v4784, %v4944
        %v4946 = vpop.f32.mrb[0].mxu0
        %4947 = vmatprep.mubr.bf16.mxu0 0
        %4948 = vmatmul.mubr.bf16.gmra.mrb[0].mxu0 %v4652
        %v4949 = vpop.f32.mrb[0].mxu0
        %v4950 = vadd.f32 %v4789, %v4949
        %v4951 = vpop.f32.mrb[0].mxu0
        %v4952 = vpop.f32.mrb[0].mxu0
        %v4953 = vadd.f32 %v4792, %v4952
        %v4954 = vpop.f32.mrb[0].mxu0
        %4955 = vmatprep.mubr.bf16.mxu0 0
        %4956 = vmatmul.mubr.bf16.gmra.mrb[0].mxu0 %v4655
        %v4957 = vpop.f32.mrb[0].mxu0
        %v4958 = vadd.f32 %v4797, %v4957
        %v4959 = vpop.f32.mrb[0].mxu0
        %v4960 = vpop.f32.mrb[0].mxu0
        %v4961 = vadd.f32 %v4800, %v4960
        %v4962 = vpop.f32.mrb[0].mxu0
        %4963 = vmatprep.mubr.bf16.mxu0 0
        %4964 = vmatmul.mubr.bf16.gmra.mrb[0].mxu0 %v4658
        %v4965 = vpop.f32.mrb[0].mxu0
        %v4966 = vadd.f32 %v4805, %v4965
        %v4967 = vpop.f32.mrb[0].mxu0
        %v4968 = vpop.f32.mrb[0].mxu0
        %v4969 = vadd.f32 %v4808, %v4968
        %v4970 = vpop.f32.mrb[0].mxu0
        %4971 = vmatprep.mubr.bf16.mxu0 0
        %4972 = vmatmul.mubr.bf16.gmra.mrb[0].mxu0 %v4661
        %v4973 = vpop.f32.mrb[0].mxu0
        %v4974 = vadd.f32 %v4813, %v4973
        %v4975 = vpop.f32.mrb[0].mxu0
        %v4976 = vpop.f32.mrb[0].mxu0
        %v4977 = vadd.f32 %v4816, %v4976
        %v4978 = vpop.f32.mrb[0].mxu0
        %4979 = vmatprep.mubr.bf16.mxu0 0
        %4980 = vmatmul.mubr.bf16.gmra.mrb[0].mxu0 %v4664
        %v4981 = vpop.f32.mrb[0].mxu0
        %v4982 = vadd.f32 %v4821, %v4981
        %v4983 = vpop.f32.mrb[0].mxu0
        %v4984 = vpop.f32.mrb[0].mxu0
        %v4985 = vadd.f32 %v4824, %v4984
        %v4986 = vpop.f32.mrb[0].mxu0
        %4987 = vdwg.mxu0
        %v4988 = vld [vmem:[%s5] sm:$0x1]
        %v4990 = vlaneseq
        %v4991 = vshrl.u32 %v4990, 7
        %v4992 = vsub.s32 0, %v4991
        %v4993 = vrot.slane %v4988, %v4992
        %v4995 = vmul.f32 %v4862, %v4993
        %v4996 = vmul.f32 %v4865, %v4993
        %v4997 = vmul.f32 %v4870, %v4993
        %v4998 = vmul.f32 %v4873, %v4993
        %v4999 = vmul.f32 %v4878, %v4993
        %v5000 = vmul.f32 %v4881, %v4993
        %v5001 = vmul.f32 %v4886, %v4993
        %v5002 = vmul.f32 %v4889, %v4993
        %v5003 = vmul.f32 %v4894, %v4993
        %v5004 = vmul.f32 %v4897, %v4993
        %v5005 = vmul.f32 %v4902, %v4993
        %v5006 = vmul.f32 %v4905, %v4993
        %v5007 = vmul.f32 %v4910, %v4993
        %v5008 = vmul.f32 %v4913, %v4993
        %v5009 = vmul.f32 %v4918, %v4993
        %v5010 = vmul.f32 %v4921, %v4993
        %v5011 = vmul.f32 %v4926, %v4993
        %v5012 = vmul.f32 %v4929, %v4993
        %v5013 = vmul.f32 %v4934, %v4993
        %v5014 = vmul.f32 %v4937, %v4993
        %v5015 = vmul.f32 %v4942, %v4993
        %v5016 = vmul.f32 %v4945, %v4993
        %v5017 = vmul.f32 %v4950, %v4993
        %v5018 = vmul.f32 %v4953, %v4993
        %v5019 = vmul.f32 %v4958, %v4993
        %v5020 = vmul.f32 %v4961, %v4993
        %v5021 = vmul.f32 %v4966, %v4993
        %v5022 = vmul.f32 %v4969, %v4993
        %v5023 = vmul.f32 %v4974, %v4993
        %v5024 = vmul.f32 %v4977, %v4993
        %v5025 = vmul.f32 %v4982, %v4993
        %v5026 = vmul.f32 %v4985, %v4993
        %v5027 = vld [vmem:[%s6] sm:$0x1]
        %v5029 = vlaneseq
        %v5030 = vshrl.u32 %v5029, 7
        %v5031 = vsub.s32 0, %v5030
        %v5032 = vrot.slane %v5027, %v5031
        %v5034 = vadd.f32 %v4995, %v5032
        %v5035 = vadd.f32 %v4996, %v5032
        %v5036 = vadd.f32 %v4997, %v5032
        %v5037 = vadd.f32 %v4998, %v5032
        %v5038 = vadd.f32 %v4999, %v5032
        %v5039 = vadd.f32 %v5000, %v5032
        %v5040 = vadd.f32 %v5001, %v5032
        %v5041 = vadd.f32 %v5002, %v5032
        %v5042 = vadd.f32 %v5003, %v5032
        %v5043 = vadd.f32 %v5004, %v5032
        %v5044 = vadd.f32 %v5005, %v5032
        %v5045 = vadd.f32 %v5006, %v5032
        %v5046 = vadd.f32 %v5007, %v5032
        %v5047 = vadd.f32 %v5008, %v5032
        %v5048 = vadd.f32 %v5009, %v5032
        %v5049 = vadd.f32 %v5010, %v5032
        %v5050 = vadd.f32 %v5011, %v5032
        %v5051 = vadd.f32 %v5012, %v5032
        %v5052 = vadd.f32 %v5013, %v5032
        %v5053 = vadd.f32 %v5014, %v5032
        %v5054 = vadd.f32 %v5015, %v5032
        %v5055 = vadd.f32 %v5016, %v5032
        %v5056 = vadd.f32 %v5017, %v5032
        %v5057 = vadd.f32 %v5018, %v5032
        %v5058 = vadd.f32 %v5019, %v5032
        %v5059 = vadd.f32 %v5020, %v5032
        %v5060 = vadd.f32 %v5021, %v5032
        %v5061 = vadd.f32 %v5022, %v5032
        %v5062 = vadd.f32 %v5023, %v5032
        %v5063 = vadd.f32 %v5024, %v5032
        %v5064 = vadd.f32 %v5025, %v5032
        %v5065 = vadd.f32 %v5026, %v5032
        %v5066 = vmax.f32 %v5034, 0.0
        %v5067 = vmax.f32 %v5035, 0.0
        %v5068 = vmax.f32 %v5036, 0.0
        %v5069 = vmax.f32 %v5037, 0.0
        %v5070 = vmax.f32 %v5038, 0.0
        %v5071 = vmax.f32 %v5039, 0.0
        %v5072 = vmax.f32 %v5040, 0.0
        %v5073 = vmax.f32 %v5041, 0.0
        %v5074 = vmax.f32 %v5042, 0.0
        %v5075 = vmax.f32 %v5043, 0.0
        %v5076 = vmax.f32 %v5044, 0.0
        %v5077 = vmax.f32 %v5045, 0.0
        %v5078 = vmax.f32 %v5046, 0.0
        %v5079 = vmax.f32 %v5047, 0.0
        %v5080 = vmax.f32 %v5048, 0.0
        %v5081 = vmax.f32 %v5049, 0.0
        %v5082 = vmax.f32 %v5050, 0.0
        %v5083 = vmax.f32 %v5051, 0.0
        %v5084 = vmax.f32 %v5052, 0.0
        %v5085 = vmax.f32 %v5053, 0.0
        %v5086 = vmax.f32 %v5054, 0.0
        %v5087 = vmax.f32 %v5055, 0.0
        %v5088 = vmax.f32 %v5056, 0.0
        %v5089 = vmax.f32 %v5057, 0.0
        %v5090 = vmax.f32 %v5058, 0.0
        %v5091 = vmax.f32 %v5059, 0.0
        %v5092 = vmax.f32 %v5060, 0.0
        %v5093 = vmax.f32 %v5061, 0.0
        %v5094 = vmax.f32 %v5062, 0.0
        %v5095 = vmax.f32 %v5063, 0.0
        %v5096 = vmax.f32 %v5064, 0.0
        %v5097 = vmax.f32 %v5065, 0.0
        %5098 = vst.msk [vmem:[%s271] sm:$0xff] %vm2301, %v5066
        %5099 = vst.msk [vmem:[%s271 + $0x8] sm:$0xff] %vm2301, %v5067
        %5100 = vst.msk [vmem:[%s271 + $0x10] sm:$0xff] %vm2301, %v5068
        %5101 = vst.msk [vmem:[%s271 + $0x18] sm:$0xff] %vm2301, %v5069
        %5102 = vst.msk [vmem:[%s271 + $0x20] sm:$0xff] %vm2301, %v5070
        %5103 = vst.msk [vmem:[%s271 + $0x28] sm:$0xff] %vm2301, %v5071
        %5104 = vst.msk [vmem:[%s271 + $0x30] sm:$0xff] %vm2301, %v5072
        %5105 = vst.msk [vmem:[%s271 + $0x38] sm:$0xff] %vm2301, %v5073
        %5106 = vst.msk [vmem:[%s271 + $0x40] sm:$0xff] %vm2301, %v5074
        %5107 = vst.msk [vmem:[%s271 + $0x48] sm:$0xff] %vm2301, %v5075
        %5108 = vst.msk [vmem:[%s271 + $0x50] sm:$0xff] %vm2301, %v5076
        %5109 = vst.msk [vmem:[%s271 + $0x58] sm:$0xff] %vm2301, %v5077
        %5110 = vst.msk [vmem:[%s271 + $0x60] sm:$0xff] %vm2301, %v5078
        %5111 = vst.msk [vmem:[%s271 + $0x68] sm:$0xff] %vm2301, %v5079
        %5112 = vst.msk [vmem:[%s271 + $0x70] sm:$0xff] %vm2301, %v5080
        %5113 = vst.msk [vmem:[%s271 + $0x78] sm:$0xff] %vm2301, %v5081
        %5114 = vst.msk [vmem:[%s271 + $0x80] sm:$0xff] %vm2301, %v5082
        %5115 = vst.msk [vmem:[%s271 + $0x88] sm:$0xff] %vm2301, %v5083
        %5116 = vst.msk [vmem:[%s271 + $0x90] sm:$0xff] %vm2301, %v5084
        %5117 = vst.msk [vmem:[%s271 + $0x98] sm:$0xff] %vm2301, %v5085
        %5118 = vst.msk [vmem:[%s271 + $0xa0] sm:$0xff] %vm2301, %v5086
        %5119 = vst.msk [vmem:[%s271 + $0xa8] sm:$0xff] %vm2301, %v5087
        %5120 = vst.msk [vmem:[%s271 + $0xb0] sm:$0xff] %vm2301, %v5088
        %5121 = vst.msk [vmem:[%s271 + $0xb8] sm:$0xff] %vm2301, %v5089
        %5122 = vst.msk [vmem:[%s271 + $0xc0] sm:$0xff] %vm2301, %v5090
        %5123 = vst.msk [vmem:[%s271 + $0xc8] sm:$0xff] %vm2301, %v5091
        %5124 = vst.msk [vmem:[%s271 + $0xd0] sm:$0xff] %vm2301, %v5092
        %5125 = vst.msk [vmem:[%s271 + $0xd8] sm:$0xff] %vm2301, %v5093
        %5126 = vst.msk [vmem:[%s271 + $0xe0] sm:$0xff] %vm2301, %v5094
        %5127 = vst.msk [vmem:[%s271 + $0xe8] sm:$0xff] %vm2301, %v5095
        %5128 = vst.msk [vmem:[%s271 + $0xf0] sm:$0xff] %vm2301, %v5096
        %5129 = vst.msk [vmem:[%s271 + $0xf8] sm:$0xff] %vm2301, %v5097
        %s5130 = sand.u32 %s181, 1
        %s5131 = scalar_lea.sflag [#allocation5], %s5130
        %s5132 = sand.u32 %s181, 1
        %s5133 = smul.addr %s5132, 256
        %s5134 = scalar_lea.vmem [#allocation4], %s5133
        // Predicated region
        $region53: #{tpu_custom_call.1} parent=47 // pred_check
          %p5135 = pneg %p191
        $region54: #{tpu_custom_call.1} parent=47 // pred_check_branch
          %5137 = sbr.rel (%p5135) target = $region56
        $region55: #{tpu_custom_call.1} parent=47 // pred_region
          %s5139 = ssub.s32 4096, 4096
          %5140 = vsyncadd %s5131, %s5139
          %s5141 = smul.addr %s21, 32
          %s5142 = smul.addr %s5141, 128
          %s5143 = scalar_lea.hbm %s7, %s5142
          %s5144 = sshll.u32 %s5134, 4
          %s5145 = int_to_ptr.vmem [resolvable:$true] %s5144
          %5150 = dma.vmem_to_hbm [thread:$0]  %s5145, 4096, %s5143, %s5131, 128, 128, 8
        $region56: #{tpu_custom_call.1} parent=47 // pred_fallthru
          _
      $region48: #{tpu_custom_call.1} parent=5 // pred_fallthru
        _
      %p5151 = scmp.le.s32.totalorder 2, %s16
      // Predicated region
      $region57: #{tpu_custom_call.1} parent=5 // pred_check
        %p5152 = pneg %p5151
      $region58: #{tpu_custom_call.1} parent=5 // pred_check_branch
        %5154 = sbr.rel (%p5152) target = $region60
      $region59: #{tpu_custom_call.1} parent=5 // pred_region
        %s5155 = ssub.s32 %s16, 2
        // Predicated region
        $region61: #{tpu_custom_call.1} parent=59 // pred_check
          %p5156 = pneg %p197
        $region62: #{tpu_custom_call.1} parent=59 // pred_check_branch
          %5158 = sbr.rel (%p5156) target = $region64
        $region63: #{tpu_custom_call.1} parent=59 // pred_region
          %s5159 = sand.u32 %s182, 1
          %s5160 = scalar_lea.sflag [#allocation5], %s5159
          %s5161 = sand.u32 %s182, 1
          %s5162 = smul.addr %s5161, 256
          %s5163 = scalar_lea.vmem [#allocation4], %s5162
          %5164 = dma.done %s5160, 4096
        $region64: #{tpu_custom_call.1} parent=59 // pred_fallthru
          _
      $region60: #{tpu_custom_call.1} parent=5 // pred_fallthru
        _
    $region6: #{tpu_custom_call.1} parent=1 // loop_footer
      %s20 = sadd.s32 1, %s16
    $region7: #{tpu_custom_call.1} parent=1 // loop_footer_branch
      %15 = sbr.rel target = $region3
    $region8: #{tpu_custom_call.1} parent=1 // loop_exit
      _
    %5165 = vsyncpa [#allocation5], 1
    %s5166 = scalar_lea.sflag [#allocation5], 1
    %5167 = vsyncpa %s5166, 1

</llo_original>
